<compile_context>
chip_gen: v7x
topology: tpu7x:2x2x1
jax: 0.10.0
libtpu: 0.0.40
codegen_flags: <defaults>
</compile_context>

<pallas_src>
import functools

import jax
import jax.numpy as jnp
from jax.experimental import pallas as pl
from jax.experimental.pallas import tpu as pltpu

LANE = 128       # fc3 output is zero-padded to this many columns (lane-dense store)
SUBLANE = 16     # bf16-native sublane granularity for batch tiles


def _mlp_kernel(x_ref, w1_ref, b1_ref, w2_ref, b2_ref, w3_ref, b3_ref, o_ref):
    # Cast the f32 activation tile to bf16 in-kernel (VPU work hidden under the
    # MXU/DMA pipeline) and run fc1 + ReLU with f32 accumulation on the MXU.
    x = x_ref[...].astype(jnp.bfloat16)
    h1 = jnp.dot(x, w1_ref[...], preferred_element_type=jnp.float32)
    h1 = jnp.maximum(h1 + b1_ref[...], 0.0)
    # fc2 + ReLU.
    h2 = jnp.dot(h1.astype(jnp.bfloat16), w2_ref[...],
                 preferred_element_type=jnp.float32)
    h2 = jnp.maximum(h2 + b2_ref[...], 0.0)
    # fc3 (logits, lane-padded to 128 columns, no activation); store as bf16.
    out = jnp.dot(h2.astype(jnp.bfloat16), w3_ref[...],
                  preferred_element_type=jnp.float32)
    o_ref[...] = (out + b3_ref[...]).astype(o_ref.dtype)


def _round_up(n, m):
    return ((n + m - 1) // m) * m


def _pick_batch_tile(B):
    # Bigger tiles amortize per-grid-step overhead and approach the HBM roofline;
    # cap at 512 so the double-buffered f32 x tile (2 x ~4.7 MB) plus resident
    # bf16 weights (~2.7 MB) stays comfortably under the 32 MiB VMEM limit.
    if B >= 512:
        return 512
    if B >= 256:
        return 256
    # Small batches: one tile, 16-row aligned for bf16-native sublane packing.
    return max(SUBLANE, _round_up(B, SUBLANE))


@functools.partial(jax.jit, static_argnames=("num_classes",))
def emotion_model_forward(x, params, *, num_classes=4):
    """x: (B, input_size) float32.  params: dict (w1,b1,w2,b2,w3,b3) from init_params."""
    w1, b1, w2, b2, w3, b3 = (params["w1"], params["b1"], params["w2"],
                              params["b2"], params["w3"], params["b3"])
    B, D_in = x.shape
    H1 = w1.shape[1]
    H2 = w2.shape[1]
    C_pad = w3.shape[1]          # lane-padded to 128 in init_params
    assert C_pad == LANE and num_classes <= LANE

    TB = _pick_batch_tile(B)
    n_tiles = pl.cdiv(B, TB)     # ragged last tile handled by Pallas edge masking

    # Full-array blocks with a constant index map: fetched once, VMEM-resident
    # across all batch tiles.
    resident = lambda arr: pl.BlockSpec(arr.shape, lambda i: (0,) * arr.ndim)

    flops = 2 * B * (D_in * H1 + H1 * H2 + H2 * C_pad)
    bytes_accessed = (x.size * 4                              # f32 activation read
                      + (w1.size + w2.size + w3.size) * 2     # bf16 weights, once
                      + (b1.size + b2.size + b3.size) * 4     # f32 biases, once
                      + B * C_pad * 2)                        # bf16 logits write

    out_padded = pl.pallas_call(
        _mlp_kernel,
        out_shape=jax.ShapeDtypeStruct((B, C_pad), jnp.bfloat16),
        grid=(n_tiles,),
        in_specs=[
            pl.BlockSpec((TB, D_in), lambda i: (i, 0)),   # x streamed per batch tile
            resident(w1), resident(b1),
            resident(w2), resident(b2),
            resident(w3), resident(b3),
        ],
        out_specs=pl.BlockSpec((TB, C_pad), lambda i: (i, 0)),
        compiler_params=pltpu.CompilerParams(
            # TODO(synk): on v7x with B >= ~512, switch to pltpu.CORE_PARALLEL so the
            # two TensorCores genuinely split the batch axis (duplicated weight fetch
            # only amortizes above that batch); likewise pl.Buffered(1) on the
            # resident weight specs / Buffered(3) on x are profile-gated tweaks.
            dimension_semantics=(pltpu.PARALLEL,),
            vmem_limit_bytes=32 << 20,
        ),
        cost_estimate=pl.CostEstimate(
            flops=flops, transcendentals=0, bytes_accessed=bytes_accessed),
    )(x, w1, b1, w2, b2, w3, b3)

    # Strip the lane padding of the logits and return f32 like the PyTorch model.
    return out_padded[:, :num_classes].astype(jnp.float32)


def init_params(key, input_size=2304, num_classes=4):
    """Deterministic synthetic parameters (shapes match the PyTorch module).

    Weights are stored in bf16 (DMA-light, MXU-native); biases stay f32.
    fc3 weight/bias are zero-padded to 128 output columns for lane-dense stores.
    """
    ks = jax.random.split(key, 6)

    def lin(kw, kb, fan_in, fan_out, pad_out=None):
        # Uniform(-1/sqrt(fan_in), 1/sqrt(fan_in)) like torch's default init.
        bound = 1.0 / jnp.sqrt(float(fan_in))
        w = jax.random.uniform(kw, (fan_in, fan_out), jnp.float32, -bound, bound)
        b = jax.random.uniform(kb, (1, fan_out), jnp.float32, -bound, bound)
        if pad_out is not None and pad_out > fan_out:
            w = jnp.pad(w, ((0, 0), (0, pad_out - fan_out)))
            b = jnp.pad(b, ((0, 0), (0, pad_out - fan_out)))
        return w.astype(jnp.bfloat16), b  # bf16 weights, f32 bias

    w1, b1 = lin(ks[0], ks[1], input_size, 512)
    w2, b2 = lin(ks[2], ks[3], 512, 256)
    w3, b3 = lin(ks[4], ks[5], 256, num_classes, pad_out=LANE)
    return {"w1": w1, "b1": b1, "w2": w2, "b2": b2, "w3": w3, "b3": b3}


def _reference_forward(x, p, num_classes=4):
    """Pure-JAX reference mirroring the kernel's bf16-weight / f32-accumulate numerics."""
    f32 = lambda a: a.astype(jnp.float32)
    xb = f32(x.astype(jnp.bfloat16))
    h1 = jnp.maximum(xb @ f32(p["w1"]) + p["b1"], 0.0)
    h2 = jnp.maximum(f32(h1.astype(jnp.bfloat16)) @ f32(p["w2"]) + p["b2"], 0.0)
    out = f32(h2.astype(jnp.bfloat16)) @ f32(p["w3"]) + p["b3"]
    out = f32(out.astype(jnp.bfloat16))     # kernel stores bf16 logits
    return out[:, :num_classes]


if __name__ == "__main__":
    key = jax.random.PRNGKey(0)
    k_x, k_p = jax.random.split(key)

    input_size, num_classes, batch = 2304, 4, 8
    params = init_params(k_p, input_size=input_size, num_classes=num_classes)
    x = jax.random.normal(k_x, (batch, input_size), jnp.float32)

    out = emotion_model_forward(x, params, num_classes=num_classes)
    out = jax.block_until_ready(out)

    ref = _reference_forward(x, params, num_classes=num_classes)
    assert out.shape == (batch, num_classes)
    assert jnp.allclose(out, ref, atol=1e-2, rtol=1e-2), "mismatch vs reference"

    # Equivalent of EmotionModel.predict's argmax over logits (host-side glue).
    emotions = ["happy", "sad", "angry", "neutral"]
    _ = [emotions[int(i)] for i in jnp.argmax(out, axis=-1)]

    print("KERNEL_OK")
</pallas_src>

<mosaic_0001>
module attributes {stable_mosaic.version = 11 : i64} {
  func.func @_mlp_kernel(%arg0: i32, %arg1: memref<16x2304xf32, #tpu.memory_space<vmem>>, %arg2: memref<2304x512xbf16, #tpu.memory_space<vmem>>, %arg3: memref<1x512xf32, #tpu.memory_space<vmem>>, %arg4: memref<512x256xbf16, #tpu.memory_space<vmem>>, %arg5: memref<1x256xf32, #tpu.memory_space<vmem>>, %arg6: memref<256x128xbf16, #tpu.memory_space<vmem>>, %arg7: memref<1x128xf32, #tpu.memory_space<vmem>>, %arg8: memref<16x128xbf16, #tpu.memory_space<vmem>>) attributes {dimension_semantics = [#tpu.dimension_semantics<parallel>], iteration_bounds = array<i64: 1>, scalar_prefetch = 0 : i64, scratch_operands = 0 : i64, tpu.core_type = #tpu.core_type<tc>, window_params = [{transform_indices = @transform_0, window_bounds = array<i64: 16, 2304>}, {pipeline_mode = #tpu.pipeline_mode<synchronous>, transform_indices = @transform_1, window_bounds = array<i64: 2304, 512>}, {pipeline_mode = #tpu.pipeline_mode<synchronous>, transform_indices = @transform_2, window_bounds = array<i64: 1, 512>}, {pipeline_mode = #tpu.pipeline_mode<synchronous>, transform_indices = @transform_3, window_bounds = array<i64: 512, 256>}, {pipeline_mode = #tpu.pipeline_mode<synchronous>, transform_indices = @transform_4, window_bounds = array<i64: 1, 256>}, {pipeline_mode = #tpu.pipeline_mode<synchronous>, transform_indices = @transform_5, window_bounds = array<i64: 256, 128>}, {pipeline_mode = #tpu.pipeline_mode<synchronous>, transform_indices = @transform_6, window_bounds = array<i64: 1, 128>}, {transform_indices = @transform_7, window_bounds = array<i64: 16, 128>}]} {
    %c0 = arith.constant 0 : index
    %c0_0 = arith.constant 0 : index
    %0 = vector.load %arg1[%c0, %c0_0] : memref<16x2304xf32, #tpu.memory_space<vmem>>, vector<16x2304xf32>
    %1 = arith.truncf %0 : vector<16x2304xf32> to vector<16x2304xbf16>
    %c0_1 = arith.constant 0 : index
    %c0_2 = arith.constant 0 : index
    %2 = vector.load %arg2[%c0_1, %c0_2] : memref<2304x512xbf16, #tpu.memory_space<vmem>>, vector<2304x512xbf16>
    %cst = arith.constant dense<0.000000e+00> : vector<16x512xf32>
    %3 = tpu.matmul %1, %2, %cst {dimension_numbers = #tpu.dot_dimension_numbers<[1], [0], [0], [1], [0, 0, 1, 1], [], []>} : vector<16x2304xbf16>, vector<2304x512xbf16>, vector<16x512xf32> -> vector<16x512xf32>
    %c0_3 = arith.constant 0 : index
    %c0_4 = arith.constant 0 : index
    %4 = vector.load %arg3[%c0_3, %c0_4] : memref<1x512xf32, #tpu.memory_space<vmem>>, vector<1x512xf32>
    %5 = vector.broadcast %4 : vector<1x512xf32> to vector<16x512xf32>
    %6 = arith.addf %3, %5 : vector<16x512xf32>
    %cst_5 = arith.constant 0.000000e+00 : f32
    %7 = vector.broadcast %cst_5 : f32 to vector<16x512xf32>
    %8 = arith.maximumf %6, %7 : vector<16x512xf32>
    %9 = arith.truncf %8 : vector<16x512xf32> to vector<16x512xbf16>
    %c0_6 = arith.constant 0 : index
    %c0_7 = arith.constant 0 : index
    %10 = vector.load %arg4[%c0_6, %c0_7] : memref<512x256xbf16, #tpu.memory_space<vmem>>, vector<512x256xbf16>
    %cst_8 = arith.constant dense<0.000000e+00> : vector<16x256xf32>
    %11 = tpu.matmul %9, %10, %cst_8 {dimension_numbers = #tpu.dot_dimension_numbers<[1], [0], [0], [1], [0, 0, 1, 1], [], []>} : vector<16x512xbf16>, vector<512x256xbf16>, vector<16x256xf32> -> vector<16x256xf32>
    %c0_9 = arith.constant 0 : index
    %c0_10 = arith.constant 0 : index
    %12 = vector.load %arg5[%c0_9, %c0_10] : memref<1x256xf32, #tpu.memory_space<vmem>>, vector<1x256xf32>
    %13 = vector.broadcast %12 : vector<1x256xf32> to vector<16x256xf32>
    %14 = arith.addf %11, %13 : vector<16x256xf32>
    %cst_11 = arith.constant 0.000000e+00 : f32
    %15 = vector.broadcast %cst_11 : f32 to vector<16x256xf32>
    %16 = arith.maximumf %14, %15 : vector<16x256xf32>
    %17 = arith.truncf %16 : vector<16x256xf32> to vector<16x256xbf16>
    %c0_12 = arith.constant 0 : index
    %c0_13 = arith.constant 0 : index
    %18 = vector.load %arg6[%c0_12, %c0_13] : memref<256x128xbf16, #tpu.memory_space<vmem>>, vector<256x128xbf16>
    %cst_14 = arith.constant dense<0.000000e+00> : vector<16x128xf32>
    %19 = tpu.matmul %17, %18, %cst_14 {dimension_numbers = #tpu.dot_dimension_numbers<[1], [0], [0], [1], [0, 0, 1, 1], [], []>} : vector<16x256xbf16>, vector<256x128xbf16>, vector<16x128xf32> -> vector<16x128xf32>
    %c0_15 = arith.constant 0 : index
    %c0_16 = arith.constant 0 : index
    %20 = vector.load %arg7[%c0_15, %c0_16] : memref<1x128xf32, #tpu.memory_space<vmem>>, vector<1x128xf32>
    %21 = vector.broadcast %20 : vector<1x128xf32> to vector<16x128xf32>
    %22 = arith.addf %19, %21 : vector<16x128xf32>
    %23 = arith.truncf %22 : vector<16x128xf32> to vector<16x128xbf16>
    %c0_17 = arith.constant 0 : index
    %c0_18 = arith.constant 0 : index
    %24 = vector.load %arg8[%c0_17, %c0_18] : memref<16x128xbf16, #tpu.memory_space<vmem>>, vector<16x128xbf16>
    tpu.vector_store %arg8[%c0_17, %c0_18], %23 {strides = array<i32>} : memref<16x128xbf16, #tpu.memory_space<vmem>>, vector<16x128xbf16>,
    return
  }
  func.func @transform_0(%arg0: i32) -> (i32, i32) {
    %c0_i32 = arith.constant 0 : i32
    %c0_i32_0 = arith.constant 0 : i32
    return %arg0, %c0_i32 : i32, i32
  }
  func.func @transform_1(%arg0: i32) -> (i32, i32) {
    %c0_i32 = arith.constant 0 : i32
    %c0_i32_0 = arith.constant 0 : i32
    %c0_i32_1 = arith.constant 0 : i32
    return %c0_i32, %c0_i32_0 : i32, i32
  }
  func.func @transform_2(%arg0: i32) -> (i32, i32) {
    %c0_i32 = arith.constant 0 : i32
    %c0_i32_0 = arith.constant 0 : i32
    %c0_i32_1 = arith.constant 0 : i32
    return %c0_i32, %c0_i32_0 : i32, i32
  }
  func.func @transform_3(%arg0: i32) -> (i32, i32) {
    %c0_i32 = arith.constant 0 : i32
    %c0_i32_0 = arith.constant 0 : i32
    %c0_i32_1 = arith.constant 0 : i32
    return %c0_i32, %c0_i32_0 : i32, i32
  }
  func.func @transform_4(%arg0: i32) -> (i32, i32) {
    %c0_i32 = arith.constant 0 : i32
    %c0_i32_0 = arith.constant 0 : i32
    %c0_i32_1 = arith.constant 0 : i32
    return %c0_i32, %c0_i32_0 : i32, i32
  }
  func.func @transform_5(%arg0: i32) -> (i32, i32) {
    %c0_i32 = arith.constant 0 : i32
    %c0_i32_0 = arith.constant 0 : i32
    %c0_i32_1 = arith.constant 0 : i32
    return %c0_i32, %c0_i32_0 : i32, i32
  }
  func.func @transform_6(%arg0: i32) -> (i32, i32) {
    %c0_i32 = arith.constant 0 : i32
    %c0_i32_0 = arith.constant 0 : i32
    %c0_i32_1 = arith.constant 0 : i32
    return %c0_i32, %c0_i32_0 : i32, i32
  }
  func.func @transform_7(%arg0: i32) -> (i32, i32) {
    %c0_i32 = arith.constant 0 : i32
    %c0_i32_0 = arith.constant 0 : i32
    return %arg0, %c0_i32 : i32, i32
  }
}

</mosaic_0001>

<llo_original>
// kernel: emotion_model_forward.1
$region0: #{emotion_model_forward.1}
  #allocation0 [shape = 'u32[]', space=smem, size = 0x4, offset = 0x4, fixed_abs, tag = 'smem constant byte address 0x4 - core index']
  #allocation1 [shape = 'u32[144,128]{1,0:T(1,128)}', space=vmem, size = 0x12000, scoped, tag = 'internal scratch']
  %s0 = inlined_call_operand.hbm [shape: f32[8,2304], index: 0, kind: input, shape index: {}]
  %s1 = inlined_call_operand.hbm [shape: bf16[2304,512], index: 1, kind: input, shape index: {}]
  %s2 = inlined_call_operand.hbm [shape: f32[1,512], index: 2, kind: input, shape index: {}]
  %s3 = inlined_call_operand.hbm [shape: bf16[512,256], index: 3, kind: input, shape index: {}]
  %s4 = inlined_call_operand.hbm [shape: f32[1,256], index: 4, kind: input, shape index: {}]
  %s5 = inlined_call_operand.hbm [shape: bf16[256,128], index: 5, kind: input, shape index: {}]
  %s6 = inlined_call_operand.hbm [shape: f32[1,128], index: 6, kind: input, shape index: {}]
  %s7 = inlined_call_operand.vmem [shape: bf16[8,128], index: 7, kind: output, shape index: {}]
  %s8 = sld [smem:[#allocation0]]
  $region96: #{emotion_model_forward.1} parent=0
    _
  %s10 = ssub.s32 1, %s8
  %s11 = scalar_select 0, %s10, %s8
  $region1: #{emotion_model_forward.1} parent=0
    #allocation2 [shape = 'u8[147456]{0}', space=vmem, size = 0x24000, scoped, tag = 'input window, operand 0, single buffered']
    #allocation3 [shape = 's32[1]{0}', space=sflag, size = 0x4, scoped, tag = 'scoped memory for emotion_model_forward.1']
    #allocation4 [shape = 'u8[2359296]{0}', space=vmem, size = 0x240000, scoped, tag = 'input window, operand 1, single buffered']
    #allocation5 [shape = 's32[1]{0}', space=sflag, size = 0x4, scoped, tag = 'scoped memory for emotion_model_forward.1']
    #allocation6 [shape = 'u8[2048]{0}', space=vmem, size = 0x800, scoped, tag = 'input window, operand 2, single buffered']
    #allocation7 [shape = 'u8[262144]{0}', space=vmem, size = 0x40000, scoped, tag = 'input window, operand 3, single buffered']
    #allocation8 [shape = 's32[1]{0}', space=sflag, size = 0x4, scoped, tag = 'scoped memory for emotion_model_forward.1']
    #allocation9 [shape = 'u8[1024]{0}', space=vmem, size = 0x400, scoped, tag = 'input window, operand 4, single buffered']
    #allocation10 [shape = 'u8[65536]{0}', space=vmem, size = 0x10000, scoped, tag = 'input window, operand 5, single buffered']
    #allocation11 [shape = 's32[1]{0}', space=sflag, size = 0x4, scoped, tag = 'scoped memory for emotion_model_forward.1']
    #allocation12 [shape = 'u8[512]{0}', space=vmem, size = 0x400, scoped, tag = 'input window, operand 6, single buffered']
    #allocation13 [shape = 'u8[4096]{0}', space=vmem, size = 0x1000, scoped, tag = 'output window, operand 0, single buffered']
    %12 = vsyncpa [#allocation3], 0
    %13 = vsyncpa [#allocation5], 0
    %14 = vsyncpa [#allocation8], 0
    %15 = vsyncpa [#allocation11], 0
    // Predicated region
    $region2: #{emotion_model_forward.1} parent=1 // pred_check
      _
    $region3: #{emotion_model_forward.1} parent=1 // pred_check_branch
      %17 = sbr.rel (0) target = $region5
    $region4: #{emotion_model_forward.1} parent=1 // pred_region
      %s19 = ssub.s32 4608, 2304
      %20 = vsyncadd [#allocation3], %s19
      %s21 = sshll.u32 [#allocation2], 4
      %s22 = int_to_ptr.vmem [resolvable:$true] %s21
      %27 = dma.hbm_to_vmem [thread:$0]  %s0, 2304, %s22, [#allocation3], 2304, 2304, 144
    $region5: #{emotion_model_forward.1} parent=1 // pred_fallthru
      _
    // Predicated region
    $region6: #{emotion_model_forward.1} parent=1 // pred_check
      _
    $region7: #{emotion_model_forward.1} parent=1 // pred_check_branch
      %29 = sbr.rel (0) target = $region9
    $region8: #{emotion_model_forward.1} parent=1 // pred_region
      %s31 = ssub.s32 73728, 73728
      %32 = vsyncadd [#allocation5], %s31
      %s33 = sshll.u32 [#allocation4], 4
      %s34 = int_to_ptr.vmem [resolvable:$true] %s33
      %39 = dma.hbm_to_vmem [thread:$0]  %s1, 73728, %s34, [#allocation5], 256, 256, 16
    $region9: #{emotion_model_forward.1} parent=1 // pred_fallthru
      _
    // Predicated region
    $region10: #{emotion_model_forward.1} parent=1 // pred_check
      _
    $region11: #{emotion_model_forward.1} parent=1 // pred_check_branch
      %41 = sbr.rel (0) target = $region13
    $region12: #{emotion_model_forward.1} parent=1 // pred_region
      %s43 = ssub.s32 64, 64
      %44 = vsyncadd [#allocation5], %s43
      %s46 = sshll.u32 [#allocation6], 4
      %s47 = int_to_ptr.vmem [resolvable:$true] %s46
      %49 = dma.hbm_to_vmem [thread:$0]  %s2, 64, %s47, [#allocation5]
    $region13: #{emotion_model_forward.1} parent=1 // pred_fallthru
      _
    // Predicated region
    $region14: #{emotion_model_forward.1} parent=1 // pred_check
      _
    $region15: #{emotion_model_forward.1} parent=1 // pred_check_branch
      %51 = sbr.rel (0) target = $region17
    $region16: #{emotion_model_forward.1} parent=1 // pred_region
      %s53 = ssub.s32 8192, 8192
      %54 = vsyncadd [#allocation8], %s53
      %s55 = sshll.u32 [#allocation7], 4
      %s56 = int_to_ptr.vmem [resolvable:$true] %s55
      %61 = dma.hbm_to_vmem [thread:$0]  %s3, 8192, %s56, [#allocation8], 128, 128, 8
    $region17: #{emotion_model_forward.1} parent=1 // pred_fallthru
      _
    // Predicated region
    $region18: #{emotion_model_forward.1} parent=1 // pred_check
      _
    $region19: #{emotion_model_forward.1} parent=1 // pred_check_branch
      %63 = sbr.rel (0) target = $region21
    $region20: #{emotion_model_forward.1} parent=1 // pred_region
      %s65 = ssub.s32 32, 32
      %66 = vsyncadd [#allocation8], %s65
      %s68 = sshll.u32 [#allocation9], 4
      %s69 = int_to_ptr.vmem [resolvable:$true] %s68
      %71 = dma.hbm_to_vmem [thread:$0]  %s4, 32, %s69, [#allocation8]
    $region21: #{emotion_model_forward.1} parent=1 // pred_fallthru
      _
    // Predicated region
    $region22: #{emotion_model_forward.1} parent=1 // pred_check
      _
    $region23: #{emotion_model_forward.1} parent=1 // pred_check_branch
      %73 = sbr.rel (0) target = $region25
    $region24: #{emotion_model_forward.1} parent=1 // pred_region
      %s75 = ssub.s32 2048, 2048
      %76 = vsyncadd [#allocation11], %s75
      %s77 = sshll.u32 [#allocation10], 4
      %s78 = int_to_ptr.vmem [resolvable:$true] %s77
      %83 = dma.hbm_to_vmem [thread:$0]  %s5, 2048, %s78, [#allocation11], 64, 64, 4
    $region25: #{emotion_model_forward.1} parent=1 // pred_fallthru
      _
    // Predicated region
    $region26: #{emotion_model_forward.1} parent=1 // pred_check
      _
    $region27: #{emotion_model_forward.1} parent=1 // pred_check_branch
      %85 = sbr.rel (0) target = $region29
    $region28: #{emotion_model_forward.1} parent=1 // pred_region
      %s87 = ssub.s32 16, 16
      %88 = vsyncadd [#allocation11], %s87
      %s90 = sshll.u32 [#allocation12], 4
      %s91 = int_to_ptr.vmem [resolvable:$true] %s90
      %93 = dma.hbm_to_vmem [thread:$0]  %s6, 16, %s91, [#allocation11]
    $region29: #{emotion_model_forward.1} parent=1 // pred_fallthru
      _
    // Predicated region
    $region30: #{emotion_model_forward.1} parent=1 // pred_check
      _
    $region31: #{emotion_model_forward.1} parent=1 // pred_check_branch
      %95 = sbr.rel (0) target = $region33
    $region32: #{emotion_model_forward.1} parent=1 // pred_region
      %96 = dma.done [#allocation3], 4608
    $region33: #{emotion_model_forward.1} parent=1 // pred_fallthru
      _
    // Predicated region
    $region34: #{emotion_model_forward.1} parent=1 // pred_check
      _
    $region35: #{emotion_model_forward.1} parent=1 // pred_check_branch
      %98 = sbr.rel (0) target = $region37
    $region36: #{emotion_model_forward.1} parent=1 // pred_region
      %99 = dma.done [#allocation5], 73728
    $region37: #{emotion_model_forward.1} parent=1 // pred_fallthru
      _
    // Predicated region
    $region38: #{emotion_model_forward.1} parent=1 // pred_check
      _
    $region39: #{emotion_model_forward.1} parent=1 // pred_check_branch
      %101 = sbr.rel (0) target = $region41
    $region40: #{emotion_model_forward.1} parent=1 // pred_region
      %102 = dma.done [#allocation5], 64
    $region41: #{emotion_model_forward.1} parent=1 // pred_fallthru
      _
    // Predicated region
    $region42: #{emotion_model_forward.1} parent=1 // pred_check
      _
    $region43: #{emotion_model_forward.1} parent=1 // pred_check_branch
      %104 = sbr.rel (0) target = $region45
    $region44: #{emotion_model_forward.1} parent=1 // pred_region
      %105 = dma.done [#allocation8], 8192
    $region45: #{emotion_model_forward.1} parent=1 // pred_fallthru
      _
    // Predicated region
    $region46: #{emotion_model_forward.1} parent=1 // pred_check
      _
    $region47: #{emotion_model_forward.1} parent=1 // pred_check_branch
      %107 = sbr.rel (0) target = $region49
    $region48: #{emotion_model_forward.1} parent=1 // pred_region
      %108 = dma.done [#allocation8], 32
    $region49: #{emotion_model_forward.1} parent=1 // pred_fallthru
      _
    // Predicated region
    $region50: #{emotion_model_forward.1} parent=1 // pred_check
      _
    $region51: #{emotion_model_forward.1} parent=1 // pred_check_branch
      %110 = sbr.rel (0) target = $region53
    $region52: #{emotion_model_forward.1} parent=1 // pred_region
      %111 = dma.done [#allocation11], 2048
    $region53: #{emotion_model_forward.1} parent=1 // pred_fallthru
      _
    // Predicated region
    $region54: #{emotion_model_forward.1} parent=1 // pred_check
      _
    $region55: #{emotion_model_forward.1} parent=1 // pred_check_branch
      %113 = sbr.rel (0) target = $region57
    $region56: #{emotion_model_forward.1} parent=1 // pred_region
      %114 = dma.done [#allocation11], 16
    $region57: #{emotion_model_forward.1} parent=1 // pred_fallthru
      _
    %v116 = vld [vmem:[#allocation2] sm:$0xff]
    %v117 = vld [vmem:[#allocation2 + $0x8] sm:$0xff]
    %v118 = vld [vmem:[#allocation2 + $0x10] sm:$0xff]
    %v119 = vld [vmem:[#allocation2 + $0x18] sm:$0xff]
    %v120 = vld [vmem:[#allocation2 + $0x20] sm:$0xff]
    %v121 = vld [vmem:[#allocation2 + $0x28] sm:$0xff]
    %v122 = vld [vmem:[#allocation2 + $0x30] sm:$0xff]
    %v123 = vld [vmem:[#allocation2 + $0x38] sm:$0xff]
    %v124 = vld [vmem:[#allocation2 + $0x40] sm:$0xff]
    %v125 = vld [vmem:[#allocation2 + $0x48] sm:$0xff]
    %v126 = vld [vmem:[#allocation2 + $0x50] sm:$0xff]
    %v127 = vld [vmem:[#allocation2 + $0x58] sm:$0xff]
    %v128 = vld [vmem:[#allocation2 + $0x60] sm:$0xff]
    %v129 = vld [vmem:[#allocation2 + $0x68] sm:$0xff]
    %v130 = vld [vmem:[#allocation2 + $0x70] sm:$0xff]
    %v131 = vld [vmem:[#allocation2 + $0x78] sm:$0xff]
    %v132 = vld [vmem:[#allocation2 + $0x80] sm:$0xff]
    %v133 = vld [vmem:[#allocation2 + $0x88] sm:$0xff]
    %v134 = vld [vmem:[#allocation2 + $0x90] sm:$0xff]
    %v135 = vld [vmem:[#allocation2 + $0x98] sm:$0xff]
    %v136 = vld [vmem:[#allocation2 + $0xa0] sm:$0xff]
    %v137 = vld [vmem:[#allocation2 + $0xa8] sm:$0xff]
    %v138 = vld [vmem:[#allocation2 + $0xb0] sm:$0xff]
    %v139 = vld [vmem:[#allocation2 + $0xb8] sm:$0xff]
    %v140 = vld [vmem:[#allocation2 + $0xc0] sm:$0xff]
    %v141 = vld [vmem:[#allocation2 + $0xc8] sm:$0xff]
    %v142 = vld [vmem:[#allocation2 + $0xd0] sm:$0xff]
    %v143 = vld [vmem:[#allocation2 + $0xd8] sm:$0xff]
    %v144 = vld [vmem:[#allocation2 + $0xe0] sm:$0xff]
    %v145 = vld [vmem:[#allocation2 + $0xe8] sm:$0xff]
    %v146 = vld [vmem:[#allocation2 + $0xf0] sm:$0xff]
    %v147 = vld [vmem:[#allocation2 + $0xf8] sm:$0xff]
    %v148 = vld [vmem:[#allocation2 + $0x100] sm:$0xff]
    %v149 = vld [vmem:[#allocation2 + $0x108] sm:$0xff]
    %v150 = vld [vmem:[#allocation2 + $0x110] sm:$0xff]
    %v151 = vld [vmem:[#allocation2 + $0x118] sm:$0xff]
    %v152 = vpack.c.bf16 %v134, %v116
    %v153 = vpack.c.bf16 %v135, %v117
    %v154 = vpack.c.bf16 %v136, %v118
    %v155 = vpack.c.bf16 %v137, %v119
    %v156 = vpack.c.bf16 %v138, %v120
    %v157 = vpack.c.bf16 %v139, %v121
    %v158 = vpack.c.bf16 %v140, %v122
    %v159 = vpack.c.bf16 %v141, %v123
    %v160 = vpack.c.bf16 %v142, %v124
    %v161 = vpack.c.bf16 %v143, %v125
    %v162 = vpack.c.bf16 %v144, %v126
    %v163 = vpack.c.bf16 %v145, %v127
    %v164 = vpack.c.bf16 %v146, %v128
    %v165 = vpack.c.bf16 %v147, %v129
    %v166 = vpack.c.bf16 %v148, %v130
    %v167 = vpack.c.bf16 %v149, %v131
    %v168 = vpack.c.bf16 %v150, %v132
    %v169 = vpack.c.bf16 %v151, %v133
    %v170 = vld [vmem:[#allocation4] sm:$0xff]
    %v171 = vld [vmem:[#allocation4 + $0x8] sm:$0xff]
    %v172 = vld [vmem:[#allocation4 + $0x10] sm:$0xff]
    %v173 = vld [vmem:[#allocation4 + $0x18] sm:$0xff]
    %v174 = vld [vmem:[#allocation4 + $0x20] sm:$0xff]
    %v175 = vld [vmem:[#allocation4 + $0x28] sm:$0xff]
    %v176 = vld [vmem:[#allocation4 + $0x30] sm:$0xff]
    %v177 = vld [vmem:[#allocation4 + $0x38] sm:$0xff]
    %v178 = vld [vmem:[#allocation4 + $0x40] sm:$0xff]
    %v179 = vld [vmem:[#allocation4 + $0x48] sm:$0xff]
    %v180 = vld [vmem:[#allocation4 + $0x50] sm:$0xff]
    %v181 = vld [vmem:[#allocation4 + $0x58] sm:$0xff]
    %v182 = vld [vmem:[#allocation4 + $0x60] sm:$0xff]
    %v183 = vld [vmem:[#allocation4 + $0x68] sm:$0xff]
    %v184 = vld [vmem:[#allocation4 + $0x70] sm:$0xff]
    %v185 = vld [vmem:[#allocation4 + $0x78] sm:$0xff]
    %v186 = vld [vmem:[#allocation4 + $0x80] sm:$0xff]
    %v187 = vld [vmem:[#allocation4 + $0x88] sm:$0xff]
    %v188 = vld [vmem:[#allocation4 + $0x90] sm:$0xff]
    %v189 = vld [vmem:[#allocation4 + $0x98] sm:$0xff]
    %v190 = vld [vmem:[#allocation4 + $0xa0] sm:$0xff]
    %v191 = vld [vmem:[#allocation4 + $0xa8] sm:$0xff]
    %v192 = vld [vmem:[#allocation4 + $0xb0] sm:$0xff]
    %v193 = vld [vmem:[#allocation4 + $0xb8] sm:$0xff]
    %v194 = vld [vmem:[#allocation4 + $0xc0] sm:$0xff]
    %v195 = vld [vmem:[#allocation4 + $0xc8] sm:$0xff]
    %v196 = vld [vmem:[#allocation4 + $0xd0] sm:$0xff]
    %v197 = vld [vmem:[#allocation4 + $0xd8] sm:$0xff]
    %v198 = vld [vmem:[#allocation4 + $0xe0] sm:$0xff]
    %v199 = vld [vmem:[#allocation4 + $0xe8] sm:$0xff]
    %v200 = vld [vmem:[#allocation4 + $0xf0] sm:$0xff]
    %v201 = vld [vmem:[#allocation4 + $0xf8] sm:$0xff]
    %v202 = vld [vmem:[#allocation4 + $0x100] sm:$0xff]
    %v203 = vld [vmem:[#allocation4 + $0x108] sm:$0xff]
    %v204 = vld [vmem:[#allocation4 + $0x110] sm:$0xff]
    %v205 = vld [vmem:[#allocation4 + $0x118] sm:$0xff]
    %v206 = vld [vmem:[#allocation4 + $0x120] sm:$0xff]
    %v207 = vld [vmem:[#allocation4 + $0x128] sm:$0xff]
    %v208 = vld [vmem:[#allocation4 + $0x130] sm:$0xff]
    %v209 = vld [vmem:[#allocation4 + $0x138] sm:$0xff]
    %v210 = vld [vmem:[#allocation4 + $0x140] sm:$0xff]
    %v211 = vld [vmem:[#allocation4 + $0x148] sm:$0xff]
    %v212 = vld [vmem:[#allocation4 + $0x150] sm:$0xff]
    %v213 = vld [vmem:[#allocation4 + $0x158] sm:$0xff]
    %v214 = vld [vmem:[#allocation4 + $0x160] sm:$0xff]
    %v215 = vld [vmem:[#allocation4 + $0x168] sm:$0xff]
    %v216 = vld [vmem:[#allocation4 + $0x170] sm:$0xff]
    %v217 = vld [vmem:[#allocation4 + $0x178] sm:$0xff]
    %v218 = vld [vmem:[#allocation4 + $0x180] sm:$0xff]
    %v219 = vld [vmem:[#allocation4 + $0x188] sm:$0xff]
    %v220 = vld [vmem:[#allocation4 + $0x190] sm:$0xff]
    %v221 = vld [vmem:[#allocation4 + $0x198] sm:$0xff]
    %v222 = vld [vmem:[#allocation4 + $0x1a0] sm:$0xff]
    %v223 = vld [vmem:[#allocation4 + $0x1a8] sm:$0xff]
    %v224 = vld [vmem:[#allocation4 + $0x1b0] sm:$0xff]
    %v225 = vld [vmem:[#allocation4 + $0x1b8] sm:$0xff]
    %v226 = vld [vmem:[#allocation4 + $0x1c0] sm:$0xff]
    %v227 = vld [vmem:[#allocation4 + $0x1c8] sm:$0xff]
    %v228 = vld [vmem:[#allocation4 + $0x1d0] sm:$0xff]
    %v229 = vld [vmem:[#allocation4 + $0x1d8] sm:$0xff]
    %v230 = vld [vmem:[#allocation4 + $0x1e0] sm:$0xff]
    %v231 = vld [vmem:[#allocation4 + $0x1e8] sm:$0xff]
    %v232 = vld [vmem:[#allocation4 + $0x1f0] sm:$0xff]
    %v233 = vld [vmem:[#allocation4 + $0x1f8] sm:$0xff]
    %v234 = vld [vmem:[#allocation4 + $0x200] sm:$0xff]
    %v235 = vld [vmem:[#allocation4 + $0x208] sm:$0xff]
    %v236 = vld [vmem:[#allocation4 + $0x210] sm:$0xff]
    %v237 = vld [vmem:[#allocation4 + $0x218] sm:$0xff]
    %v238 = vld [vmem:[#allocation4 + $0x220] sm:$0xff]
    %v239 = vld [vmem:[#allocation4 + $0x228] sm:$0xff]
    %v240 = vld [vmem:[#allocation4 + $0x230] sm:$0xff]
    %v241 = vld [vmem:[#allocation4 + $0x238] sm:$0xff]
    %v242 = vld [vmem:[#allocation4 + $0x240] sm:$0xff]
    %v243 = vld [vmem:[#allocation4 + $0x248] sm:$0xff]
    %v244 = vld [vmem:[#allocation4 + $0x250] sm:$0xff]
    %v245 = vld [vmem:[#allocation4 + $0x258] sm:$0xff]
    %v246 = vld [vmem:[#allocation4 + $0x260] sm:$0xff]
    %v247 = vld [vmem:[#allocation4 + $0x268] sm:$0xff]
    %v248 = vld [vmem:[#allocation4 + $0x270] sm:$0xff]
    %v249 = vld [vmem:[#allocation4 + $0x278] sm:$0xff]
    %v250 = vld [vmem:[#allocation4 + $0x280] sm:$0xff]
    %v251 = vld [vmem:[#allocation4 + $0x288] sm:$0xff]
    %v252 = vld [vmem:[#allocation4 + $0x290] sm:$0xff]
    %v253 = vld [vmem:[#allocation4 + $0x298] sm:$0xff]
    %v254 = vld [vmem:[#allocation4 + $0x2a0] sm:$0xff]
    %v255 = vld [vmem:[#allocation4 + $0x2a8] sm:$0xff]
    %v256 = vld [vmem:[#allocation4 + $0x2b0] sm:$0xff]
    %v257 = vld [vmem:[#allocation4 + $0x2b8] sm:$0xff]
    %v258 = vld [vmem:[#allocation4 + $0x2c0] sm:$0xff]
    %v259 = vld [vmem:[#allocation4 + $0x2c8] sm:$0xff]
    %v260 = vld [vmem:[#allocation4 + $0x2d0] sm:$0xff]
    %v261 = vld [vmem:[#allocation4 + $0x2d8] sm:$0xff]
    %v262 = vld [vmem:[#allocation4 + $0x2e0] sm:$0xff]
    %v263 = vld [vmem:[#allocation4 + $0x2e8] sm:$0xff]
    %v264 = vld [vmem:[#allocation4 + $0x2f0] sm:$0xff]
    %v265 = vld [vmem:[#allocation4 + $0x2f8] sm:$0xff]
    %v266 = vld [vmem:[#allocation4 + $0x300] sm:$0xff]
    %v267 = vld [vmem:[#allocation4 + $0x308] sm:$0xff]
    %v268 = vld [vmem:[#allocation4 + $0x310] sm:$0xff]
    %v269 = vld [vmem:[#allocation4 + $0x318] sm:$0xff]
    %v270 = vld [vmem:[#allocation4 + $0x320] sm:$0xff]
    %v271 = vld [vmem:[#allocation4 + $0x328] sm:$0xff]
    %v272 = vld [vmem:[#allocation4 + $0x330] sm:$0xff]
    %v273 = vld [vmem:[#allocation4 + $0x338] sm:$0xff]
    %v274 = vld [vmem:[#allocation4 + $0x340] sm:$0xff]
    %v275 = vld [vmem:[#allocation4 + $0x348] sm:$0xff]
    %v276 = vld [vmem:[#allocation4 + $0x350] sm:$0xff]
    %v277 = vld [vmem:[#allocation4 + $0x358] sm:$0xff]
    %v278 = vld [vmem:[#allocation4 + $0x360] sm:$0xff]
    %v279 = vld [vmem:[#allocation4 + $0x368] sm:$0xff]
    %v280 = vld [vmem:[#allocation4 + $0x370] sm:$0xff]
    %v281 = vld [vmem:[#allocation4 + $0x378] sm:$0xff]
    %v282 = vld [vmem:[#allocation4 + $0x380] sm:$0xff]
    %v283 = vld [vmem:[#allocation4 + $0x388] sm:$0xff]
    %v284 = vld [vmem:[#allocation4 + $0x390] sm:$0xff]
    %v285 = vld [vmem:[#allocation4 + $0x398] sm:$0xff]
    %v286 = vld [vmem:[#allocation4 + $0x3a0] sm:$0xff]
    %v287 = vld [vmem:[#allocation4 + $0x3a8] sm:$0xff]
    %v288 = vld [vmem:[#allocation4 + $0x3b0] sm:$0xff]
    %v289 = vld [vmem:[#allocation4 + $0x3b8] sm:$0xff]
    %v290 = vld [vmem:[#allocation4 + $0x3c0] sm:$0xff]
    %v291 = vld [vmem:[#allocation4 + $0x3c8] sm:$0xff]
    %v292 = vld [vmem:[#allocation4 + $0x3d0] sm:$0xff]
    %v293 = vld [vmem:[#allocation4 + $0x3d8] sm:$0xff]
    %v294 = vld [vmem:[#allocation4 + $0x3e0] sm:$0xff]
    %v295 = vld [vmem:[#allocation4 + $0x3e8] sm:$0xff]
    %v296 = vld [vmem:[#allocation4 + $0x3f0] sm:$0xff]
    %v297 = vld [vmem:[#allocation4 + $0x3f8] sm:$0xff]
    %v298 = vld [vmem:[#allocation4 + $0x400] sm:$0xff]
    %v299 = vld [vmem:[#allocation4 + $0x408] sm:$0xff]
    %v300 = vld [vmem:[#allocation4 + $0x410] sm:$0xff]
    %v301 = vld [vmem:[#allocation4 + $0x418] sm:$0xff]
    %v302 = vld [vmem:[#allocation4 + $0x420] sm:$0xff]
    %v303 = vld [vmem:[#allocation4 + $0x428] sm:$0xff]
    %v304 = vld [vmem:[#allocation4 + $0x430] sm:$0xff]
    %v305 = vld [vmem:[#allocation4 + $0x438] sm:$0xff]
    %v306 = vld [vmem:[#allocation4 + $0x440] sm:$0xff]
    %v307 = vld [vmem:[#allocation4 + $0x448] sm:$0xff]
    %v308 = vld [vmem:[#allocation4 + $0x450] sm:$0xff]
    %v309 = vld [vmem:[#allocation4 + $0x458] sm:$0xff]
    %v310 = vld [vmem:[#allocation4 + $0x460] sm:$0xff]
    %v311 = vld [vmem:[#allocation4 + $0x468] sm:$0xff]
    %v312 = vld [vmem:[#allocation4 + $0x470] sm:$0xff]
    %v313 = vld [vmem:[#allocation4 + $0x478] sm:$0xff]
    %v314 = vld [vmem:[#allocation4 + $0x480] sm:$0xff]
    %v315 = vld [vmem:[#allocation4 + $0x488] sm:$0xff]
    %v316 = vld [vmem:[#allocation4 + $0x490] sm:$0xff]
    %v317 = vld [vmem:[#allocation4 + $0x498] sm:$0xff]
    %v318 = vld [vmem:[#allocation4 + $0x4a0] sm:$0xff]
    %v319 = vld [vmem:[#allocation4 + $0x4a8] sm:$0xff]
    %v320 = vld [vmem:[#allocation4 + $0x4b0] sm:$0xff]
    %v321 = vld [vmem:[#allocation4 + $0x4b8] sm:$0xff]
    %v322 = vld [vmem:[#allocation4 + $0x4c0] sm:$0xff]
    %v323 = vld [vmem:[#allocation4 + $0x4c8] sm:$0xff]
    %v324 = vld [vmem:[#allocation4 + $0x4d0] sm:$0xff]
    %v325 = vld [vmem:[#allocation4 + $0x4d8] sm:$0xff]
    %v326 = vld [vmem:[#allocation4 + $0x4e0] sm:$0xff]
    %v327 = vld [vmem:[#allocation4 + $0x4e8] sm:$0xff]
    %v328 = vld [vmem:[#allocation4 + $0x4f0] sm:$0xff]
    %v329 = vld [vmem:[#allocation4 + $0x4f8] sm:$0xff]
    %v330 = vld [vmem:[#allocation4 + $0x500] sm:$0xff]
    %v331 = vld [vmem:[#allocation4 + $0x508] sm:$0xff]
    %v332 = vld [vmem:[#allocation4 + $0x510] sm:$0xff]
    %v333 = vld [vmem:[#allocation4 + $0x518] sm:$0xff]
    %v334 = vld [vmem:[#allocation4 + $0x520] sm:$0xff]
    %v335 = vld [vmem:[#allocation4 + $0x528] sm:$0xff]
    %v336 = vld [vmem:[#allocation4 + $0x530] sm:$0xff]
    %v337 = vld [vmem:[#allocation4 + $0x538] sm:$0xff]
    %v338 = vld [vmem:[#allocation4 + $0x540] sm:$0xff]
    %v339 = vld [vmem:[#allocation4 + $0x548] sm:$0xff]
    %v340 = vld [vmem:[#allocation4 + $0x550] sm:$0xff]
    %v341 = vld [vmem:[#allocation4 + $0x558] sm:$0xff]
    %v342 = vld [vmem:[#allocation4 + $0x560] sm:$0xff]
    %v343 = vld [vmem:[#allocation4 + $0x568] sm:$0xff]
    %v344 = vld [vmem:[#allocation4 + $0x570] sm:$0xff]
    %v345 = vld [vmem:[#allocation4 + $0x578] sm:$0xff]
    %v346 = vld [vmem:[#allocation4 + $0x580] sm:$0xff]
    %v347 = vld [vmem:[#allocation4 + $0x588] sm:$0xff]
    %v348 = vld [vmem:[#allocation4 + $0x590] sm:$0xff]
    %v349 = vld [vmem:[#allocation4 + $0x598] sm:$0xff]
    %v350 = vld [vmem:[#allocation4 + $0x5a0] sm:$0xff]
    %v351 = vld [vmem:[#allocation4 + $0x5a8] sm:$0xff]
    %v352 = vld [vmem:[#allocation4 + $0x5b0] sm:$0xff]
    %v353 = vld [vmem:[#allocation4 + $0x5b8] sm:$0xff]
    %v354 = vld [vmem:[#allocation4 + $0x5c0] sm:$0xff]
    %v355 = vld [vmem:[#allocation4 + $0x5c8] sm:$0xff]
    %v356 = vld [vmem:[#allocation4 + $0x5d0] sm:$0xff]
    %v357 = vld [vmem:[#allocation4 + $0x5d8] sm:$0xff]
    %v358 = vld [vmem:[#allocation4 + $0x5e0] sm:$0xff]
    %v359 = vld [vmem:[#allocation4 + $0x5e8] sm:$0xff]
    %v360 = vld [vmem:[#allocation4 + $0x5f0] sm:$0xff]
    %v361 = vld [vmem:[#allocation4 + $0x5f8] sm:$0xff]
    %v362 = vld [vmem:[#allocation4 + $0x600] sm:$0xff]
    %v363 = vld [vmem:[#allocation4 + $0x608] sm:$0xff]
    %v364 = vld [vmem:[#allocation4 + $0x610] sm:$0xff]
    %v365 = vld [vmem:[#allocation4 + $0x618] sm:$0xff]
    %v366 = vld [vmem:[#allocation4 + $0x620] sm:$0xff]
    %v367 = vld [vmem:[#allocation4 + $0x628] sm:$0xff]
    %v368 = vld [vmem:[#allocation4 + $0x630] sm:$0xff]
    %v369 = vld [vmem:[#allocation4 + $0x638] sm:$0xff]
    %v370 = vld [vmem:[#allocation4 + $0x640] sm:$0xff]
    %v371 = vld [vmem:[#allocation4 + $0x648] sm:$0xff]
    %v372 = vld [vmem:[#allocation4 + $0x650] sm:$0xff]
    %v373 = vld [vmem:[#allocation4 + $0x658] sm:$0xff]
    %v374 = vld [vmem:[#allocation4 + $0x660] sm:$0xff]
    %v375 = vld [vmem:[#allocation4 + $0x668] sm:$0xff]
    %v376 = vld [vmem:[#allocation4 + $0x670] sm:$0xff]
    %v377 = vld [vmem:[#allocation4 + $0x678] sm:$0xff]
    %v378 = vld [vmem:[#allocation4 + $0x680] sm:$0xff]
    %v379 = vld [vmem:[#allocation4 + $0x688] sm:$0xff]
    %v380 = vld [vmem:[#allocation4 + $0x690] sm:$0xff]
    %v381 = vld [vmem:[#allocation4 + $0x698] sm:$0xff]
    %v382 = vld [vmem:[#allocation4 + $0x6a0] sm:$0xff]
    %v383 = vld [vmem:[#allocation4 + $0x6a8] sm:$0xff]
    %v384 = vld [vmem:[#allocation4 + $0x6b0] sm:$0xff]
    %v385 = vld [vmem:[#allocation4 + $0x6b8] sm:$0xff]
    %v386 = vld [vmem:[#allocation4 + $0x6c0] sm:$0xff]
    %v387 = vld [vmem:[#allocation4 + $0x6c8] sm:$0xff]
    %v388 = vld [vmem:[#allocation4 + $0x6d0] sm:$0xff]
    %v389 = vld [vmem:[#allocation4 + $0x6d8] sm:$0xff]
    %v390 = vld [vmem:[#allocation4 + $0x6e0] sm:$0xff]
    %v391 = vld [vmem:[#allocation4 + $0x6e8] sm:$0xff]
    %v392 = vld [vmem:[#allocation4 + $0x6f0] sm:$0xff]
    %v393 = vld [vmem:[#allocation4 + $0x6f8] sm:$0xff]
    %v394 = vld [vmem:[#allocation4 + $0x700] sm:$0xff]
    %v395 = vld [vmem:[#allocation4 + $0x708] sm:$0xff]
    %v396 = vld [vmem:[#allocation4 + $0x710] sm:$0xff]
    %v397 = vld [vmem:[#allocation4 + $0x718] sm:$0xff]
    %v398 = vld [vmem:[#allocation4 + $0x720] sm:$0xff]
    %v399 = vld [vmem:[#allocation4 + $0x728] sm:$0xff]
    %v400 = vld [vmem:[#allocation4 + $0x730] sm:$0xff]
    %v401 = vld [vmem:[#allocation4 + $0x738] sm:$0xff]
    %v402 = vld [vmem:[#allocation4 + $0x740] sm:$0xff]
    %v403 = vld [vmem:[#allocation4 + $0x748] sm:$0xff]
    %v404 = vld [vmem:[#allocation4 + $0x750] sm:$0xff]
    %v405 = vld [vmem:[#allocation4 + $0x758] sm:$0xff]
    %v406 = vld [vmem:[#allocation4 + $0x760] sm:$0xff]
    %v407 = vld [vmem:[#allocation4 + $0x768] sm:$0xff]
    %v408 = vld [vmem:[#allocation4 + $0x770] sm:$0xff]
    %v409 = vld [vmem:[#allocation4 + $0x778] sm:$0xff]
    %v410 = vld [vmem:[#allocation4 + $0x780] sm:$0xff]
    %v411 = vld [vmem:[#allocation4 + $0x788] sm:$0xff]
    %v412 = vld [vmem:[#allocation4 + $0x790] sm:$0xff]
    %v413 = vld [vmem:[#allocation4 + $0x798] sm:$0xff]
    %v414 = vld [vmem:[#allocation4 + $0x7a0] sm:$0xff]
    %v415 = vld [vmem:[#allocation4 + $0x7a8] sm:$0xff]
    %v416 = vld [vmem:[#allocation4 + $0x7b0] sm:$0xff]
    %v417 = vld [vmem:[#allocation4 + $0x7b8] sm:$0xff]
    %v418 = vld [vmem:[#allocation4 + $0x7c0] sm:$0xff]
    %v419 = vld [vmem:[#allocation4 + $0x7c8] sm:$0xff]
    %v420 = vld [vmem:[#allocation4 + $0x7d0] sm:$0xff]
    %v421 = vld [vmem:[#allocation4 + $0x7d8] sm:$0xff]
    %v422 = vld [vmem:[#allocation4 + $0x7e0] sm:$0xff]
    %v423 = vld [vmem:[#allocation4 + $0x7e8] sm:$0xff]
    %v424 = vld [vmem:[#allocation4 + $0x7f0] sm:$0xff]
    %v425 = vld [vmem:[#allocation4 + $0x7f8] sm:$0xff]
    %v426 = vld [vmem:[#allocation4 + $0x800] sm:$0xff]
    %v427 = vld [vmem:[#allocation4 + $0x808] sm:$0xff]
    %v428 = vld [vmem:[#allocation4 + $0x810] sm:$0xff]
    %v429 = vld [vmem:[#allocation4 + $0x818] sm:$0xff]
    %v430 = vld [vmem:[#allocation4 + $0x820] sm:$0xff]
    %v431 = vld [vmem:[#allocation4 + $0x828] sm:$0xff]
    %v432 = vld [vmem:[#allocation4 + $0x830] sm:$0xff]
    %v433 = vld [vmem:[#allocation4 + $0x838] sm:$0xff]
    %v434 = vld [vmem:[#allocation4 + $0x840] sm:$0xff]
    %v435 = vld [vmem:[#allocation4 + $0x848] sm:$0xff]
    %v436 = vld [vmem:[#allocation4 + $0x850] sm:$0xff]
    %v437 = vld [vmem:[#allocation4 + $0x858] sm:$0xff]
    %v438 = vld [vmem:[#allocation4 + $0x860] sm:$0xff]
    %v439 = vld [vmem:[#allocation4 + $0x868] sm:$0xff]
    %v440 = vld [vmem:[#allocation4 + $0x870] sm:$0xff]
    %v441 = vld [vmem:[#allocation4 + $0x878] sm:$0xff]
    %v442 = vld [vmem:[#allocation4 + $0x880] sm:$0xff]
    %v443 = vld [vmem:[#allocation4 + $0x888] sm:$0xff]
    %v444 = vld [vmem:[#allocation4 + $0x890] sm:$0xff]
    %v445 = vld [vmem:[#allocation4 + $0x898] sm:$0xff]
    %v446 = vld [vmem:[#allocation4 + $0x8a0] sm:$0xff]
    %v447 = vld [vmem:[#allocation4 + $0x8a8] sm:$0xff]
    %v448 = vld [vmem:[#allocation4 + $0x8b0] sm:$0xff]
    %v449 = vld [vmem:[#allocation4 + $0x8b8] sm:$0xff]
    %v450 = vld [vmem:[#allocation4 + $0x8c0] sm:$0xff]
    %v451 = vld [vmem:[#allocation4 + $0x8c8] sm:$0xff]
    %v452 = vld [vmem:[#allocation4 + $0x8d0] sm:$0xff]
    %v453 = vld [vmem:[#allocation4 + $0x8d8] sm:$0xff]
    %v454 = vld [vmem:[#allocation4 + $0x8e0] sm:$0xff]
    %v455 = vld [vmem:[#allocation4 + $0x8e8] sm:$0xff]
    %v456 = vld [vmem:[#allocation4 + $0x8f0] sm:$0xff]
    %v457 = vld [vmem:[#allocation4 + $0x8f8] sm:$0xff]
    %v458 = vld [vmem:[#allocation4 + $0x900] sm:$0xff]
    %v459 = vld [vmem:[#allocation4 + $0x908] sm:$0xff]
    %v460 = vld [vmem:[#allocation4 + $0x910] sm:$0xff]
    %v461 = vld [vmem:[#allocation4 + $0x918] sm:$0xff]
    %v462 = vld [vmem:[#allocation4 + $0x920] sm:$0xff]
    %v463 = vld [vmem:[#allocation4 + $0x928] sm:$0xff]
    %v464 = vld [vmem:[#allocation4 + $0x930] sm:$0xff]
    %v465 = vld [vmem:[#allocation4 + $0x938] sm:$0xff]
    %v466 = vld [vmem:[#allocation4 + $0x940] sm:$0xff]
    %v467 = vld [vmem:[#allocation4 + $0x948] sm:$0xff]
    %v468 = vld [vmem:[#allocation4 + $0x950] sm:$0xff]
    %v469 = vld [vmem:[#allocation4 + $0x958] sm:$0xff]
    %v470 = vld [vmem:[#allocation4 + $0x960] sm:$0xff]
    %v471 = vld [vmem:[#allocation4 + $0x968] sm:$0xff]
    %v472 = vld [vmem:[#allocation4 + $0x970] sm:$0xff]
    %v473 = vld [vmem:[#allocation4 + $0x978] sm:$0xff]
    %v474 = vld [vmem:[#allocation4 + $0x980] sm:$0xff]
    %v475 = vld [vmem:[#allocation4 + $0x988] sm:$0xff]
    %v476 = vld [vmem:[#allocation4 + $0x990] sm:$0xff]
    %v477 = vld [vmem:[#allocation4 + $0x998] sm:$0xff]
    %v478 = vld [vmem:[#allocation4 + $0x9a0] sm:$0xff]
    %v479 = vld [vmem:[#allocation4 + $0x9a8] sm:$0xff]
    %v480 = vld [vmem:[#allocation4 + $0x9b0] sm:$0xff]
    %v481 = vld [vmem:[#allocation4 + $0x9b8] sm:$0xff]
    %v482 = vld [vmem:[#allocation4 + $0x9c0] sm:$0xff]
    %v483 = vld [vmem:[#allocation4 + $0x9c8] sm:$0xff]
    %v484 = vld [vmem:[#allocation4 + $0x9d0] sm:$0xff]
    %v485 = vld [vmem:[#allocation4 + $0x9d8] sm:$0xff]
    %v486 = vld [vmem:[#allocation4 + $0x9e0] sm:$0xff]
    %v487 = vld [vmem:[#allocation4 + $0x9e8] sm:$0xff]
    %v488 = vld [vmem:[#allocation4 + $0x9f0] sm:$0xff]
    %v489 = vld [vmem:[#allocation4 + $0x9f8] sm:$0xff]
    %v490 = vld [vmem:[#allocation4 + $0xa00] sm:$0xff]
    %v491 = vld [vmem:[#allocation4 + $0xa08] sm:$0xff]
    %v492 = vld [vmem:[#allocation4 + $0xa10] sm:$0xff]
    %v493 = vld [vmem:[#allocation4 + $0xa18] sm:$0xff]
    %v494 = vld [vmem:[#allocation4 + $0xa20] sm:$0xff]
    %v495 = vld [vmem:[#allocation4 + $0xa28] sm:$0xff]
    %v496 = vld [vmem:[#allocation4 + $0xa30] sm:$0xff]
    %v497 = vld [vmem:[#allocation4 + $0xa38] sm:$0xff]
    %v498 = vld [vmem:[#allocation4 + $0xa40] sm:$0xff]
    %v499 = vld [vmem:[#allocation4 + $0xa48] sm:$0xff]
    %v500 = vld [vmem:[#allocation4 + $0xa50] sm:$0xff]
    %v501 = vld [vmem:[#allocation4 + $0xa58] sm:$0xff]
    %v502 = vld [vmem:[#allocation4 + $0xa60] sm:$0xff]
    %v503 = vld [vmem:[#allocation4 + $0xa68] sm:$0xff]
    %v504 = vld [vmem:[#allocation4 + $0xa70] sm:$0xff]
    %v505 = vld [vmem:[#allocation4 + $0xa78] sm:$0xff]
    %v506 = vld [vmem:[#allocation4 + $0xa80] sm:$0xff]
    %v507 = vld [vmem:[#allocation4 + $0xa88] sm:$0xff]
    %v508 = vld [vmem:[#allocation4 + $0xa90] sm:$0xff]
    %v509 = vld [vmem:[#allocation4 + $0xa98] sm:$0xff]
    %v510 = vld [vmem:[#allocation4 + $0xaa0] sm:$0xff]
    %v511 = vld [vmem:[#allocation4 + $0xaa8] sm:$0xff]
    %v512 = vld [vmem:[#allocation4 + $0xab0] sm:$0xff]
    %v513 = vld [vmem:[#allocation4 + $0xab8] sm:$0xff]
    %v514 = vld [vmem:[#allocation4 + $0xac0] sm:$0xff]
    %v515 = vld [vmem:[#allocation4 + $0xac8] sm:$0xff]
    %v516 = vld [vmem:[#allocation4 + $0xad0] sm:$0xff]
    %v517 = vld [vmem:[#allocation4 + $0xad8] sm:$0xff]
    %v518 = vld [vmem:[#allocation4 + $0xae0] sm:$0xff]
    %v519 = vld [vmem:[#allocation4 + $0xae8] sm:$0xff]
    %v520 = vld [vmem:[#allocation4 + $0xaf0] sm:$0xff]
    %v521 = vld [vmem:[#allocation4 + $0xaf8] sm:$0xff]
    %v522 = vld [vmem:[#allocation4 + $0xb00] sm:$0xff]
    %v523 = vld [vmem:[#allocation4 + $0xb08] sm:$0xff]
    %v524 = vld [vmem:[#allocation4 + $0xb10] sm:$0xff]
    %v525 = vld [vmem:[#allocation4 + $0xb18] sm:$0xff]
    %v526 = vld [vmem:[#allocation4 + $0xb20] sm:$0xff]
    %v527 = vld [vmem:[#allocation4 + $0xb28] sm:$0xff]
    %v528 = vld [vmem:[#allocation4 + $0xb30] sm:$0xff]
    %v529 = vld [vmem:[#allocation4 + $0xb38] sm:$0xff]
    %v530 = vld [vmem:[#allocation4 + $0xb40] sm:$0xff]
    %v531 = vld [vmem:[#allocation4 + $0xb48] sm:$0xff]
    %v532 = vld [vmem:[#allocation4 + $0xb50] sm:$0xff]
    %v533 = vld [vmem:[#allocation4 + $0xb58] sm:$0xff]
    %v534 = vld [vmem:[#allocation4 + $0xb60] sm:$0xff]
    %v535 = vld [vmem:[#allocation4 + $0xb68] sm:$0xff]
    %v536 = vld [vmem:[#allocation4 + $0xb70] sm:$0xff]
    %v537 = vld [vmem:[#allocation4 + $0xb78] sm:$0xff]
    %v538 = vld [vmem:[#allocation4 + $0xb80] sm:$0xff]
    %v539 = vld [vmem:[#allocation4 + $0xb88] sm:$0xff]
    %v540 = vld [vmem:[#allocation4 + $0xb90] sm:$0xff]
    %v541 = vld [vmem:[#allocation4 + $0xb98] sm:$0xff]
    %v542 = vld [vmem:[#allocation4 + $0xba0] sm:$0xff]
    %v543 = vld [vmem:[#allocation4 + $0xba8] sm:$0xff]
    %v544 = vld [vmem:[#allocation4 + $0xbb0] sm:$0xff]
    %v545 = vld [vmem:[#allocation4 + $0xbb8] sm:$0xff]
    %v546 = vld [vmem:[#allocation4 + $0xbc0] sm:$0xff]
    %v547 = vld [vmem:[#allocation4 + $0xbc8] sm:$0xff]
    %v548 = vld [vmem:[#allocation4 + $0xbd0] sm:$0xff]
    %v549 = vld [vmem:[#allocation4 + $0xbd8] sm:$0xff]
    %v550 = vld [vmem:[#allocation4 + $0xbe0] sm:$0xff]
    %v551 = vld [vmem:[#allocation4 + $0xbe8] sm:$0xff]
    %v552 = vld [vmem:[#allocation4 + $0xbf0] sm:$0xff]
    %v553 = vld [vmem:[#allocation4 + $0xbf8] sm:$0xff]
    %v554 = vld [vmem:[#allocation4 + $0xc00] sm:$0xff]
    %v555 = vld [vmem:[#allocation4 + $0xc08] sm:$0xff]
    %v556 = vld [vmem:[#allocation4 + $0xc10] sm:$0xff]
    %v557 = vld [vmem:[#allocation4 + $0xc18] sm:$0xff]
    %v558 = vld [vmem:[#allocation4 + $0xc20] sm:$0xff]
    %v559 = vld [vmem:[#allocation4 + $0xc28] sm:$0xff]
    %v560 = vld [vmem:[#allocation4 + $0xc30] sm:$0xff]
    %v561 = vld [vmem:[#allocation4 + $0xc38] sm:$0xff]
    %v562 = vld [vmem:[#allocation4 + $0xc40] sm:$0xff]
    %v563 = vld [vmem:[#allocation4 + $0xc48] sm:$0xff]
    %v564 = vld [vmem:[#allocation4 + $0xc50] sm:$0xff]
    %v565 = vld [vmem:[#allocation4 + $0xc58] sm:$0xff]
    %v566 = vld [vmem:[#allocation4 + $0xc60] sm:$0xff]
    %v567 = vld [vmem:[#allocation4 + $0xc68] sm:$0xff]
    %v568 = vld [vmem:[#allocation4 + $0xc70] sm:$0xff]
    %v569 = vld [vmem:[#allocation4 + $0xc78] sm:$0xff]
    %v570 = vld [vmem:[#allocation4 + $0xc80] sm:$0xff]
    %v571 = vld [vmem:[#allocation4 + $0xc88] sm:$0xff]
    %v572 = vld [vmem:[#allocation4 + $0xc90] sm:$0xff]
    %v573 = vld [vmem:[#allocation4 + $0xc98] sm:$0xff]
    %v574 = vld [vmem:[#allocation4 + $0xca0] sm:$0xff]
    %v575 = vld [vmem:[#allocation4 + $0xca8] sm:$0xff]
    %v576 = vld [vmem:[#allocation4 + $0xcb0] sm:$0xff]
    %v577 = vld [vmem:[#allocation4 + $0xcb8] sm:$0xff]
    %v578 = vld [vmem:[#allocation4 + $0xcc0] sm:$0xff]
    %v579 = vld [vmem:[#allocation4 + $0xcc8] sm:$0xff]
    %v580 = vld [vmem:[#allocation4 + $0xcd0] sm:$0xff]
    %v581 = vld [vmem:[#allocation4 + $0xcd8] sm:$0xff]
    %v582 = vld [vmem:[#allocation4 + $0xce0] sm:$0xff]
    %v583 = vld [vmem:[#allocation4 + $0xce8] sm:$0xff]
    %v584 = vld [vmem:[#allocation4 + $0xcf0] sm:$0xff]
    %v585 = vld [vmem:[#allocation4 + $0xcf8] sm:$0xff]
    %v586 = vld [vmem:[#allocation4 + $0xd00] sm:$0xff]
    %v587 = vld [vmem:[#allocation4 + $0xd08] sm:$0xff]
    %v588 = vld [vmem:[#allocation4 + $0xd10] sm:$0xff]
    %v589 = vld [vmem:[#allocation4 + $0xd18] sm:$0xff]
    %v590 = vld [vmem:[#allocation4 + $0xd20] sm:$0xff]
    %v591 = vld [vmem:[#allocation4 + $0xd28] sm:$0xff]
    %v592 = vld [vmem:[#allocation4 + $0xd30] sm:$0xff]
    %v593 = vld [vmem:[#allocation4 + $0xd38] sm:$0xff]
    %v594 = vld [vmem:[#allocation4 + $0xd40] sm:$0xff]
    %v595 = vld [vmem:[#allocation4 + $0xd48] sm:$0xff]
    %v596 = vld [vmem:[#allocation4 + $0xd50] sm:$0xff]
    %v597 = vld [vmem:[#allocation4 + $0xd58] sm:$0xff]
    %v598 = vld [vmem:[#allocation4 + $0xd60] sm:$0xff]
    %v599 = vld [vmem:[#allocation4 + $0xd68] sm:$0xff]
    %v600 = vld [vmem:[#allocation4 + $0xd70] sm:$0xff]
    %v601 = vld [vmem:[#allocation4 + $0xd78] sm:$0xff]
    %v602 = vld [vmem:[#allocation4 + $0xd80] sm:$0xff]
    %v603 = vld [vmem:[#allocation4 + $0xd88] sm:$0xff]
    %v604 = vld [vmem:[#allocation4 + $0xd90] sm:$0xff]
    %v605 = vld [vmem:[#allocation4 + $0xd98] sm:$0xff]
    %v606 = vld [vmem:[#allocation4 + $0xda0] sm:$0xff]
    %v607 = vld [vmem:[#allocation4 + $0xda8] sm:$0xff]
    %v608 = vld [vmem:[#allocation4 + $0xdb0] sm:$0xff]
    %v609 = vld [vmem:[#allocation4 + $0xdb8] sm:$0xff]
    %v610 = vld [vmem:[#allocation4 + $0xdc0] sm:$0xff]
    %v611 = vld [vmem:[#allocation4 + $0xdc8] sm:$0xff]
    %v612 = vld [vmem:[#allocation4 + $0xdd0] sm:$0xff]
    %v613 = vld [vmem:[#allocation4 + $0xdd8] sm:$0xff]
    %v614 = vld [vmem:[#allocation4 + $0xde0] sm:$0xff]
    %v615 = vld [vmem:[#allocation4 + $0xde8] sm:$0xff]
    %v616 = vld [vmem:[#allocation4 + $0xdf0] sm:$0xff]
    %v617 = vld [vmem:[#allocation4 + $0xdf8] sm:$0xff]
    %v618 = vld [vmem:[#allocation4 + $0xe00] sm:$0xff]
    %v619 = vld [vmem:[#allocation4 + $0xe08] sm:$0xff]
    %v620 = vld [vmem:[#allocation4 + $0xe10] sm:$0xff]
    %v621 = vld [vmem:[#allocation4 + $0xe18] sm:$0xff]
    %v622 = vld [vmem:[#allocation4 + $0xe20] sm:$0xff]
    %v623 = vld [vmem:[#allocation4 + $0xe28] sm:$0xff]
    %v624 = vld [vmem:[#allocation4 + $0xe30] sm:$0xff]
    %v625 = vld [vmem:[#allocation4 + $0xe38] sm:$0xff]
    %v626 = vld [vmem:[#allocation4 + $0xe40] sm:$0xff]
    %v627 = vld [vmem:[#allocation4 + $0xe48] sm:$0xff]
    %v628 = vld [vmem:[#allocation4 + $0xe50] sm:$0xff]
    %v629 = vld [vmem:[#allocation4 + $0xe58] sm:$0xff]
    %v630 = vld [vmem:[#allocation4 + $0xe60] sm:$0xff]
    %v631 = vld [vmem:[#allocation4 + $0xe68] sm:$0xff]
    %v632 = vld [vmem:[#allocation4 + $0xe70] sm:$0xff]
    %v633 = vld [vmem:[#allocation4 + $0xe78] sm:$0xff]
    %v634 = vld [vmem:[#allocation4 + $0xe80] sm:$0xff]
    %v635 = vld [vmem:[#allocation4 + $0xe88] sm:$0xff]
    %v636 = vld [vmem:[#allocation4 + $0xe90] sm:$0xff]
    %v637 = vld [vmem:[#allocation4 + $0xe98] sm:$0xff]
    %v638 = vld [vmem:[#allocation4 + $0xea0] sm:$0xff]
    %v639 = vld [vmem:[#allocation4 + $0xea8] sm:$0xff]
    %v640 = vld [vmem:[#allocation4 + $0xeb0] sm:$0xff]
    %v641 = vld [vmem:[#allocation4 + $0xeb8] sm:$0xff]
    %v642 = vld [vmem:[#allocation4 + $0xec0] sm:$0xff]
    %v643 = vld [vmem:[#allocation4 + $0xec8] sm:$0xff]
    %v644 = vld [vmem:[#allocation4 + $0xed0] sm:$0xff]
    %v645 = vld [vmem:[#allocation4 + $0xed8] sm:$0xff]
    %v646 = vld [vmem:[#allocation4 + $0xee0] sm:$0xff]
    %v647 = vld [vmem:[#allocation4 + $0xee8] sm:$0xff]
    %v648 = vld [vmem:[#allocation4 + $0xef0] sm:$0xff]
    %v649 = vld [vmem:[#allocation4 + $0xef8] sm:$0xff]
    %v650 = vld [vmem:[#allocation4 + $0xf00] sm:$0xff]
    %v651 = vld [vmem:[#allocation4 + $0xf08] sm:$0xff]
    %v652 = vld [vmem:[#allocation4 + $0xf10] sm:$0xff]
    %v653 = vld [vmem:[#allocation4 + $0xf18] sm:$0xff]
    %v654 = vld [vmem:[#allocation4 + $0xf20] sm:$0xff]
    %v655 = vld [vmem:[#allocation4 + $0xf28] sm:$0xff]
    %v656 = vld [vmem:[#allocation4 + $0xf30] sm:$0xff]
    %v657 = vld [vmem:[#allocation4 + $0xf38] sm:$0xff]
    %v658 = vld [vmem:[#allocation4 + $0xf40] sm:$0xff]
    %v659 = vld [vmem:[#allocation4 + $0xf48] sm:$0xff]
    %v660 = vld [vmem:[#allocation4 + $0xf50] sm:$0xff]
    %v661 = vld [vmem:[#allocation4 + $0xf58] sm:$0xff]
    %v662 = vld [vmem:[#allocation4 + $0xf60] sm:$0xff]
    %v663 = vld [vmem:[#allocation4 + $0xf68] sm:$0xff]
    %v664 = vld [vmem:[#allocation4 + $0xf70] sm:$0xff]
    %v665 = vld [vmem:[#allocation4 + $0xf78] sm:$0xff]
    %v666 = vld [vmem:[#allocation4 + $0xf80] sm:$0xff]
    %v667 = vld [vmem:[#allocation4 + $0xf88] sm:$0xff]
    %v668 = vld [vmem:[#allocation4 + $0xf90] sm:$0xff]
    %v669 = vld [vmem:[#allocation4 + $0xf98] sm:$0xff]
    %v670 = vld [vmem:[#allocation4 + $0xfa0] sm:$0xff]
    %v671 = vld [vmem:[#allocation4 + $0xfa8] sm:$0xff]
    %v672 = vld [vmem:[#allocation4 + $0xfb0] sm:$0xff]
    %v673 = vld [vmem:[#allocation4 + $0xfb8] sm:$0xff]
    %v674 = vld [vmem:[#allocation4 + $0xfc0] sm:$0xff]
    %v675 = vld [vmem:[#allocation4 + $0xfc8] sm:$0xff]
    %v676 = vld [vmem:[#allocation4 + $0xfd0] sm:$0xff]
    %v677 = vld [vmem:[#allocation4 + $0xfd8] sm:$0xff]
    %v678 = vld [vmem:[#allocation4 + $0xfe0] sm:$0xff]
    %v679 = vld [vmem:[#allocation4 + $0xfe8] sm:$0xff]
    %v680 = vld [vmem:[#allocation4 + $0xff0] sm:$0xff]
    %v681 = vld [vmem:[#allocation4 + $0xff8] sm:$0xff]
    %v682 = vld [vmem:[#allocation4 + $0x1000] sm:$0xff]
    %v683 = vld [vmem:[#allocation4 + $0x1008] sm:$0xff]
    %v684 = vld [vmem:[#allocation4 + $0x1010] sm:$0xff]
    %v685 = vld [vmem:[#allocation4 + $0x1018] sm:$0xff]
    %v686 = vld [vmem:[#allocation4 + $0x1020] sm:$0xff]
    %v687 = vld [vmem:[#allocation4 + $0x1028] sm:$0xff]
    %v688 = vld [vmem:[#allocation4 + $0x1030] sm:$0xff]
    %v689 = vld [vmem:[#allocation4 + $0x1038] sm:$0xff]
    %v690 = vld [vmem:[#allocation4 + $0x1040] sm:$0xff]
    %v691 = vld [vmem:[#allocation4 + $0x1048] sm:$0xff]
    %v692 = vld [vmem:[#allocation4 + $0x1050] sm:$0xff]
    %v693 = vld [vmem:[#allocation4 + $0x1058] sm:$0xff]
    %v694 = vld [vmem:[#allocation4 + $0x1060] sm:$0xff]
    %v695 = vld [vmem:[#allocation4 + $0x1068] sm:$0xff]
    %v696 = vld [vmem:[#allocation4 + $0x1070] sm:$0xff]
    %v697 = vld [vmem:[#allocation4 + $0x1078] sm:$0xff]
    %v698 = vld [vmem:[#allocation4 + $0x1080] sm:$0xff]
    %v699 = vld [vmem:[#allocation4 + $0x1088] sm:$0xff]
    %v700 = vld [vmem:[#allocation4 + $0x1090] sm:$0xff]
    %v701 = vld [vmem:[#allocation4 + $0x1098] sm:$0xff]
    %v702 = vld [vmem:[#allocation4 + $0x10a0] sm:$0xff]
    %v703 = vld [vmem:[#allocation4 + $0x10a8] sm:$0xff]
    %v704 = vld [vmem:[#allocation4 + $0x10b0] sm:$0xff]
    %v705 = vld [vmem:[#allocation4 + $0x10b8] sm:$0xff]
    %v706 = vld [vmem:[#allocation4 + $0x10c0] sm:$0xff]
    %v707 = vld [vmem:[#allocation4 + $0x10c8] sm:$0xff]
    %v708 = vld [vmem:[#allocation4 + $0x10d0] sm:$0xff]
    %v709 = vld [vmem:[#allocation4 + $0x10d8] sm:$0xff]
    %v710 = vld [vmem:[#allocation4 + $0x10e0] sm:$0xff]
    %v711 = vld [vmem:[#allocation4 + $0x10e8] sm:$0xff]
    %v712 = vld [vmem:[#allocation4 + $0x10f0] sm:$0xff]
    %v713 = vld [vmem:[#allocation4 + $0x10f8] sm:$0xff]
    %v714 = vld [vmem:[#allocation4 + $0x1100] sm:$0xff]
    %v715 = vld [vmem:[#allocation4 + $0x1108] sm:$0xff]
    %v716 = vld [vmem:[#allocation4 + $0x1110] sm:$0xff]
    %v717 = vld [vmem:[#allocation4 + $0x1118] sm:$0xff]
    %v718 = vld [vmem:[#allocation4 + $0x1120] sm:$0xff]
    %v719 = vld [vmem:[#allocation4 + $0x1128] sm:$0xff]
    %v720 = vld [vmem:[#allocation4 + $0x1130] sm:$0xff]
    %v721 = vld [vmem:[#allocation4 + $0x1138] sm:$0xff]
    %v722 = vld [vmem:[#allocation4 + $0x1140] sm:$0xff]
    %v723 = vld [vmem:[#allocation4 + $0x1148] sm:$0xff]
    %v724 = vld [vmem:[#allocation4 + $0x1150] sm:$0xff]
    %v725 = vld [vmem:[#allocation4 + $0x1158] sm:$0xff]
    %v726 = vld [vmem:[#allocation4 + $0x1160] sm:$0xff]
    %v727 = vld [vmem:[#allocation4 + $0x1168] sm:$0xff]
    %v728 = vld [vmem:[#allocation4 + $0x1170] sm:$0xff]
    %v729 = vld [vmem:[#allocation4 + $0x1178] sm:$0xff]
    %v730 = vld [vmem:[#allocation4 + $0x1180] sm:$0xff]
    %v731 = vld [vmem:[#allocation4 + $0x1188] sm:$0xff]
    %v732 = vld [vmem:[#allocation4 + $0x1190] sm:$0xff]
    %v733 = vld [vmem:[#allocation4 + $0x1198] sm:$0xff]
    %v734 = vld [vmem:[#allocation4 + $0x11a0] sm:$0xff]
    %v735 = vld [vmem:[#allocation4 + $0x11a8] sm:$0xff]
    %v736 = vld [vmem:[#allocation4 + $0x11b0] sm:$0xff]
    %v737 = vld [vmem:[#allocation4 + $0x11b8] sm:$0xff]
    %v738 = vld [vmem:[#allocation4 + $0x11c0] sm:$0xff]
    %v739 = vld [vmem:[#allocation4 + $0x11c8] sm:$0xff]
    %v740 = vld [vmem:[#allocation4 + $0x11d0] sm:$0xff]
    %v741 = vld [vmem:[#allocation4 + $0x11d8] sm:$0xff]
    %v742 = vld [vmem:[#allocation4 + $0x11e0] sm:$0xff]
    %v743 = vld [vmem:[#allocation4 + $0x11e8] sm:$0xff]
    %v744 = vld [vmem:[#allocation4 + $0x11f0] sm:$0xff]
    %v745 = vld [vmem:[#allocation4 + $0x11f8] sm:$0xff]
    %v746 = vld [vmem:[#allocation6] sm:$0xf]
    %v748 = vlaneseq
    %v749 = vshrl.u32 %v748, 7
    %v750 = vsub.s32 0, %v749
    %v751 = vrot.slane %v746, %v750
    %v752 = vlaneseq
    %v753 = vshrl.u32 %v752, 7
    %v754 = vsub.s32 1, %v753
    %v755 = vrot.slane %v746, %v754
    %v756 = vlaneseq
    %v757 = vshrl.u32 %v756, 7
    %v758 = vsub.s32 2, %v757
    %v759 = vrot.slane %v746, %v758
    %v760 = vlaneseq
    %v761 = vshrl.u32 %v760, 7
    %v762 = vsub.s32 3, %v761
    %v763 = vrot.slane %v746, %v762
    %v1344 = vunpack.c.l.b16 %v170
    %v1345 = vunpack.c.h.b16 %v170
    %v1346 = vunpack.c.l.b16 %v171
    %v1347 = vunpack.c.h.b16 %v171
    %v1348 = vunpack.c.l.b16 %v172
    %v1349 = vunpack.c.h.b16 %v172
    %v1350 = vunpack.c.l.b16 %v173
    %v1351 = vunpack.c.h.b16 %v173
    %v1352 = vunpack.c.l.b16 %v174
    %v1353 = vunpack.c.h.b16 %v174
    %v1354 = vunpack.c.l.b16 %v175
    %v1355 = vunpack.c.h.b16 %v175
    %v1356 = vunpack.c.l.b16 %v176
    %v1357 = vunpack.c.h.b16 %v176
    %v1358 = vunpack.c.l.b16 %v177
    %v1359 = vunpack.c.h.b16 %v177
    %v1360 = vunpack.c.l.b16 %v178
    %v1361 = vunpack.c.h.b16 %v178
    %v1362 = vunpack.c.l.b16 %v179
    %v1363 = vunpack.c.h.b16 %v179
    %v1364 = vunpack.c.l.b16 %v180
    %v1365 = vunpack.c.h.b16 %v180
    %v1366 = vunpack.c.l.b16 %v181
    %v1367 = vunpack.c.h.b16 %v181
    %v1368 = vunpack.c.l.b16 %v182
    %v1369 = vunpack.c.h.b16 %v182
    %v1370 = vunpack.c.l.b16 %v183
    %v1371 = vunpack.c.h.b16 %v183
    %v1372 = vunpack.c.l.b16 %v184
    %v1373 = vunpack.c.h.b16 %v184
    %v1374 = vunpack.c.l.b16 %v185
    %v1375 = vunpack.c.h.b16 %v185
    %v1376 = vunpack.c.l.b16 %v186
    %v1377 = vunpack.c.h.b16 %v186
    %v1378 = vunpack.c.l.b16 %v187
    %v1379 = vunpack.c.h.b16 %v187
    %v1380 = vunpack.c.l.b16 %v188
    %v1381 = vunpack.c.h.b16 %v188
    %v1382 = vunpack.c.l.b16 %v189
    %v1383 = vunpack.c.h.b16 %v189
    %v1384 = vunpack.c.l.b16 %v190
    %v1385 = vunpack.c.h.b16 %v190
    %v1386 = vunpack.c.l.b16 %v191
    %v1387 = vunpack.c.h.b16 %v191
    %v1388 = vunpack.c.l.b16 %v192
    %v1389 = vunpack.c.h.b16 %v192
    %v1390 = vunpack.c.l.b16 %v193
    %v1391 = vunpack.c.h.b16 %v193
    %v1392 = vunpack.c.l.b16 %v194
    %v1393 = vunpack.c.h.b16 %v194
    %v1394 = vunpack.c.l.b16 %v195
    %v1395 = vunpack.c.h.b16 %v195
    %v1396 = vunpack.c.l.b16 %v196
    %v1397 = vunpack.c.h.b16 %v196
    %v1398 = vunpack.c.l.b16 %v197
    %v1399 = vunpack.c.h.b16 %v197
    %v1400 = vunpack.c.l.b16 %v198
    %v1401 = vunpack.c.h.b16 %v198
    %v1402 = vunpack.c.l.b16 %v199
    %v1403 = vunpack.c.h.b16 %v199
    %v1404 = vunpack.c.l.b16 %v200
    %v1405 = vunpack.c.h.b16 %v200
    %v1406 = vunpack.c.l.b16 %v201
    %v1407 = vunpack.c.h.b16 %v201
    %v1408 = vunpack.c.l.b16 %v202
    %v1409 = vunpack.c.h.b16 %v202
    %v1410 = vunpack.c.l.b16 %v203
    %v1411 = vunpack.c.h.b16 %v203
    %v1412 = vunpack.c.l.b16 %v204
    %v1413 = vunpack.c.h.b16 %v204
    %v1414 = vunpack.c.l.b16 %v205
    %v1415 = vunpack.c.h.b16 %v205
    %v1416 = vunpack.c.l.b16 %v206
    %v1417 = vunpack.c.h.b16 %v206
    %v1418 = vunpack.c.l.b16 %v207
    %v1419 = vunpack.c.h.b16 %v207
    %v1420 = vunpack.c.l.b16 %v208
    %v1421 = vunpack.c.h.b16 %v208
    %v1422 = vunpack.c.l.b16 %v209
    %v1423 = vunpack.c.h.b16 %v209
    %v1424 = vunpack.c.l.b16 %v210
    %v1425 = vunpack.c.h.b16 %v210
    %v1426 = vunpack.c.l.b16 %v211
    %v1427 = vunpack.c.h.b16 %v211
    %v1428 = vunpack.c.l.b16 %v212
    %v1429 = vunpack.c.h.b16 %v212
    %v1430 = vunpack.c.l.b16 %v213
    %v1431 = vunpack.c.h.b16 %v213
    %v1432 = vunpack.c.l.b16 %v214
    %v1433 = vunpack.c.h.b16 %v214
    %v1434 = vunpack.c.l.b16 %v215
    %v1435 = vunpack.c.h.b16 %v215
    %v1436 = vunpack.c.l.b16 %v216
    %v1437 = vunpack.c.h.b16 %v216
    %v1438 = vunpack.c.l.b16 %v217
    %v1439 = vunpack.c.h.b16 %v217
    %v1440 = vunpack.c.l.b16 %v218
    %v1441 = vunpack.c.h.b16 %v218
    %v1442 = vunpack.c.l.b16 %v219
    %v1443 = vunpack.c.h.b16 %v219
    %v1444 = vunpack.c.l.b16 %v220
    %v1445 = vunpack.c.h.b16 %v220
    %v1446 = vunpack.c.l.b16 %v221
    %v1447 = vunpack.c.h.b16 %v221
    %v1448 = vunpack.c.l.b16 %v222
    %v1449 = vunpack.c.h.b16 %v222
    %v1450 = vunpack.c.l.b16 %v223
    %v1451 = vunpack.c.h.b16 %v223
    %v1452 = vunpack.c.l.b16 %v224
    %v1453 = vunpack.c.h.b16 %v224
    %v1454 = vunpack.c.l.b16 %v225
    %v1455 = vunpack.c.h.b16 %v225
    %v1456 = vunpack.c.l.b16 %v226
    %v1457 = vunpack.c.h.b16 %v226
    %v1458 = vunpack.c.l.b16 %v227
    %v1459 = vunpack.c.h.b16 %v227
    %v1460 = vunpack.c.l.b16 %v228
    %v1461 = vunpack.c.h.b16 %v228
    %v1462 = vunpack.c.l.b16 %v229
    %v1463 = vunpack.c.h.b16 %v229
    %v1464 = vunpack.c.l.b16 %v230
    %v1465 = vunpack.c.h.b16 %v230
    %v1466 = vunpack.c.l.b16 %v231
    %v1467 = vunpack.c.h.b16 %v231
    %v1468 = vunpack.c.l.b16 %v232
    %v1469 = vunpack.c.h.b16 %v232
    %v1470 = vunpack.c.l.b16 %v233
    %v1471 = vunpack.c.h.b16 %v233
    %v1472 = vunpack.c.l.b16 %v234
    %v1473 = vunpack.c.h.b16 %v234
    %v1474 = vunpack.c.l.b16 %v235
    %v1475 = vunpack.c.h.b16 %v235
    %v1476 = vunpack.c.l.b16 %v236
    %v1477 = vunpack.c.h.b16 %v236
    %v1478 = vunpack.c.l.b16 %v237
    %v1479 = vunpack.c.h.b16 %v237
    %v1480 = vunpack.c.l.b16 %v238
    %v1481 = vunpack.c.h.b16 %v238
    %v1482 = vunpack.c.l.b16 %v239
    %v1483 = vunpack.c.h.b16 %v239
    %v1484 = vunpack.c.l.b16 %v240
    %v1485 = vunpack.c.h.b16 %v240
    %v1486 = vunpack.c.l.b16 %v241
    %v1487 = vunpack.c.h.b16 %v241
    %v1488 = vunpack.c.l.b16 %v242
    %v1489 = vunpack.c.h.b16 %v242
    %v1490 = vunpack.c.l.b16 %v243
    %v1491 = vunpack.c.h.b16 %v243
    %v1492 = vunpack.c.l.b16 %v244
    %v1493 = vunpack.c.h.b16 %v244
    %v1494 = vunpack.c.l.b16 %v245
    %v1495 = vunpack.c.h.b16 %v245
    %v1496 = vunpack.c.l.b16 %v246
    %v1497 = vunpack.c.h.b16 %v246
    %v1498 = vunpack.c.l.b16 %v247
    %v1499 = vunpack.c.h.b16 %v247
    %v1500 = vunpack.c.l.b16 %v248
    %v1501 = vunpack.c.h.b16 %v248
    %v1502 = vunpack.c.l.b16 %v249
    %v1503 = vunpack.c.h.b16 %v249
    %v1504 = vunpack.c.l.b16 %v250
    %v1505 = vunpack.c.h.b16 %v250
    %v1506 = vunpack.c.l.b16 %v251
    %v1507 = vunpack.c.h.b16 %v251
    %v1508 = vunpack.c.l.b16 %v252
    %v1509 = vunpack.c.h.b16 %v252
    %v1510 = vunpack.c.l.b16 %v253
    %v1511 = vunpack.c.h.b16 %v253
    %v1512 = vunpack.c.l.b16 %v254
    %v1513 = vunpack.c.h.b16 %v254
    %v1514 = vunpack.c.l.b16 %v255
    %v1515 = vunpack.c.h.b16 %v255
    %v1516 = vunpack.c.l.b16 %v256
    %v1517 = vunpack.c.h.b16 %v256
    %v1518 = vunpack.c.l.b16 %v257
    %v1519 = vunpack.c.h.b16 %v257
    %v1520 = vunpack.c.l.b16 %v258
    %v1521 = vunpack.c.h.b16 %v258
    %v1522 = vunpack.c.l.b16 %v259
    %v1523 = vunpack.c.h.b16 %v259
    %v1524 = vunpack.c.l.b16 %v260
    %v1525 = vunpack.c.h.b16 %v260
    %v1526 = vunpack.c.l.b16 %v261
    %v1527 = vunpack.c.h.b16 %v261
    %v1528 = vunpack.c.l.b16 %v262
    %v1529 = vunpack.c.h.b16 %v262
    %v1530 = vunpack.c.l.b16 %v263
    %v1531 = vunpack.c.h.b16 %v263
    %v1532 = vunpack.c.l.b16 %v264
    %v1533 = vunpack.c.h.b16 %v264
    %v1534 = vunpack.c.l.b16 %v265
    %v1535 = vunpack.c.h.b16 %v265
    %v1536 = vunpack.c.l.b16 %v266
    %v1537 = vunpack.c.h.b16 %v266
    %v1538 = vunpack.c.l.b16 %v267
    %v1539 = vunpack.c.h.b16 %v267
    %v1540 = vunpack.c.l.b16 %v268
    %v1541 = vunpack.c.h.b16 %v268
    %v1542 = vunpack.c.l.b16 %v269
    %v1543 = vunpack.c.h.b16 %v269
    %v1544 = vunpack.c.l.b16 %v270
    %v1545 = vunpack.c.h.b16 %v270
    %v1546 = vunpack.c.l.b16 %v271
    %v1547 = vunpack.c.h.b16 %v271
    %v1548 = vunpack.c.l.b16 %v272
    %v1549 = vunpack.c.h.b16 %v272
    %v1550 = vunpack.c.l.b16 %v273
    %v1551 = vunpack.c.h.b16 %v273
    %v1552 = vunpack.c.l.b16 %v274
    %v1553 = vunpack.c.h.b16 %v274
    %v1554 = vunpack.c.l.b16 %v275
    %v1555 = vunpack.c.h.b16 %v275
    %v1556 = vunpack.c.l.b16 %v276
    %v1557 = vunpack.c.h.b16 %v276
    %v1558 = vunpack.c.l.b16 %v277
    %v1559 = vunpack.c.h.b16 %v277
    %v1560 = vunpack.c.l.b16 %v278
    %v1561 = vunpack.c.h.b16 %v278
    %v1562 = vunpack.c.l.b16 %v279
    %v1563 = vunpack.c.h.b16 %v279
    %v1564 = vunpack.c.l.b16 %v280
    %v1565 = vunpack.c.h.b16 %v280
    %v1566 = vunpack.c.l.b16 %v281
    %v1567 = vunpack.c.h.b16 %v281
    %v1568 = vunpack.c.l.b16 %v282
    %v1569 = vunpack.c.h.b16 %v282
    %v1570 = vunpack.c.l.b16 %v283
    %v1571 = vunpack.c.h.b16 %v283
    %v1572 = vunpack.c.l.b16 %v284
    %v1573 = vunpack.c.h.b16 %v284
    %v1574 = vunpack.c.l.b16 %v285
    %v1575 = vunpack.c.h.b16 %v285
    %v1576 = vunpack.c.l.b16 %v286
    %v1577 = vunpack.c.h.b16 %v286
    %v1578 = vunpack.c.l.b16 %v287
    %v1579 = vunpack.c.h.b16 %v287
    %v1580 = vunpack.c.l.b16 %v288
    %v1581 = vunpack.c.h.b16 %v288
    %v1582 = vunpack.c.l.b16 %v289
    %v1583 = vunpack.c.h.b16 %v289
    %v1584 = vunpack.c.l.b16 %v290
    %v1585 = vunpack.c.h.b16 %v290
    %v1586 = vunpack.c.l.b16 %v291
    %v1587 = vunpack.c.h.b16 %v291
    %v1588 = vunpack.c.l.b16 %v292
    %v1589 = vunpack.c.h.b16 %v292
    %v1590 = vunpack.c.l.b16 %v293
    %v1591 = vunpack.c.h.b16 %v293
    %v1592 = vunpack.c.l.b16 %v294
    %v1593 = vunpack.c.h.b16 %v294
    %v1594 = vunpack.c.l.b16 %v295
    %v1595 = vunpack.c.h.b16 %v295
    %v1596 = vunpack.c.l.b16 %v296
    %v1597 = vunpack.c.h.b16 %v296
    %v1598 = vunpack.c.l.b16 %v297
    %v1599 = vunpack.c.h.b16 %v297
    %v1600 = vunpack.c.l.b16 %v298
    %v1601 = vunpack.c.h.b16 %v298
    %v1602 = vunpack.c.l.b16 %v299
    %v1603 = vunpack.c.h.b16 %v299
    %v1604 = vunpack.c.l.b16 %v300
    %v1605 = vunpack.c.h.b16 %v300
    %v1606 = vunpack.c.l.b16 %v301
    %v1607 = vunpack.c.h.b16 %v301
    %v1608 = vunpack.c.l.b16 %v302
    %v1609 = vunpack.c.h.b16 %v302
    %v1610 = vunpack.c.l.b16 %v303
    %v1611 = vunpack.c.h.b16 %v303
    %v1612 = vunpack.c.l.b16 %v304
    %v1613 = vunpack.c.h.b16 %v304
    %v1614 = vunpack.c.l.b16 %v305
    %v1615 = vunpack.c.h.b16 %v305
    %v1616 = vunpack.c.l.b16 %v306
    %v1617 = vunpack.c.h.b16 %v306
    %v1618 = vunpack.c.l.b16 %v307
    %v1619 = vunpack.c.h.b16 %v307
    %v1620 = vunpack.c.l.b16 %v308
    %v1621 = vunpack.c.h.b16 %v308
    %v1622 = vunpack.c.l.b16 %v309
    %v1623 = vunpack.c.h.b16 %v309
    %v1624 = vunpack.c.l.b16 %v310
    %v1625 = vunpack.c.h.b16 %v310
    %v1626 = vunpack.c.l.b16 %v311
    %v1627 = vunpack.c.h.b16 %v311
    %v1628 = vunpack.c.l.b16 %v312
    %v1629 = vunpack.c.h.b16 %v312
    %v1630 = vunpack.c.l.b16 %v313
    %v1631 = vunpack.c.h.b16 %v313
    %v1632 = vunpack.c.l.b16 %v314
    %v1633 = vunpack.c.h.b16 %v314
    %v1634 = vunpack.c.l.b16 %v315
    %v1635 = vunpack.c.h.b16 %v315
    %v1636 = vunpack.c.l.b16 %v316
    %v1637 = vunpack.c.h.b16 %v316
    %v1638 = vunpack.c.l.b16 %v317
    %v1639 = vunpack.c.h.b16 %v317
    %v1640 = vunpack.c.l.b16 %v318
    %v1641 = vunpack.c.h.b16 %v318
    %v1642 = vunpack.c.l.b16 %v319
    %v1643 = vunpack.c.h.b16 %v319
    %v1644 = vunpack.c.l.b16 %v320
    %v1645 = vunpack.c.h.b16 %v320
    %v1646 = vunpack.c.l.b16 %v321
    %v1647 = vunpack.c.h.b16 %v321
    %v1648 = vunpack.c.l.b16 %v322
    %v1649 = vunpack.c.h.b16 %v322
    %v1650 = vunpack.c.l.b16 %v323
    %v1651 = vunpack.c.h.b16 %v323
    %v1652 = vunpack.c.l.b16 %v324
    %v1653 = vunpack.c.h.b16 %v324
    %v1654 = vunpack.c.l.b16 %v325
    %v1655 = vunpack.c.h.b16 %v325
    %v1656 = vunpack.c.l.b16 %v326
    %v1657 = vunpack.c.h.b16 %v326
    %v1658 = vunpack.c.l.b16 %v327
    %v1659 = vunpack.c.h.b16 %v327
    %v1660 = vunpack.c.l.b16 %v328
    %v1661 = vunpack.c.h.b16 %v328
    %v1662 = vunpack.c.l.b16 %v329
    %v1663 = vunpack.c.h.b16 %v329
    %v1664 = vunpack.c.l.b16 %v330
    %v1665 = vunpack.c.h.b16 %v330
    %v1666 = vunpack.c.l.b16 %v331
    %v1667 = vunpack.c.h.b16 %v331
    %v1668 = vunpack.c.l.b16 %v332
    %v1669 = vunpack.c.h.b16 %v332
    %v1670 = vunpack.c.l.b16 %v333
    %v1671 = vunpack.c.h.b16 %v333
    %v1672 = vunpack.c.l.b16 %v334
    %v1673 = vunpack.c.h.b16 %v334
    %v1674 = vunpack.c.l.b16 %v335
    %v1675 = vunpack.c.h.b16 %v335
    %v1676 = vunpack.c.l.b16 %v336
    %v1677 = vunpack.c.h.b16 %v336
    %v1678 = vunpack.c.l.b16 %v337
    %v1679 = vunpack.c.h.b16 %v337
    %v1680 = vunpack.c.l.b16 %v338
    %v1681 = vunpack.c.h.b16 %v338
    %v1682 = vunpack.c.l.b16 %v339
    %v1683 = vunpack.c.h.b16 %v339
    %v1684 = vunpack.c.l.b16 %v340
    %v1685 = vunpack.c.h.b16 %v340
    %v1686 = vunpack.c.l.b16 %v341
    %v1687 = vunpack.c.h.b16 %v341
    %v1688 = vunpack.c.l.b16 %v342
    %v1689 = vunpack.c.h.b16 %v342
    %v1690 = vunpack.c.l.b16 %v343
    %v1691 = vunpack.c.h.b16 %v343
    %v1692 = vunpack.c.l.b16 %v344
    %v1693 = vunpack.c.h.b16 %v344
    %v1694 = vunpack.c.l.b16 %v345
    %v1695 = vunpack.c.h.b16 %v345
    %v1696 = vunpack.c.l.b16 %v346
    %v1697 = vunpack.c.h.b16 %v346
    %v1698 = vunpack.c.l.b16 %v347
    %v1699 = vunpack.c.h.b16 %v347
    %v1700 = vunpack.c.l.b16 %v348
    %v1701 = vunpack.c.h.b16 %v348
    %v1702 = vunpack.c.l.b16 %v349
    %v1703 = vunpack.c.h.b16 %v349
    %v1704 = vunpack.c.l.b16 %v350
    %v1705 = vunpack.c.h.b16 %v350
    %v1706 = vunpack.c.l.b16 %v351
    %v1707 = vunpack.c.h.b16 %v351
    %v1708 = vunpack.c.l.b16 %v352
    %v1709 = vunpack.c.h.b16 %v352
    %v1710 = vunpack.c.l.b16 %v353
    %v1711 = vunpack.c.h.b16 %v353
    %v1712 = vunpack.c.l.b16 %v354
    %v1713 = vunpack.c.h.b16 %v354
    %v1714 = vunpack.c.l.b16 %v355
    %v1715 = vunpack.c.h.b16 %v355
    %v1716 = vunpack.c.l.b16 %v356
    %v1717 = vunpack.c.h.b16 %v356
    %v1718 = vunpack.c.l.b16 %v357
    %v1719 = vunpack.c.h.b16 %v357
    %v1720 = vunpack.c.l.b16 %v358
    %v1721 = vunpack.c.h.b16 %v358
    %v1722 = vunpack.c.l.b16 %v359
    %v1723 = vunpack.c.h.b16 %v359
    %v1724 = vunpack.c.l.b16 %v360
    %v1725 = vunpack.c.h.b16 %v360
    %v1726 = vunpack.c.l.b16 %v361
    %v1727 = vunpack.c.h.b16 %v361
    %v1728 = vunpack.c.l.b16 %v362
    %v1729 = vunpack.c.h.b16 %v362
    %v1730 = vunpack.c.l.b16 %v363
    %v1731 = vunpack.c.h.b16 %v363
    %v1732 = vunpack.c.l.b16 %v364
    %v1733 = vunpack.c.h.b16 %v364
    %v1734 = vunpack.c.l.b16 %v365
    %v1735 = vunpack.c.h.b16 %v365
    %v1736 = vunpack.c.l.b16 %v366
    %v1737 = vunpack.c.h.b16 %v366
    %v1738 = vunpack.c.l.b16 %v367
    %v1739 = vunpack.c.h.b16 %v367
    %v1740 = vunpack.c.l.b16 %v368
    %v1741 = vunpack.c.h.b16 %v368
    %v1742 = vunpack.c.l.b16 %v369
    %v1743 = vunpack.c.h.b16 %v369
    %v1744 = vunpack.c.l.b16 %v370
    %v1745 = vunpack.c.h.b16 %v370
    %v1746 = vunpack.c.l.b16 %v371
    %v1747 = vunpack.c.h.b16 %v371
    %v1748 = vunpack.c.l.b16 %v372
    %v1749 = vunpack.c.h.b16 %v372
    %v1750 = vunpack.c.l.b16 %v373
    %v1751 = vunpack.c.h.b16 %v373
    %v1752 = vunpack.c.l.b16 %v374
    %v1753 = vunpack.c.h.b16 %v374
    %v1754 = vunpack.c.l.b16 %v375
    %v1755 = vunpack.c.h.b16 %v375
    %v1756 = vunpack.c.l.b16 %v376
    %v1757 = vunpack.c.h.b16 %v376
    %v1758 = vunpack.c.l.b16 %v377
    %v1759 = vunpack.c.h.b16 %v377
    %v1760 = vunpack.c.l.b16 %v378
    %v1761 = vunpack.c.h.b16 %v378
    %v1762 = vunpack.c.l.b16 %v379
    %v1763 = vunpack.c.h.b16 %v379
    %v1764 = vunpack.c.l.b16 %v380
    %v1765 = vunpack.c.h.b16 %v380
    %v1766 = vunpack.c.l.b16 %v381
    %v1767 = vunpack.c.h.b16 %v381
    %v1768 = vunpack.c.l.b16 %v382
    %v1769 = vunpack.c.h.b16 %v382
    %v1770 = vunpack.c.l.b16 %v383
    %v1771 = vunpack.c.h.b16 %v383
    %v1772 = vunpack.c.l.b16 %v384
    %v1773 = vunpack.c.h.b16 %v384
    %v1774 = vunpack.c.l.b16 %v385
    %v1775 = vunpack.c.h.b16 %v385
    %v1776 = vunpack.c.l.b16 %v386
    %v1777 = vunpack.c.h.b16 %v386
    %v1778 = vunpack.c.l.b16 %v387
    %v1779 = vunpack.c.h.b16 %v387
    %v1780 = vunpack.c.l.b16 %v388
    %v1781 = vunpack.c.h.b16 %v388
    %v1782 = vunpack.c.l.b16 %v389
    %v1783 = vunpack.c.h.b16 %v389
    %v1784 = vunpack.c.l.b16 %v390
    %v1785 = vunpack.c.h.b16 %v390
    %v1786 = vunpack.c.l.b16 %v391
    %v1787 = vunpack.c.h.b16 %v391
    %v1788 = vunpack.c.l.b16 %v392
    %v1789 = vunpack.c.h.b16 %v392
    %v1790 = vunpack.c.l.b16 %v393
    %v1791 = vunpack.c.h.b16 %v393
    %v1792 = vunpack.c.l.b16 %v394
    %v1793 = vunpack.c.h.b16 %v394
    %v1794 = vunpack.c.l.b16 %v395
    %v1795 = vunpack.c.h.b16 %v395
    %v1796 = vunpack.c.l.b16 %v396
    %v1797 = vunpack.c.h.b16 %v396
    %v1798 = vunpack.c.l.b16 %v397
    %v1799 = vunpack.c.h.b16 %v397
    %v1800 = vunpack.c.l.b16 %v398
    %v1801 = vunpack.c.h.b16 %v398
    %v1802 = vunpack.c.l.b16 %v399
    %v1803 = vunpack.c.h.b16 %v399
    %v1804 = vunpack.c.l.b16 %v400
    %v1805 = vunpack.c.h.b16 %v400
    %v1806 = vunpack.c.l.b16 %v401
    %v1807 = vunpack.c.h.b16 %v401
    %v1808 = vunpack.c.l.b16 %v402
    %v1809 = vunpack.c.h.b16 %v402
    %v1810 = vunpack.c.l.b16 %v403
    %v1811 = vunpack.c.h.b16 %v403
    %v1812 = vunpack.c.l.b16 %v404
    %v1813 = vunpack.c.h.b16 %v404
    %v1814 = vunpack.c.l.b16 %v405
    %v1815 = vunpack.c.h.b16 %v405
    %v1816 = vunpack.c.l.b16 %v406
    %v1817 = vunpack.c.h.b16 %v406
    %v1818 = vunpack.c.l.b16 %v407
    %v1819 = vunpack.c.h.b16 %v407
    %v1820 = vunpack.c.l.b16 %v408
    %v1821 = vunpack.c.h.b16 %v408
    %v1822 = vunpack.c.l.b16 %v409
    %v1823 = vunpack.c.h.b16 %v409
    %v1824 = vunpack.c.l.b16 %v410
    %v1825 = vunpack.c.h.b16 %v410
    %v1826 = vunpack.c.l.b16 %v411
    %v1827 = vunpack.c.h.b16 %v411
    %v1828 = vunpack.c.l.b16 %v412
    %v1829 = vunpack.c.h.b16 %v412
    %v1830 = vunpack.c.l.b16 %v413
    %v1831 = vunpack.c.h.b16 %v413
    %v1832 = vunpack.c.l.b16 %v414
    %v1833 = vunpack.c.h.b16 %v414
    %v1834 = vunpack.c.l.b16 %v415
    %v1835 = vunpack.c.h.b16 %v415
    %v1836 = vunpack.c.l.b16 %v416
    %v1837 = vunpack.c.h.b16 %v416
    %v1838 = vunpack.c.l.b16 %v417
    %v1839 = vunpack.c.h.b16 %v417
    %v1840 = vunpack.c.l.b16 %v418
    %v1841 = vunpack.c.h.b16 %v418
    %v1842 = vunpack.c.l.b16 %v419
    %v1843 = vunpack.c.h.b16 %v419
    %v1844 = vunpack.c.l.b16 %v420
    %v1845 = vunpack.c.h.b16 %v420
    %v1846 = vunpack.c.l.b16 %v421
    %v1847 = vunpack.c.h.b16 %v421
    %v1848 = vunpack.c.l.b16 %v422
    %v1849 = vunpack.c.h.b16 %v422
    %v1850 = vunpack.c.l.b16 %v423
    %v1851 = vunpack.c.h.b16 %v423
    %v1852 = vunpack.c.l.b16 %v424
    %v1853 = vunpack.c.h.b16 %v424
    %v1854 = vunpack.c.l.b16 %v425
    %v1855 = vunpack.c.h.b16 %v425
    %v1856 = vunpack.c.l.b16 %v426
    %v1857 = vunpack.c.h.b16 %v426
    %v1858 = vunpack.c.l.b16 %v427
    %v1859 = vunpack.c.h.b16 %v427
    %v1860 = vunpack.c.l.b16 %v428
    %v1861 = vunpack.c.h.b16 %v428
    %v1862 = vunpack.c.l.b16 %v429
    %v1863 = vunpack.c.h.b16 %v429
    %v1864 = vunpack.c.l.b16 %v430
    %v1865 = vunpack.c.h.b16 %v430
    %v1866 = vunpack.c.l.b16 %v431
    %v1867 = vunpack.c.h.b16 %v431
    %v1868 = vunpack.c.l.b16 %v432
    %v1869 = vunpack.c.h.b16 %v432
    %v1870 = vunpack.c.l.b16 %v433
    %v1871 = vunpack.c.h.b16 %v433
    %v1872 = vunpack.c.l.b16 %v434
    %v1873 = vunpack.c.h.b16 %v434
    %v1874 = vunpack.c.l.b16 %v435
    %v1875 = vunpack.c.h.b16 %v435
    %v1876 = vunpack.c.l.b16 %v436
    %v1877 = vunpack.c.h.b16 %v436
    %v1878 = vunpack.c.l.b16 %v437
    %v1879 = vunpack.c.h.b16 %v437
    %v1880 = vunpack.c.l.b16 %v438
    %v1881 = vunpack.c.h.b16 %v438
    %v1882 = vunpack.c.l.b16 %v439
    %v1883 = vunpack.c.h.b16 %v439
    %v1884 = vunpack.c.l.b16 %v440
    %v1885 = vunpack.c.h.b16 %v440
    %v1886 = vunpack.c.l.b16 %v441
    %v1887 = vunpack.c.h.b16 %v441
    %v1888 = vunpack.c.l.b16 %v442
    %v1889 = vunpack.c.h.b16 %v442
    %v1890 = vunpack.c.l.b16 %v443
    %v1891 = vunpack.c.h.b16 %v443
    %v1892 = vunpack.c.l.b16 %v444
    %v1893 = vunpack.c.h.b16 %v444
    %v1894 = vunpack.c.l.b16 %v445
    %v1895 = vunpack.c.h.b16 %v445
    %v1896 = vunpack.c.l.b16 %v446
    %v1897 = vunpack.c.h.b16 %v446
    %v1898 = vunpack.c.l.b16 %v447
    %v1899 = vunpack.c.h.b16 %v447
    %v1900 = vunpack.c.l.b16 %v448
    %v1901 = vunpack.c.h.b16 %v448
    %v1902 = vunpack.c.l.b16 %v449
    %v1903 = vunpack.c.h.b16 %v449
    %v1904 = vunpack.c.l.b16 %v450
    %v1905 = vunpack.c.h.b16 %v450
    %v1906 = vunpack.c.l.b16 %v451
    %v1907 = vunpack.c.h.b16 %v451
    %v1908 = vunpack.c.l.b16 %v452
    %v1909 = vunpack.c.h.b16 %v452
    %v1910 = vunpack.c.l.b16 %v453
    %v1911 = vunpack.c.h.b16 %v453
    %v1912 = vunpack.c.l.b16 %v454
    %v1913 = vunpack.c.h.b16 %v454
    %v1914 = vunpack.c.l.b16 %v455
    %v1915 = vunpack.c.h.b16 %v455
    %v1916 = vunpack.c.l.b16 %v456
    %v1917 = vunpack.c.h.b16 %v456
    %v1918 = vunpack.c.l.b16 %v457
    %v1919 = vunpack.c.h.b16 %v457
    %v1920 = vunpack.c.l.b16 %v458
    %v1921 = vunpack.c.h.b16 %v458
    %v1922 = vunpack.c.l.b16 %v459
    %v1923 = vunpack.c.h.b16 %v459
    %v1924 = vunpack.c.l.b16 %v460
    %v1925 = vunpack.c.h.b16 %v460
    %v1926 = vunpack.c.l.b16 %v461
    %v1927 = vunpack.c.h.b16 %v461
    %v1928 = vunpack.c.l.b16 %v462
    %v1929 = vunpack.c.h.b16 %v462
    %v1930 = vunpack.c.l.b16 %v463
    %v1931 = vunpack.c.h.b16 %v463
    %v1932 = vunpack.c.l.b16 %v464
    %v1933 = vunpack.c.h.b16 %v464
    %v1934 = vunpack.c.l.b16 %v465
    %v1935 = vunpack.c.h.b16 %v465
    %v1936 = vunpack.c.l.b16 %v466
    %v1937 = vunpack.c.h.b16 %v466
    %v1938 = vunpack.c.l.b16 %v467
    %v1939 = vunpack.c.h.b16 %v467
    %v1940 = vunpack.c.l.b16 %v468
    %v1941 = vunpack.c.h.b16 %v468
    %v1942 = vunpack.c.l.b16 %v469
    %v1943 = vunpack.c.h.b16 %v469
    %v1944 = vunpack.c.l.b16 %v470
    %v1945 = vunpack.c.h.b16 %v470
    %v1946 = vunpack.c.l.b16 %v471
    %v1947 = vunpack.c.h.b16 %v471
    %v1948 = vunpack.c.l.b16 %v472
    %v1949 = vunpack.c.h.b16 %v472
    %v1950 = vunpack.c.l.b16 %v473
    %v1951 = vunpack.c.h.b16 %v473
    %v1952 = vunpack.c.l.b16 %v474
    %v1953 = vunpack.c.h.b16 %v474
    %v1954 = vunpack.c.l.b16 %v475
    %v1955 = vunpack.c.h.b16 %v475
    %v1956 = vunpack.c.l.b16 %v476
    %v1957 = vunpack.c.h.b16 %v476
    %v1958 = vunpack.c.l.b16 %v477
    %v1959 = vunpack.c.h.b16 %v477
    %v1960 = vunpack.c.l.b16 %v478
    %v1961 = vunpack.c.h.b16 %v478
    %v1962 = vunpack.c.l.b16 %v479
    %v1963 = vunpack.c.h.b16 %v479
    %v1964 = vunpack.c.l.b16 %v480
    %v1965 = vunpack.c.h.b16 %v480
    %v1966 = vunpack.c.l.b16 %v481
    %v1967 = vunpack.c.h.b16 %v481
    %v1968 = vunpack.c.l.b16 %v482
    %v1969 = vunpack.c.h.b16 %v482
    %v1970 = vunpack.c.l.b16 %v483
    %v1971 = vunpack.c.h.b16 %v483
    %v1972 = vunpack.c.l.b16 %v484
    %v1973 = vunpack.c.h.b16 %v484
    %v1974 = vunpack.c.l.b16 %v485
    %v1975 = vunpack.c.h.b16 %v485
    %v1976 = vunpack.c.l.b16 %v486
    %v1977 = vunpack.c.h.b16 %v486
    %v1978 = vunpack.c.l.b16 %v487
    %v1979 = vunpack.c.h.b16 %v487
    %v1980 = vunpack.c.l.b16 %v488
    %v1981 = vunpack.c.h.b16 %v488
    %v1982 = vunpack.c.l.b16 %v489
    %v1983 = vunpack.c.h.b16 %v489
    %v1984 = vunpack.c.l.b16 %v490
    %v1985 = vunpack.c.h.b16 %v490
    %v1986 = vunpack.c.l.b16 %v491
    %v1987 = vunpack.c.h.b16 %v491
    %v1988 = vunpack.c.l.b16 %v492
    %v1989 = vunpack.c.h.b16 %v492
    %v1990 = vunpack.c.l.b16 %v493
    %v1991 = vunpack.c.h.b16 %v493
    %v1992 = vunpack.c.l.b16 %v494
    %v1993 = vunpack.c.h.b16 %v494
    %v1994 = vunpack.c.l.b16 %v495
    %v1995 = vunpack.c.h.b16 %v495
    %v1996 = vunpack.c.l.b16 %v496
    %v1997 = vunpack.c.h.b16 %v496
    %v1998 = vunpack.c.l.b16 %v497
    %v1999 = vunpack.c.h.b16 %v497
    %v2000 = vunpack.c.l.b16 %v498
    %v2001 = vunpack.c.h.b16 %v498
    %v2002 = vunpack.c.l.b16 %v499
    %v2003 = vunpack.c.h.b16 %v499
    %v2004 = vunpack.c.l.b16 %v500
    %v2005 = vunpack.c.h.b16 %v500
    %v2006 = vunpack.c.l.b16 %v501
    %v2007 = vunpack.c.h.b16 %v501
    %v2008 = vunpack.c.l.b16 %v502
    %v2009 = vunpack.c.h.b16 %v502
    %v2010 = vunpack.c.l.b16 %v503
    %v2011 = vunpack.c.h.b16 %v503
    %v2012 = vunpack.c.l.b16 %v504
    %v2013 = vunpack.c.h.b16 %v504
    %v2014 = vunpack.c.l.b16 %v505
    %v2015 = vunpack.c.h.b16 %v505
    %v2016 = vunpack.c.l.b16 %v506
    %v2017 = vunpack.c.h.b16 %v506
    %v2018 = vunpack.c.l.b16 %v507
    %v2019 = vunpack.c.h.b16 %v507
    %v2020 = vunpack.c.l.b16 %v508
    %v2021 = vunpack.c.h.b16 %v508
    %v2022 = vunpack.c.l.b16 %v509
    %v2023 = vunpack.c.h.b16 %v509
    %v2024 = vunpack.c.l.b16 %v510
    %v2025 = vunpack.c.h.b16 %v510
    %v2026 = vunpack.c.l.b16 %v511
    %v2027 = vunpack.c.h.b16 %v511
    %v2028 = vunpack.c.l.b16 %v512
    %v2029 = vunpack.c.h.b16 %v512
    %v2030 = vunpack.c.l.b16 %v513
    %v2031 = vunpack.c.h.b16 %v513
    %v2032 = vunpack.c.l.b16 %v514
    %v2033 = vunpack.c.h.b16 %v514
    %v2034 = vunpack.c.l.b16 %v515
    %v2035 = vunpack.c.h.b16 %v515
    %v2036 = vunpack.c.l.b16 %v516
    %v2037 = vunpack.c.h.b16 %v516
    %v2038 = vunpack.c.l.b16 %v517
    %v2039 = vunpack.c.h.b16 %v517
    %v2040 = vunpack.c.l.b16 %v518
    %v2041 = vunpack.c.h.b16 %v518
    %v2042 = vunpack.c.l.b16 %v519
    %v2043 = vunpack.c.h.b16 %v519
    %v2044 = vunpack.c.l.b16 %v520
    %v2045 = vunpack.c.h.b16 %v520
    %v2046 = vunpack.c.l.b16 %v521
    %v2047 = vunpack.c.h.b16 %v521
    %v2048 = vunpack.c.l.b16 %v522
    %v2049 = vunpack.c.h.b16 %v522
    %v2050 = vunpack.c.l.b16 %v523
    %v2051 = vunpack.c.h.b16 %v523
    %v2052 = vunpack.c.l.b16 %v524
    %v2053 = vunpack.c.h.b16 %v524
    %v2054 = vunpack.c.l.b16 %v525
    %v2055 = vunpack.c.h.b16 %v525
    %v2056 = vunpack.c.l.b16 %v526
    %v2057 = vunpack.c.h.b16 %v526
    %v2058 = vunpack.c.l.b16 %v527
    %v2059 = vunpack.c.h.b16 %v527
    %v2060 = vunpack.c.l.b16 %v528
    %v2061 = vunpack.c.h.b16 %v528
    %v2062 = vunpack.c.l.b16 %v529
    %v2063 = vunpack.c.h.b16 %v529
    %v2064 = vunpack.c.l.b16 %v530
    %v2065 = vunpack.c.h.b16 %v530
    %v2066 = vunpack.c.l.b16 %v531
    %v2067 = vunpack.c.h.b16 %v531
    %v2068 = vunpack.c.l.b16 %v532
    %v2069 = vunpack.c.h.b16 %v532
    %v2070 = vunpack.c.l.b16 %v533
    %v2071 = vunpack.c.h.b16 %v533
    %v2072 = vunpack.c.l.b16 %v534
    %v2073 = vunpack.c.h.b16 %v534
    %v2074 = vunpack.c.l.b16 %v535
    %v2075 = vunpack.c.h.b16 %v535
    %v2076 = vunpack.c.l.b16 %v536
    %v2077 = vunpack.c.h.b16 %v536
    %v2078 = vunpack.c.l.b16 %v537
    %v2079 = vunpack.c.h.b16 %v537
    %v2080 = vunpack.c.l.b16 %v538
    %v2081 = vunpack.c.h.b16 %v538
    %v2082 = vunpack.c.l.b16 %v539
    %v2083 = vunpack.c.h.b16 %v539
    %v2084 = vunpack.c.l.b16 %v540
    %v2085 = vunpack.c.h.b16 %v540
    %v2086 = vunpack.c.l.b16 %v541
    %v2087 = vunpack.c.h.b16 %v541
    %v2088 = vunpack.c.l.b16 %v542
    %v2089 = vunpack.c.h.b16 %v542
    %v2090 = vunpack.c.l.b16 %v543
    %v2091 = vunpack.c.h.b16 %v543
    %v2092 = vunpack.c.l.b16 %v544
    %v2093 = vunpack.c.h.b16 %v544
    %v2094 = vunpack.c.l.b16 %v545
    %v2095 = vunpack.c.h.b16 %v545
    %v2096 = vunpack.c.l.b16 %v546
    %v2097 = vunpack.c.h.b16 %v546
    %v2098 = vunpack.c.l.b16 %v547
    %v2099 = vunpack.c.h.b16 %v547
    %v2100 = vunpack.c.l.b16 %v548
    %v2101 = vunpack.c.h.b16 %v548
    %v2102 = vunpack.c.l.b16 %v549
    %v2103 = vunpack.c.h.b16 %v549
    %v2104 = vunpack.c.l.b16 %v550
    %v2105 = vunpack.c.h.b16 %v550
    %v2106 = vunpack.c.l.b16 %v551
    %v2107 = vunpack.c.h.b16 %v551
    %v2108 = vunpack.c.l.b16 %v552
    %v2109 = vunpack.c.h.b16 %v552
    %v2110 = vunpack.c.l.b16 %v553
    %v2111 = vunpack.c.h.b16 %v553
    %v2112 = vunpack.c.l.b16 %v554
    %v2113 = vunpack.c.h.b16 %v554
    %v2114 = vunpack.c.l.b16 %v555
    %v2115 = vunpack.c.h.b16 %v555
    %v2116 = vunpack.c.l.b16 %v556
    %v2117 = vunpack.c.h.b16 %v556
    %v2118 = vunpack.c.l.b16 %v557
    %v2119 = vunpack.c.h.b16 %v557
    %v2120 = vunpack.c.l.b16 %v558
    %v2121 = vunpack.c.h.b16 %v558
    %v2122 = vunpack.c.l.b16 %v559
    %v2123 = vunpack.c.h.b16 %v559
    %v2124 = vunpack.c.l.b16 %v560
    %v2125 = vunpack.c.h.b16 %v560
    %v2126 = vunpack.c.l.b16 %v561
    %v2127 = vunpack.c.h.b16 %v561
    %v2128 = vunpack.c.l.b16 %v562
    %v2129 = vunpack.c.h.b16 %v562
    %v2130 = vunpack.c.l.b16 %v563
    %v2131 = vunpack.c.h.b16 %v563
    %v2132 = vunpack.c.l.b16 %v564
    %v2133 = vunpack.c.h.b16 %v564
    %v2134 = vunpack.c.l.b16 %v565
    %v2135 = vunpack.c.h.b16 %v565
    %v2136 = vunpack.c.l.b16 %v566
    %v2137 = vunpack.c.h.b16 %v566
    %v2138 = vunpack.c.l.b16 %v567
    %v2139 = vunpack.c.h.b16 %v567
    %v2140 = vunpack.c.l.b16 %v568
    %v2141 = vunpack.c.h.b16 %v568
    %v2142 = vunpack.c.l.b16 %v569
    %v2143 = vunpack.c.h.b16 %v569
    %v2144 = vunpack.c.l.b16 %v570
    %v2145 = vunpack.c.h.b16 %v570
    %v2146 = vunpack.c.l.b16 %v571
    %v2147 = vunpack.c.h.b16 %v571
    %v2148 = vunpack.c.l.b16 %v572
    %v2149 = vunpack.c.h.b16 %v572
    %v2150 = vunpack.c.l.b16 %v573
    %v2151 = vunpack.c.h.b16 %v573
    %v2152 = vunpack.c.l.b16 %v574
    %v2153 = vunpack.c.h.b16 %v574
    %v2154 = vunpack.c.l.b16 %v575
    %v2155 = vunpack.c.h.b16 %v575
    %v2156 = vunpack.c.l.b16 %v576
    %v2157 = vunpack.c.h.b16 %v576
    %v2158 = vunpack.c.l.b16 %v577
    %v2159 = vunpack.c.h.b16 %v577
    %v2160 = vunpack.c.l.b16 %v578
    %v2161 = vunpack.c.h.b16 %v578
    %v2162 = vunpack.c.l.b16 %v579
    %v2163 = vunpack.c.h.b16 %v579
    %v2164 = vunpack.c.l.b16 %v580
    %v2165 = vunpack.c.h.b16 %v580
    %v2166 = vunpack.c.l.b16 %v581
    %v2167 = vunpack.c.h.b16 %v581
    %v2168 = vunpack.c.l.b16 %v582
    %v2169 = vunpack.c.h.b16 %v582
    %v2170 = vunpack.c.l.b16 %v583
    %v2171 = vunpack.c.h.b16 %v583
    %v2172 = vunpack.c.l.b16 %v584
    %v2173 = vunpack.c.h.b16 %v584
    %v2174 = vunpack.c.l.b16 %v585
    %v2175 = vunpack.c.h.b16 %v585
    %v2176 = vunpack.c.l.b16 %v586
    %v2177 = vunpack.c.h.b16 %v586
    %v2178 = vunpack.c.l.b16 %v587
    %v2179 = vunpack.c.h.b16 %v587
    %v2180 = vunpack.c.l.b16 %v588
    %v2181 = vunpack.c.h.b16 %v588
    %v2182 = vunpack.c.l.b16 %v589
    %v2183 = vunpack.c.h.b16 %v589
    %v2184 = vunpack.c.l.b16 %v590
    %v2185 = vunpack.c.h.b16 %v590
    %v2186 = vunpack.c.l.b16 %v591
    %v2187 = vunpack.c.h.b16 %v591
    %v2188 = vunpack.c.l.b16 %v592
    %v2189 = vunpack.c.h.b16 %v592
    %v2190 = vunpack.c.l.b16 %v593
    %v2191 = vunpack.c.h.b16 %v593
    %v2192 = vunpack.c.l.b16 %v594
    %v2193 = vunpack.c.h.b16 %v594
    %v2194 = vunpack.c.l.b16 %v595
    %v2195 = vunpack.c.h.b16 %v595
    %v2196 = vunpack.c.l.b16 %v596
    %v2197 = vunpack.c.h.b16 %v596
    %v2198 = vunpack.c.l.b16 %v597
    %v2199 = vunpack.c.h.b16 %v597
    %v2200 = vunpack.c.l.b16 %v598
    %v2201 = vunpack.c.h.b16 %v598
    %v2202 = vunpack.c.l.b16 %v599
    %v2203 = vunpack.c.h.b16 %v599
    %v2204 = vunpack.c.l.b16 %v600
    %v2205 = vunpack.c.h.b16 %v600
    %v2206 = vunpack.c.l.b16 %v601
    %v2207 = vunpack.c.h.b16 %v601
    %v2208 = vunpack.c.l.b16 %v602
    %v2209 = vunpack.c.h.b16 %v602
    %v2210 = vunpack.c.l.b16 %v603
    %v2211 = vunpack.c.h.b16 %v603
    %v2212 = vunpack.c.l.b16 %v604
    %v2213 = vunpack.c.h.b16 %v604
    %v2214 = vunpack.c.l.b16 %v605
    %v2215 = vunpack.c.h.b16 %v605
    %v2216 = vunpack.c.l.b16 %v606
    %v2217 = vunpack.c.h.b16 %v606
    %v2218 = vunpack.c.l.b16 %v607
    %v2219 = vunpack.c.h.b16 %v607
    %v2220 = vunpack.c.l.b16 %v608
    %v2221 = vunpack.c.h.b16 %v608
    %v2222 = vunpack.c.l.b16 %v609
    %v2223 = vunpack.c.h.b16 %v609
    %v2224 = vunpack.c.l.b16 %v610
    %v2225 = vunpack.c.h.b16 %v610
    %v2226 = vunpack.c.l.b16 %v611
    %v2227 = vunpack.c.h.b16 %v611
    %v2228 = vunpack.c.l.b16 %v612
    %v2229 = vunpack.c.h.b16 %v612
    %v2230 = vunpack.c.l.b16 %v613
    %v2231 = vunpack.c.h.b16 %v613
    %v2232 = vunpack.c.l.b16 %v614
    %v2233 = vunpack.c.h.b16 %v614
    %v2234 = vunpack.c.l.b16 %v615
    %v2235 = vunpack.c.h.b16 %v615
    %v2236 = vunpack.c.l.b16 %v616
    %v2237 = vunpack.c.h.b16 %v616
    %v2238 = vunpack.c.l.b16 %v617
    %v2239 = vunpack.c.h.b16 %v617
    %v2240 = vunpack.c.l.b16 %v618
    %v2241 = vunpack.c.h.b16 %v618
    %v2242 = vunpack.c.l.b16 %v619
    %v2243 = vunpack.c.h.b16 %v619
    %v2244 = vunpack.c.l.b16 %v620
    %v2245 = vunpack.c.h.b16 %v620
    %v2246 = vunpack.c.l.b16 %v621
    %v2247 = vunpack.c.h.b16 %v621
    %v2248 = vunpack.c.l.b16 %v622
    %v2249 = vunpack.c.h.b16 %v622
    %v2250 = vunpack.c.l.b16 %v623
    %v2251 = vunpack.c.h.b16 %v623
    %v2252 = vunpack.c.l.b16 %v624
    %v2253 = vunpack.c.h.b16 %v624
    %v2254 = vunpack.c.l.b16 %v625
    %v2255 = vunpack.c.h.b16 %v625
    %v2256 = vunpack.c.l.b16 %v626
    %v2257 = vunpack.c.h.b16 %v626
    %v2258 = vunpack.c.l.b16 %v627
    %v2259 = vunpack.c.h.b16 %v627
    %v2260 = vunpack.c.l.b16 %v628
    %v2261 = vunpack.c.h.b16 %v628
    %v2262 = vunpack.c.l.b16 %v629
    %v2263 = vunpack.c.h.b16 %v629
    %v2264 = vunpack.c.l.b16 %v630
    %v2265 = vunpack.c.h.b16 %v630
    %v2266 = vunpack.c.l.b16 %v631
    %v2267 = vunpack.c.h.b16 %v631
    %v2268 = vunpack.c.l.b16 %v632
    %v2269 = vunpack.c.h.b16 %v632
    %v2270 = vunpack.c.l.b16 %v633
    %v2271 = vunpack.c.h.b16 %v633
    %v2272 = vunpack.c.l.b16 %v634
    %v2273 = vunpack.c.h.b16 %v634
    %v2274 = vunpack.c.l.b16 %v635
    %v2275 = vunpack.c.h.b16 %v635
    %v2276 = vunpack.c.l.b16 %v636
    %v2277 = vunpack.c.h.b16 %v636
    %v2278 = vunpack.c.l.b16 %v637
    %v2279 = vunpack.c.h.b16 %v637
    %v2280 = vunpack.c.l.b16 %v638
    %v2281 = vunpack.c.h.b16 %v638
    %v2282 = vunpack.c.l.b16 %v639
    %v2283 = vunpack.c.h.b16 %v639
    %v2284 = vunpack.c.l.b16 %v640
    %v2285 = vunpack.c.h.b16 %v640
    %v2286 = vunpack.c.l.b16 %v641
    %v2287 = vunpack.c.h.b16 %v641
    %v2288 = vunpack.c.l.b16 %v642
    %v2289 = vunpack.c.h.b16 %v642
    %v2290 = vunpack.c.l.b16 %v643
    %v2291 = vunpack.c.h.b16 %v643
    %v2292 = vunpack.c.l.b16 %v644
    %v2293 = vunpack.c.h.b16 %v644
    %v2294 = vunpack.c.l.b16 %v645
    %v2295 = vunpack.c.h.b16 %v645
    %v2296 = vunpack.c.l.b16 %v646
    %v2297 = vunpack.c.h.b16 %v646
    %v2298 = vunpack.c.l.b16 %v647
    %v2299 = vunpack.c.h.b16 %v647
    %v2300 = vunpack.c.l.b16 %v648
    %v2301 = vunpack.c.h.b16 %v648
    %v2302 = vunpack.c.l.b16 %v649
    %v2303 = vunpack.c.h.b16 %v649
    %v2304 = vunpack.c.l.b16 %v650
    %v2305 = vunpack.c.h.b16 %v650
    %v2306 = vunpack.c.l.b16 %v651
    %v2307 = vunpack.c.h.b16 %v651
    %v2308 = vunpack.c.l.b16 %v652
    %v2309 = vunpack.c.h.b16 %v652
    %v2310 = vunpack.c.l.b16 %v653
    %v2311 = vunpack.c.h.b16 %v653
    %v2312 = vunpack.c.l.b16 %v654
    %v2313 = vunpack.c.h.b16 %v654
    %v2314 = vunpack.c.l.b16 %v655
    %v2315 = vunpack.c.h.b16 %v655
    %v2316 = vunpack.c.l.b16 %v656
    %v2317 = vunpack.c.h.b16 %v656
    %v2318 = vunpack.c.l.b16 %v657
    %v2319 = vunpack.c.h.b16 %v657
    %v2320 = vunpack.c.l.b16 %v658
    %v2321 = vunpack.c.h.b16 %v658
    %v2322 = vunpack.c.l.b16 %v659
    %v2323 = vunpack.c.h.b16 %v659
    %v2324 = vunpack.c.l.b16 %v660
    %v2325 = vunpack.c.h.b16 %v660
    %v2326 = vunpack.c.l.b16 %v661
    %v2327 = vunpack.c.h.b16 %v661
    %v2328 = vunpack.c.l.b16 %v662
    %v2329 = vunpack.c.h.b16 %v662
    %v2330 = vunpack.c.l.b16 %v663
    %v2331 = vunpack.c.h.b16 %v663
    %v2332 = vunpack.c.l.b16 %v664
    %v2333 = vunpack.c.h.b16 %v664
    %v2334 = vunpack.c.l.b16 %v665
    %v2335 = vunpack.c.h.b16 %v665
    %v2336 = vunpack.c.l.b16 %v666
    %v2337 = vunpack.c.h.b16 %v666
    %v2338 = vunpack.c.l.b16 %v667
    %v2339 = vunpack.c.h.b16 %v667
    %v2340 = vunpack.c.l.b16 %v668
    %v2341 = vunpack.c.h.b16 %v668
    %v2342 = vunpack.c.l.b16 %v669
    %v2343 = vunpack.c.h.b16 %v669
    %v2344 = vunpack.c.l.b16 %v670
    %v2345 = vunpack.c.h.b16 %v670
    %v2346 = vunpack.c.l.b16 %v671
    %v2347 = vunpack.c.h.b16 %v671
    %v2348 = vunpack.c.l.b16 %v672
    %v2349 = vunpack.c.h.b16 %v672
    %v2350 = vunpack.c.l.b16 %v673
    %v2351 = vunpack.c.h.b16 %v673
    %v2352 = vunpack.c.l.b16 %v674
    %v2353 = vunpack.c.h.b16 %v674
    %v2354 = vunpack.c.l.b16 %v675
    %v2355 = vunpack.c.h.b16 %v675
    %v2356 = vunpack.c.l.b16 %v676
    %v2357 = vunpack.c.h.b16 %v676
    %v2358 = vunpack.c.l.b16 %v677
    %v2359 = vunpack.c.h.b16 %v677
    %v2360 = vunpack.c.l.b16 %v678
    %v2361 = vunpack.c.h.b16 %v678
    %v2362 = vunpack.c.l.b16 %v679
    %v2363 = vunpack.c.h.b16 %v679
    %v2364 = vunpack.c.l.b16 %v680
    %v2365 = vunpack.c.h.b16 %v680
    %v2366 = vunpack.c.l.b16 %v681
    %v2367 = vunpack.c.h.b16 %v681
    %v2368 = vunpack.c.l.b16 %v682
    %v2369 = vunpack.c.h.b16 %v682
    %v2370 = vunpack.c.l.b16 %v683
    %v2371 = vunpack.c.h.b16 %v683
    %v2372 = vunpack.c.l.b16 %v684
    %v2373 = vunpack.c.h.b16 %v684
    %v2374 = vunpack.c.l.b16 %v685
    %v2375 = vunpack.c.h.b16 %v685
    %v2376 = vunpack.c.l.b16 %v686
    %v2377 = vunpack.c.h.b16 %v686
    %v2378 = vunpack.c.l.b16 %v687
    %v2379 = vunpack.c.h.b16 %v687
    %v2380 = vunpack.c.l.b16 %v688
    %v2381 = vunpack.c.h.b16 %v688
    %v2382 = vunpack.c.l.b16 %v689
    %v2383 = vunpack.c.h.b16 %v689
    %v2384 = vunpack.c.l.b16 %v690
    %v2385 = vunpack.c.h.b16 %v690
    %v2386 = vunpack.c.l.b16 %v691
    %v2387 = vunpack.c.h.b16 %v691
    %v2388 = vunpack.c.l.b16 %v692
    %v2389 = vunpack.c.h.b16 %v692
    %v2390 = vunpack.c.l.b16 %v693
    %v2391 = vunpack.c.h.b16 %v693
    %v2392 = vunpack.c.l.b16 %v694
    %v2393 = vunpack.c.h.b16 %v694
    %v2394 = vunpack.c.l.b16 %v695
    %v2395 = vunpack.c.h.b16 %v695
    %v2396 = vunpack.c.l.b16 %v696
    %v2397 = vunpack.c.h.b16 %v696
    %v2398 = vunpack.c.l.b16 %v697
    %v2399 = vunpack.c.h.b16 %v697
    %v2400 = vunpack.c.l.b16 %v698
    %v2401 = vunpack.c.h.b16 %v698
    %v2402 = vunpack.c.l.b16 %v699
    %v2403 = vunpack.c.h.b16 %v699
    %v2404 = vunpack.c.l.b16 %v700
    %v2405 = vunpack.c.h.b16 %v700
    %v2406 = vunpack.c.l.b16 %v701
    %v2407 = vunpack.c.h.b16 %v701
    %v2408 = vunpack.c.l.b16 %v702
    %v2409 = vunpack.c.h.b16 %v702
    %v2410 = vunpack.c.l.b16 %v703
    %v2411 = vunpack.c.h.b16 %v703
    %v2412 = vunpack.c.l.b16 %v704
    %v2413 = vunpack.c.h.b16 %v704
    %v2414 = vunpack.c.l.b16 %v705
    %v2415 = vunpack.c.h.b16 %v705
    %v2416 = vunpack.c.l.b16 %v706
    %v2417 = vunpack.c.h.b16 %v706
    %v2418 = vunpack.c.l.b16 %v707
    %v2419 = vunpack.c.h.b16 %v707
    %v2420 = vunpack.c.l.b16 %v708
    %v2421 = vunpack.c.h.b16 %v708
    %v2422 = vunpack.c.l.b16 %v709
    %v2423 = vunpack.c.h.b16 %v709
    %v2424 = vunpack.c.l.b16 %v710
    %v2425 = vunpack.c.h.b16 %v710
    %v2426 = vunpack.c.l.b16 %v711
    %v2427 = vunpack.c.h.b16 %v711
    %v2428 = vunpack.c.l.b16 %v712
    %v2429 = vunpack.c.h.b16 %v712
    %v2430 = vunpack.c.l.b16 %v713
    %v2431 = vunpack.c.h.b16 %v713
    %v2432 = vunpack.c.l.b16 %v714
    %v2433 = vunpack.c.h.b16 %v714
    %v2434 = vunpack.c.l.b16 %v715
    %v2435 = vunpack.c.h.b16 %v715
    %v2436 = vunpack.c.l.b16 %v716
    %v2437 = vunpack.c.h.b16 %v716
    %v2438 = vunpack.c.l.b16 %v717
    %v2439 = vunpack.c.h.b16 %v717
    %v2440 = vunpack.c.l.b16 %v718
    %v2441 = vunpack.c.h.b16 %v718
    %v2442 = vunpack.c.l.b16 %v719
    %v2443 = vunpack.c.h.b16 %v719
    %v2444 = vunpack.c.l.b16 %v720
    %v2445 = vunpack.c.h.b16 %v720
    %v2446 = vunpack.c.l.b16 %v721
    %v2447 = vunpack.c.h.b16 %v721
    %v2448 = vunpack.c.l.b16 %v722
    %v2449 = vunpack.c.h.b16 %v722
    %v2450 = vunpack.c.l.b16 %v723
    %v2451 = vunpack.c.h.b16 %v723
    %v2452 = vunpack.c.l.b16 %v724
    %v2453 = vunpack.c.h.b16 %v724
    %v2454 = vunpack.c.l.b16 %v725
    %v2455 = vunpack.c.h.b16 %v725
    %v2456 = vunpack.c.l.b16 %v726
    %v2457 = vunpack.c.h.b16 %v726
    %v2458 = vunpack.c.l.b16 %v727
    %v2459 = vunpack.c.h.b16 %v727
    %v2460 = vunpack.c.l.b16 %v728
    %v2461 = vunpack.c.h.b16 %v728
    %v2462 = vunpack.c.l.b16 %v729
    %v2463 = vunpack.c.h.b16 %v729
    %v2464 = vunpack.c.l.b16 %v730
    %v2465 = vunpack.c.h.b16 %v730
    %v2466 = vunpack.c.l.b16 %v731
    %v2467 = vunpack.c.h.b16 %v731
    %v2468 = vunpack.c.l.b16 %v732
    %v2469 = vunpack.c.h.b16 %v732
    %v2470 = vunpack.c.l.b16 %v733
    %v2471 = vunpack.c.h.b16 %v733
    %v2472 = vunpack.c.l.b16 %v734
    %v2473 = vunpack.c.h.b16 %v734
    %v2474 = vunpack.c.l.b16 %v735
    %v2475 = vunpack.c.h.b16 %v735
    %v2476 = vunpack.c.l.b16 %v736
    %v2477 = vunpack.c.h.b16 %v736
    %v2478 = vunpack.c.l.b16 %v737
    %v2479 = vunpack.c.h.b16 %v737
    %v2480 = vunpack.c.l.b16 %v738
    %v2481 = vunpack.c.h.b16 %v738
    %v2482 = vunpack.c.l.b16 %v739
    %v2483 = vunpack.c.h.b16 %v739
    %v2484 = vunpack.c.l.b16 %v740
    %v2485 = vunpack.c.h.b16 %v740
    %v2486 = vunpack.c.l.b16 %v741
    %v2487 = vunpack.c.h.b16 %v741
    %v2488 = vunpack.c.l.b16 %v742
    %v2489 = vunpack.c.h.b16 %v742
    %v2490 = vunpack.c.l.b16 %v743
    %v2491 = vunpack.c.h.b16 %v743
    %v2492 = vunpack.c.l.b16 %v744
    %v2493 = vunpack.c.h.b16 %v744
    %v2494 = vunpack.c.l.b16 %v745
    %v2495 = vunpack.c.h.b16 %v745
    %v2496 = vpack.c.b16 %v1348, %v1344
    %v2497 = vpack.c.b16 %v1349, %v1345
    %v2498 = vpack.c.b16 %v1350, %v1346
    %v2499 = vpack.c.b16 %v1351, %v1347
    %v2500 = vpack.c.b16 %v1356, %v1352
    %v2501 = vpack.c.b16 %v1357, %v1353
    %v2502 = vpack.c.b16 %v1358, %v1354
    %v2503 = vpack.c.b16 %v1359, %v1355
    %v2504 = vpack.c.b16 %v1364, %v1360
    %v2505 = vpack.c.b16 %v1365, %v1361
    %v2506 = vpack.c.b16 %v1366, %v1362
    %v2507 = vpack.c.b16 %v1367, %v1363
    %v2508 = vpack.c.b16 %v1372, %v1368
    %v2509 = vpack.c.b16 %v1373, %v1369
    %v2510 = vpack.c.b16 %v1374, %v1370
    %v2511 = vpack.c.b16 %v1375, %v1371
    %v2512 = vpack.c.b16 %v1380, %v1376
    %v2513 = vpack.c.b16 %v1381, %v1377
    %v2514 = vpack.c.b16 %v1382, %v1378
    %v2515 = vpack.c.b16 %v1383, %v1379
    %v2516 = vpack.c.b16 %v1388, %v1384
    %v2517 = vpack.c.b16 %v1389, %v1385
    %v2518 = vpack.c.b16 %v1390, %v1386
    %v2519 = vpack.c.b16 %v1391, %v1387
    %v2520 = vpack.c.b16 %v1396, %v1392
    %v2521 = vpack.c.b16 %v1397, %v1393
    %v2522 = vpack.c.b16 %v1398, %v1394
    %v2523 = vpack.c.b16 %v1399, %v1395
    %v2524 = vpack.c.b16 %v1404, %v1400
    %v2525 = vpack.c.b16 %v1405, %v1401
    %v2526 = vpack.c.b16 %v1406, %v1402
    %v2527 = vpack.c.b16 %v1407, %v1403
    %v2528 = vpack.c.b16 %v1412, %v1408
    %v2529 = vpack.c.b16 %v1413, %v1409
    %v2530 = vpack.c.b16 %v1414, %v1410
    %v2531 = vpack.c.b16 %v1415, %v1411
    %v2532 = vpack.c.b16 %v1420, %v1416
    %v2533 = vpack.c.b16 %v1421, %v1417
    %v2534 = vpack.c.b16 %v1422, %v1418
    %v2535 = vpack.c.b16 %v1423, %v1419
    %v2536 = vpack.c.b16 %v1428, %v1424
    %v2537 = vpack.c.b16 %v1429, %v1425
    %v2538 = vpack.c.b16 %v1430, %v1426
    %v2539 = vpack.c.b16 %v1431, %v1427
    %v2540 = vpack.c.b16 %v1436, %v1432
    %v2541 = vpack.c.b16 %v1437, %v1433
    %v2542 = vpack.c.b16 %v1438, %v1434
    %v2543 = vpack.c.b16 %v1439, %v1435
    %v2544 = vpack.c.b16 %v1444, %v1440
    %v2545 = vpack.c.b16 %v1445, %v1441
    %v2546 = vpack.c.b16 %v1446, %v1442
    %v2547 = vpack.c.b16 %v1447, %v1443
    %v2548 = vpack.c.b16 %v1452, %v1448
    %v2549 = vpack.c.b16 %v1453, %v1449
    %v2550 = vpack.c.b16 %v1454, %v1450
    %v2551 = vpack.c.b16 %v1455, %v1451
    %v2552 = vpack.c.b16 %v1460, %v1456
    %v2553 = vpack.c.b16 %v1461, %v1457
    %v2554 = vpack.c.b16 %v1462, %v1458
    %v2555 = vpack.c.b16 %v1463, %v1459
    %v2556 = vpack.c.b16 %v1468, %v1464
    %v2557 = vpack.c.b16 %v1469, %v1465
    %v2558 = vpack.c.b16 %v1470, %v1466
    %v2559 = vpack.c.b16 %v1471, %v1467
    %v2560 = vpack.c.b16 %v1476, %v1472
    %v2561 = vpack.c.b16 %v1477, %v1473
    %v2562 = vpack.c.b16 %v1478, %v1474
    %v2563 = vpack.c.b16 %v1479, %v1475
    %v2564 = vpack.c.b16 %v1484, %v1480
    %v2565 = vpack.c.b16 %v1485, %v1481
    %v2566 = vpack.c.b16 %v1486, %v1482
    %v2567 = vpack.c.b16 %v1487, %v1483
    %v2568 = vpack.c.b16 %v1492, %v1488
    %v2569 = vpack.c.b16 %v1493, %v1489
    %v2570 = vpack.c.b16 %v1494, %v1490
    %v2571 = vpack.c.b16 %v1495, %v1491
    %v2572 = vpack.c.b16 %v1500, %v1496
    %v2573 = vpack.c.b16 %v1501, %v1497
    %v2574 = vpack.c.b16 %v1502, %v1498
    %v2575 = vpack.c.b16 %v1503, %v1499
    %v2576 = vpack.c.b16 %v1508, %v1504
    %v2577 = vpack.c.b16 %v1509, %v1505
    %v2578 = vpack.c.b16 %v1510, %v1506
    %v2579 = vpack.c.b16 %v1511, %v1507
    %v2580 = vpack.c.b16 %v1516, %v1512
    %v2581 = vpack.c.b16 %v1517, %v1513
    %v2582 = vpack.c.b16 %v1518, %v1514
    %v2583 = vpack.c.b16 %v1519, %v1515
    %v2584 = vpack.c.b16 %v1524, %v1520
    %v2585 = vpack.c.b16 %v1525, %v1521
    %v2586 = vpack.c.b16 %v1526, %v1522
    %v2587 = vpack.c.b16 %v1527, %v1523
    %v2588 = vpack.c.b16 %v1532, %v1528
    %v2589 = vpack.c.b16 %v1533, %v1529
    %v2590 = vpack.c.b16 %v1534, %v1530
    %v2591 = vpack.c.b16 %v1535, %v1531
    %v2592 = vpack.c.b16 %v1540, %v1536
    %v2593 = vpack.c.b16 %v1541, %v1537
    %v2594 = vpack.c.b16 %v1542, %v1538
    %v2595 = vpack.c.b16 %v1543, %v1539
    %v2596 = vpack.c.b16 %v1548, %v1544
    %v2597 = vpack.c.b16 %v1549, %v1545
    %v2598 = vpack.c.b16 %v1550, %v1546
    %v2599 = vpack.c.b16 %v1551, %v1547
    %v2600 = vpack.c.b16 %v1556, %v1552
    %v2601 = vpack.c.b16 %v1557, %v1553
    %v2602 = vpack.c.b16 %v1558, %v1554
    %v2603 = vpack.c.b16 %v1559, %v1555
    %v2604 = vpack.c.b16 %v1564, %v1560
    %v2605 = vpack.c.b16 %v1565, %v1561
    %v2606 = vpack.c.b16 %v1566, %v1562
    %v2607 = vpack.c.b16 %v1567, %v1563
    %v2608 = vpack.c.b16 %v1572, %v1568
    %v2609 = vpack.c.b16 %v1573, %v1569
    %v2610 = vpack.c.b16 %v1574, %v1570
    %v2611 = vpack.c.b16 %v1575, %v1571
    %v2612 = vpack.c.b16 %v1580, %v1576
    %v2613 = vpack.c.b16 %v1581, %v1577
    %v2614 = vpack.c.b16 %v1582, %v1578
    %v2615 = vpack.c.b16 %v1583, %v1579
    %v2616 = vpack.c.b16 %v1588, %v1584
    %v2617 = vpack.c.b16 %v1589, %v1585
    %v2618 = vpack.c.b16 %v1590, %v1586
    %v2619 = vpack.c.b16 %v1591, %v1587
    %v2620 = vpack.c.b16 %v1596, %v1592
    %v2621 = vpack.c.b16 %v1597, %v1593
    %v2622 = vpack.c.b16 %v1598, %v1594
    %v2623 = vpack.c.b16 %v1599, %v1595
    %v2624 = vpack.c.b16 %v1604, %v1600
    %v2625 = vpack.c.b16 %v1605, %v1601
    %v2626 = vpack.c.b16 %v1606, %v1602
    %v2627 = vpack.c.b16 %v1607, %v1603
    %v2628 = vpack.c.b16 %v1612, %v1608
    %v2629 = vpack.c.b16 %v1613, %v1609
    %v2630 = vpack.c.b16 %v1614, %v1610
    %v2631 = vpack.c.b16 %v1615, %v1611
    %v2632 = vpack.c.b16 %v1620, %v1616
    %v2633 = vpack.c.b16 %v1621, %v1617
    %v2634 = vpack.c.b16 %v1622, %v1618
    %v2635 = vpack.c.b16 %v1623, %v1619
    %v2636 = vpack.c.b16 %v1628, %v1624
    %v2637 = vpack.c.b16 %v1629, %v1625
    %v2638 = vpack.c.b16 %v1630, %v1626
    %v2639 = vpack.c.b16 %v1631, %v1627
    %v2640 = vpack.c.b16 %v1636, %v1632
    %v2641 = vpack.c.b16 %v1637, %v1633
    %v2642 = vpack.c.b16 %v1638, %v1634
    %v2643 = vpack.c.b16 %v1639, %v1635
    %v2644 = vpack.c.b16 %v1644, %v1640
    %v2645 = vpack.c.b16 %v1645, %v1641
    %v2646 = vpack.c.b16 %v1646, %v1642
    %v2647 = vpack.c.b16 %v1647, %v1643
    %v2648 = vpack.c.b16 %v1652, %v1648
    %v2649 = vpack.c.b16 %v1653, %v1649
    %v2650 = vpack.c.b16 %v1654, %v1650
    %v2651 = vpack.c.b16 %v1655, %v1651
    %v2652 = vpack.c.b16 %v1660, %v1656
    %v2653 = vpack.c.b16 %v1661, %v1657
    %v2654 = vpack.c.b16 %v1662, %v1658
    %v2655 = vpack.c.b16 %v1663, %v1659
    %v2656 = vpack.c.b16 %v1668, %v1664
    %v2657 = vpack.c.b16 %v1669, %v1665
    %v2658 = vpack.c.b16 %v1670, %v1666
    %v2659 = vpack.c.b16 %v1671, %v1667
    %v2660 = vpack.c.b16 %v1676, %v1672
    %v2661 = vpack.c.b16 %v1677, %v1673
    %v2662 = vpack.c.b16 %v1678, %v1674
    %v2663 = vpack.c.b16 %v1679, %v1675
    %v2664 = vpack.c.b16 %v1684, %v1680
    %v2665 = vpack.c.b16 %v1685, %v1681
    %v2666 = vpack.c.b16 %v1686, %v1682
    %v2667 = vpack.c.b16 %v1687, %v1683
    %v2668 = vpack.c.b16 %v1692, %v1688
    %v2669 = vpack.c.b16 %v1693, %v1689
    %v2670 = vpack.c.b16 %v1694, %v1690
    %v2671 = vpack.c.b16 %v1695, %v1691
    %v2672 = vpack.c.b16 %v1700, %v1696
    %v2673 = vpack.c.b16 %v1701, %v1697
    %v2674 = vpack.c.b16 %v1702, %v1698
    %v2675 = vpack.c.b16 %v1703, %v1699
    %v2676 = vpack.c.b16 %v1708, %v1704
    %v2677 = vpack.c.b16 %v1709, %v1705
    %v2678 = vpack.c.b16 %v1710, %v1706
    %v2679 = vpack.c.b16 %v1711, %v1707
    %v2680 = vpack.c.b16 %v1716, %v1712
    %v2681 = vpack.c.b16 %v1717, %v1713
    %v2682 = vpack.c.b16 %v1718, %v1714
    %v2683 = vpack.c.b16 %v1719, %v1715
    %v2684 = vpack.c.b16 %v1724, %v1720
    %v2685 = vpack.c.b16 %v1725, %v1721
    %v2686 = vpack.c.b16 %v1726, %v1722
    %v2687 = vpack.c.b16 %v1727, %v1723
    %v2688 = vpack.c.b16 %v1732, %v1728
    %v2689 = vpack.c.b16 %v1733, %v1729
    %v2690 = vpack.c.b16 %v1734, %v1730
    %v2691 = vpack.c.b16 %v1735, %v1731
    %v2692 = vpack.c.b16 %v1740, %v1736
    %v2693 = vpack.c.b16 %v1741, %v1737
    %v2694 = vpack.c.b16 %v1742, %v1738
    %v2695 = vpack.c.b16 %v1743, %v1739
    %v2696 = vpack.c.b16 %v1748, %v1744
    %v2697 = vpack.c.b16 %v1749, %v1745
    %v2698 = vpack.c.b16 %v1750, %v1746
    %v2699 = vpack.c.b16 %v1751, %v1747
    %v2700 = vpack.c.b16 %v1756, %v1752
    %v2701 = vpack.c.b16 %v1757, %v1753
    %v2702 = vpack.c.b16 %v1758, %v1754
    %v2703 = vpack.c.b16 %v1759, %v1755
    %v2704 = vpack.c.b16 %v1764, %v1760
    %v2705 = vpack.c.b16 %v1765, %v1761
    %v2706 = vpack.c.b16 %v1766, %v1762
    %v2707 = vpack.c.b16 %v1767, %v1763
    %v2708 = vpack.c.b16 %v1772, %v1768
    %v2709 = vpack.c.b16 %v1773, %v1769
    %v2710 = vpack.c.b16 %v1774, %v1770
    %v2711 = vpack.c.b16 %v1775, %v1771
    %v2712 = vpack.c.b16 %v1780, %v1776
    %v2713 = vpack.c.b16 %v1781, %v1777
    %v2714 = vpack.c.b16 %v1782, %v1778
    %v2715 = vpack.c.b16 %v1783, %v1779
    %v2716 = vpack.c.b16 %v1788, %v1784
    %v2717 = vpack.c.b16 %v1789, %v1785
    %v2718 = vpack.c.b16 %v1790, %v1786
    %v2719 = vpack.c.b16 %v1791, %v1787
    %v2720 = vpack.c.b16 %v1796, %v1792
    %v2721 = vpack.c.b16 %v1797, %v1793
    %v2722 = vpack.c.b16 %v1798, %v1794
    %v2723 = vpack.c.b16 %v1799, %v1795
    %v2724 = vpack.c.b16 %v1804, %v1800
    %v2725 = vpack.c.b16 %v1805, %v1801
    %v2726 = vpack.c.b16 %v1806, %v1802
    %v2727 = vpack.c.b16 %v1807, %v1803
    %v2728 = vpack.c.b16 %v1812, %v1808
    %v2729 = vpack.c.b16 %v1813, %v1809
    %v2730 = vpack.c.b16 %v1814, %v1810
    %v2731 = vpack.c.b16 %v1815, %v1811
    %v2732 = vpack.c.b16 %v1820, %v1816
    %v2733 = vpack.c.b16 %v1821, %v1817
    %v2734 = vpack.c.b16 %v1822, %v1818
    %v2735 = vpack.c.b16 %v1823, %v1819
    %v2736 = vpack.c.b16 %v1828, %v1824
    %v2737 = vpack.c.b16 %v1829, %v1825
    %v2738 = vpack.c.b16 %v1830, %v1826
    %v2739 = vpack.c.b16 %v1831, %v1827
    %v2740 = vpack.c.b16 %v1836, %v1832
    %v2741 = vpack.c.b16 %v1837, %v1833
    %v2742 = vpack.c.b16 %v1838, %v1834
    %v2743 = vpack.c.b16 %v1839, %v1835
    %v2744 = vpack.c.b16 %v1844, %v1840
    %v2745 = vpack.c.b16 %v1845, %v1841
    %v2746 = vpack.c.b16 %v1846, %v1842
    %v2747 = vpack.c.b16 %v1847, %v1843
    %v2748 = vpack.c.b16 %v1852, %v1848
    %v2749 = vpack.c.b16 %v1853, %v1849
    %v2750 = vpack.c.b16 %v1854, %v1850
    %v2751 = vpack.c.b16 %v1855, %v1851
    %v2752 = vpack.c.b16 %v1860, %v1856
    %v2753 = vpack.c.b16 %v1861, %v1857
    %v2754 = vpack.c.b16 %v1862, %v1858
    %v2755 = vpack.c.b16 %v1863, %v1859
    %v2756 = vpack.c.b16 %v1868, %v1864
    %v2757 = vpack.c.b16 %v1869, %v1865
    %v2758 = vpack.c.b16 %v1870, %v1866
    %v2759 = vpack.c.b16 %v1871, %v1867
    %v2760 = vpack.c.b16 %v1876, %v1872
    %v2761 = vpack.c.b16 %v1877, %v1873
    %v2762 = vpack.c.b16 %v1878, %v1874
    %v2763 = vpack.c.b16 %v1879, %v1875
    %v2764 = vpack.c.b16 %v1884, %v1880
    %v2765 = vpack.c.b16 %v1885, %v1881
    %v2766 = vpack.c.b16 %v1886, %v1882
    %v2767 = vpack.c.b16 %v1887, %v1883
    %v2768 = vpack.c.b16 %v1892, %v1888
    %v2769 = vpack.c.b16 %v1893, %v1889
    %v2770 = vpack.c.b16 %v1894, %v1890
    %v2771 = vpack.c.b16 %v1895, %v1891
    %v2772 = vpack.c.b16 %v1900, %v1896
    %v2773 = vpack.c.b16 %v1901, %v1897
    %v2774 = vpack.c.b16 %v1902, %v1898
    %v2775 = vpack.c.b16 %v1903, %v1899
    %v2776 = vpack.c.b16 %v1908, %v1904
    %v2777 = vpack.c.b16 %v1909, %v1905
    %v2778 = vpack.c.b16 %v1910, %v1906
    %v2779 = vpack.c.b16 %v1911, %v1907
    %v2780 = vpack.c.b16 %v1916, %v1912
    %v2781 = vpack.c.b16 %v1917, %v1913
    %v2782 = vpack.c.b16 %v1918, %v1914
    %v2783 = vpack.c.b16 %v1919, %v1915
    %v2784 = vpack.c.b16 %v1924, %v1920
    %v2785 = vpack.c.b16 %v1925, %v1921
    %v2786 = vpack.c.b16 %v1926, %v1922
    %v2787 = vpack.c.b16 %v1927, %v1923
    %v2788 = vpack.c.b16 %v1932, %v1928
    %v2789 = vpack.c.b16 %v1933, %v1929
    %v2790 = vpack.c.b16 %v1934, %v1930
    %v2791 = vpack.c.b16 %v1935, %v1931
    %v2792 = vpack.c.b16 %v1940, %v1936
    %v2793 = vpack.c.b16 %v1941, %v1937
    %v2794 = vpack.c.b16 %v1942, %v1938
    %v2795 = vpack.c.b16 %v1943, %v1939
    %v2796 = vpack.c.b16 %v1948, %v1944
    %v2797 = vpack.c.b16 %v1949, %v1945
    %v2798 = vpack.c.b16 %v1950, %v1946
    %v2799 = vpack.c.b16 %v1951, %v1947
    %v2800 = vpack.c.b16 %v1956, %v1952
    %v2801 = vpack.c.b16 %v1957, %v1953
    %v2802 = vpack.c.b16 %v1958, %v1954
    %v2803 = vpack.c.b16 %v1959, %v1955
    %v2804 = vpack.c.b16 %v1964, %v1960
    %v2805 = vpack.c.b16 %v1965, %v1961
    %v2806 = vpack.c.b16 %v1966, %v1962
    %v2807 = vpack.c.b16 %v1967, %v1963
    %v2808 = vpack.c.b16 %v1972, %v1968
    %v2809 = vpack.c.b16 %v1973, %v1969
    %v2810 = vpack.c.b16 %v1974, %v1970
    %v2811 = vpack.c.b16 %v1975, %v1971
    %v2812 = vpack.c.b16 %v1980, %v1976
    %v2813 = vpack.c.b16 %v1981, %v1977
    %v2814 = vpack.c.b16 %v1982, %v1978
    %v2815 = vpack.c.b16 %v1983, %v1979
    %v2816 = vpack.c.b16 %v1988, %v1984
    %v2817 = vpack.c.b16 %v1989, %v1985
    %v2818 = vpack.c.b16 %v1990, %v1986
    %v2819 = vpack.c.b16 %v1991, %v1987
    %v2820 = vpack.c.b16 %v1996, %v1992
    %v2821 = vpack.c.b16 %v1997, %v1993
    %v2822 = vpack.c.b16 %v1998, %v1994
    %v2823 = vpack.c.b16 %v1999, %v1995
    %v2824 = vpack.c.b16 %v2004, %v2000
    %v2825 = vpack.c.b16 %v2005, %v2001
    %v2826 = vpack.c.b16 %v2006, %v2002
    %v2827 = vpack.c.b16 %v2007, %v2003
    %v2828 = vpack.c.b16 %v2012, %v2008
    %v2829 = vpack.c.b16 %v2013, %v2009
    %v2830 = vpack.c.b16 %v2014, %v2010
    %v2831 = vpack.c.b16 %v2015, %v2011
    %v2832 = vpack.c.b16 %v2020, %v2016
    %v2833 = vpack.c.b16 %v2021, %v2017
    %v2834 = vpack.c.b16 %v2022, %v2018
    %v2835 = vpack.c.b16 %v2023, %v2019
    %v2836 = vpack.c.b16 %v2028, %v2024
    %v2837 = vpack.c.b16 %v2029, %v2025
    %v2838 = vpack.c.b16 %v2030, %v2026
    %v2839 = vpack.c.b16 %v2031, %v2027
    %v2840 = vpack.c.b16 %v2036, %v2032
    %v2841 = vpack.c.b16 %v2037, %v2033
    %v2842 = vpack.c.b16 %v2038, %v2034
    %v2843 = vpack.c.b16 %v2039, %v2035
    %v2844 = vpack.c.b16 %v2044, %v2040
    %v2845 = vpack.c.b16 %v2045, %v2041
    %v2846 = vpack.c.b16 %v2046, %v2042
    %v2847 = vpack.c.b16 %v2047, %v2043
    %v2848 = vpack.c.b16 %v2052, %v2048
    %v2849 = vpack.c.b16 %v2053, %v2049
    %v2850 = vpack.c.b16 %v2054, %v2050
    %v2851 = vpack.c.b16 %v2055, %v2051
    %v2852 = vpack.c.b16 %v2060, %v2056
    %v2853 = vpack.c.b16 %v2061, %v2057
    %v2854 = vpack.c.b16 %v2062, %v2058
    %v2855 = vpack.c.b16 %v2063, %v2059
    %v2856 = vpack.c.b16 %v2068, %v2064
    %v2857 = vpack.c.b16 %v2069, %v2065
    %v2858 = vpack.c.b16 %v2070, %v2066
    %v2859 = vpack.c.b16 %v2071, %v2067
    %v2860 = vpack.c.b16 %v2076, %v2072
    %v2861 = vpack.c.b16 %v2077, %v2073
    %v2862 = vpack.c.b16 %v2078, %v2074
    %v2863 = vpack.c.b16 %v2079, %v2075
    %v2864 = vpack.c.b16 %v2084, %v2080
    %v2865 = vpack.c.b16 %v2085, %v2081
    %v2866 = vpack.c.b16 %v2086, %v2082
    %v2867 = vpack.c.b16 %v2087, %v2083
    %v2868 = vpack.c.b16 %v2092, %v2088
    %v2869 = vpack.c.b16 %v2093, %v2089
    %v2870 = vpack.c.b16 %v2094, %v2090
    %v2871 = vpack.c.b16 %v2095, %v2091
    %v2872 = vpack.c.b16 %v2100, %v2096
    %v2873 = vpack.c.b16 %v2101, %v2097
    %v2874 = vpack.c.b16 %v2102, %v2098
    %v2875 = vpack.c.b16 %v2103, %v2099
    %v2876 = vpack.c.b16 %v2108, %v2104
    %v2877 = vpack.c.b16 %v2109, %v2105
    %v2878 = vpack.c.b16 %v2110, %v2106
    %v2879 = vpack.c.b16 %v2111, %v2107
    %v2880 = vpack.c.b16 %v2116, %v2112
    %v2881 = vpack.c.b16 %v2117, %v2113
    %v2882 = vpack.c.b16 %v2118, %v2114
    %v2883 = vpack.c.b16 %v2119, %v2115
    %v2884 = vpack.c.b16 %v2124, %v2120
    %v2885 = vpack.c.b16 %v2125, %v2121
    %v2886 = vpack.c.b16 %v2126, %v2122
    %v2887 = vpack.c.b16 %v2127, %v2123
    %v2888 = vpack.c.b16 %v2132, %v2128
    %v2889 = vpack.c.b16 %v2133, %v2129
    %v2890 = vpack.c.b16 %v2134, %v2130
    %v2891 = vpack.c.b16 %v2135, %v2131
    %v2892 = vpack.c.b16 %v2140, %v2136
    %v2893 = vpack.c.b16 %v2141, %v2137
    %v2894 = vpack.c.b16 %v2142, %v2138
    %v2895 = vpack.c.b16 %v2143, %v2139
    %v2896 = vpack.c.b16 %v2148, %v2144
    %v2897 = vpack.c.b16 %v2149, %v2145
    %v2898 = vpack.c.b16 %v2150, %v2146
    %v2899 = vpack.c.b16 %v2151, %v2147
    %v2900 = vpack.c.b16 %v2156, %v2152
    %v2901 = vpack.c.b16 %v2157, %v2153
    %v2902 = vpack.c.b16 %v2158, %v2154
    %v2903 = vpack.c.b16 %v2159, %v2155
    %v2904 = vpack.c.b16 %v2164, %v2160
    %v2905 = vpack.c.b16 %v2165, %v2161
    %v2906 = vpack.c.b16 %v2166, %v2162
    %v2907 = vpack.c.b16 %v2167, %v2163
    %v2908 = vpack.c.b16 %v2172, %v2168
    %v2909 = vpack.c.b16 %v2173, %v2169
    %v2910 = vpack.c.b16 %v2174, %v2170
    %v2911 = vpack.c.b16 %v2175, %v2171
    %v2912 = vpack.c.b16 %v2180, %v2176
    %v2913 = vpack.c.b16 %v2181, %v2177
    %v2914 = vpack.c.b16 %v2182, %v2178
    %v2915 = vpack.c.b16 %v2183, %v2179
    %v2916 = vpack.c.b16 %v2188, %v2184
    %v2917 = vpack.c.b16 %v2189, %v2185
    %v2918 = vpack.c.b16 %v2190, %v2186
    %v2919 = vpack.c.b16 %v2191, %v2187
    %v2920 = vpack.c.b16 %v2196, %v2192
    %v2921 = vpack.c.b16 %v2197, %v2193
    %v2922 = vpack.c.b16 %v2198, %v2194
    %v2923 = vpack.c.b16 %v2199, %v2195
    %v2924 = vpack.c.b16 %v2204, %v2200
    %v2925 = vpack.c.b16 %v2205, %v2201
    %v2926 = vpack.c.b16 %v2206, %v2202
    %v2927 = vpack.c.b16 %v2207, %v2203
    %v2928 = vpack.c.b16 %v2212, %v2208
    %v2929 = vpack.c.b16 %v2213, %v2209
    %v2930 = vpack.c.b16 %v2214, %v2210
    %v2931 = vpack.c.b16 %v2215, %v2211
    %v2932 = vpack.c.b16 %v2220, %v2216
    %v2933 = vpack.c.b16 %v2221, %v2217
    %v2934 = vpack.c.b16 %v2222, %v2218
    %v2935 = vpack.c.b16 %v2223, %v2219
    %v2936 = vpack.c.b16 %v2228, %v2224
    %v2937 = vpack.c.b16 %v2229, %v2225
    %v2938 = vpack.c.b16 %v2230, %v2226
    %v2939 = vpack.c.b16 %v2231, %v2227
    %v2940 = vpack.c.b16 %v2236, %v2232
    %v2941 = vpack.c.b16 %v2237, %v2233
    %v2942 = vpack.c.b16 %v2238, %v2234
    %v2943 = vpack.c.b16 %v2239, %v2235
    %v2944 = vpack.c.b16 %v2244, %v2240
    %v2945 = vpack.c.b16 %v2245, %v2241
    %v2946 = vpack.c.b16 %v2246, %v2242
    %v2947 = vpack.c.b16 %v2247, %v2243
    %v2948 = vpack.c.b16 %v2252, %v2248
    %v2949 = vpack.c.b16 %v2253, %v2249
    %v2950 = vpack.c.b16 %v2254, %v2250
    %v2951 = vpack.c.b16 %v2255, %v2251
    %v2952 = vpack.c.b16 %v2260, %v2256
    %v2953 = vpack.c.b16 %v2261, %v2257
    %v2954 = vpack.c.b16 %v2262, %v2258
    %v2955 = vpack.c.b16 %v2263, %v2259
    %v2956 = vpack.c.b16 %v2268, %v2264
    %v2957 = vpack.c.b16 %v2269, %v2265
    %v2958 = vpack.c.b16 %v2270, %v2266
    %v2959 = vpack.c.b16 %v2271, %v2267
    %v2960 = vpack.c.b16 %v2276, %v2272
    %v2961 = vpack.c.b16 %v2277, %v2273
    %v2962 = vpack.c.b16 %v2278, %v2274
    %v2963 = vpack.c.b16 %v2279, %v2275
    %v2964 = vpack.c.b16 %v2284, %v2280
    %v2965 = vpack.c.b16 %v2285, %v2281
    %v2966 = vpack.c.b16 %v2286, %v2282
    %v2967 = vpack.c.b16 %v2287, %v2283
    %v2968 = vpack.c.b16 %v2292, %v2288
    %v2969 = vpack.c.b16 %v2293, %v2289
    %v2970 = vpack.c.b16 %v2294, %v2290
    %v2971 = vpack.c.b16 %v2295, %v2291
    %v2972 = vpack.c.b16 %v2300, %v2296
    %v2973 = vpack.c.b16 %v2301, %v2297
    %v2974 = vpack.c.b16 %v2302, %v2298
    %v2975 = vpack.c.b16 %v2303, %v2299
    %v2976 = vpack.c.b16 %v2308, %v2304
    %v2977 = vpack.c.b16 %v2309, %v2305
    %v2978 = vpack.c.b16 %v2310, %v2306
    %v2979 = vpack.c.b16 %v2311, %v2307
    %v2980 = vpack.c.b16 %v2316, %v2312
    %v2981 = vpack.c.b16 %v2317, %v2313
    %v2982 = vpack.c.b16 %v2318, %v2314
    %v2983 = vpack.c.b16 %v2319, %v2315
    %v2984 = vpack.c.b16 %v2324, %v2320
    %v2985 = vpack.c.b16 %v2325, %v2321
    %v2986 = vpack.c.b16 %v2326, %v2322
    %v2987 = vpack.c.b16 %v2327, %v2323
    %v2988 = vpack.c.b16 %v2332, %v2328
    %v2989 = vpack.c.b16 %v2333, %v2329
    %v2990 = vpack.c.b16 %v2334, %v2330
    %v2991 = vpack.c.b16 %v2335, %v2331
    %v2992 = vpack.c.b16 %v2340, %v2336
    %v2993 = vpack.c.b16 %v2341, %v2337
    %v2994 = vpack.c.b16 %v2342, %v2338
    %v2995 = vpack.c.b16 %v2343, %v2339
    %v2996 = vpack.c.b16 %v2348, %v2344
    %v2997 = vpack.c.b16 %v2349, %v2345
    %v2998 = vpack.c.b16 %v2350, %v2346
    %v2999 = vpack.c.b16 %v2351, %v2347
    %v3000 = vpack.c.b16 %v2356, %v2352
    %v3001 = vpack.c.b16 %v2357, %v2353
    %v3002 = vpack.c.b16 %v2358, %v2354
    %v3003 = vpack.c.b16 %v2359, %v2355
    %v3004 = vpack.c.b16 %v2364, %v2360
    %v3005 = vpack.c.b16 %v2365, %v2361
    %v3006 = vpack.c.b16 %v2366, %v2362
    %v3007 = vpack.c.b16 %v2367, %v2363
    %v3008 = vpack.c.b16 %v2372, %v2368
    %v3009 = vpack.c.b16 %v2373, %v2369
    %v3010 = vpack.c.b16 %v2374, %v2370
    %v3011 = vpack.c.b16 %v2375, %v2371
    %v3012 = vpack.c.b16 %v2380, %v2376
    %v3013 = vpack.c.b16 %v2381, %v2377
    %v3014 = vpack.c.b16 %v2382, %v2378
    %v3015 = vpack.c.b16 %v2383, %v2379
    %v3016 = vpack.c.b16 %v2388, %v2384
    %v3017 = vpack.c.b16 %v2389, %v2385
    %v3018 = vpack.c.b16 %v2390, %v2386
    %v3019 = vpack.c.b16 %v2391, %v2387
    %v3020 = vpack.c.b16 %v2396, %v2392
    %v3021 = vpack.c.b16 %v2397, %v2393
    %v3022 = vpack.c.b16 %v2398, %v2394
    %v3023 = vpack.c.b16 %v2399, %v2395
    %v3024 = vpack.c.b16 %v2404, %v2400
    %v3025 = vpack.c.b16 %v2405, %v2401
    %v3026 = vpack.c.b16 %v2406, %v2402
    %v3027 = vpack.c.b16 %v2407, %v2403
    %v3028 = vpack.c.b16 %v2412, %v2408
    %v3029 = vpack.c.b16 %v2413, %v2409
    %v3030 = vpack.c.b16 %v2414, %v2410
    %v3031 = vpack.c.b16 %v2415, %v2411
    %v3032 = vpack.c.b16 %v2420, %v2416
    %v3033 = vpack.c.b16 %v2421, %v2417
    %v3034 = vpack.c.b16 %v2422, %v2418
    %v3035 = vpack.c.b16 %v2423, %v2419
    %v3036 = vpack.c.b16 %v2428, %v2424
    %v3037 = vpack.c.b16 %v2429, %v2425
    %v3038 = vpack.c.b16 %v2430, %v2426
    %v3039 = vpack.c.b16 %v2431, %v2427
    %v3040 = vpack.c.b16 %v2436, %v2432
    %v3041 = vpack.c.b16 %v2437, %v2433
    %v3042 = vpack.c.b16 %v2438, %v2434
    %v3043 = vpack.c.b16 %v2439, %v2435
    %v3044 = vpack.c.b16 %v2444, %v2440
    %v3045 = vpack.c.b16 %v2445, %v2441
    %v3046 = vpack.c.b16 %v2446, %v2442
    %v3047 = vpack.c.b16 %v2447, %v2443
    %v3048 = vpack.c.b16 %v2452, %v2448
    %v3049 = vpack.c.b16 %v2453, %v2449
    %v3050 = vpack.c.b16 %v2454, %v2450
    %v3051 = vpack.c.b16 %v2455, %v2451
    %v3052 = vpack.c.b16 %v2460, %v2456
    %v3053 = vpack.c.b16 %v2461, %v2457
    %v3054 = vpack.c.b16 %v2462, %v2458
    %v3055 = vpack.c.b16 %v2463, %v2459
    %v3056 = vpack.c.b16 %v2468, %v2464
    %v3057 = vpack.c.b16 %v2469, %v2465
    %v3058 = vpack.c.b16 %v2470, %v2466
    %v3059 = vpack.c.b16 %v2471, %v2467
    %v3060 = vpack.c.b16 %v2476, %v2472
    %v3061 = vpack.c.b16 %v2477, %v2473
    %v3062 = vpack.c.b16 %v2478, %v2474
    %v3063 = vpack.c.b16 %v2479, %v2475
    %v3064 = vpack.c.b16 %v2484, %v2480
    %v3065 = vpack.c.b16 %v2485, %v2481
    %v3066 = vpack.c.b16 %v2486, %v2482
    %v3067 = vpack.c.b16 %v2487, %v2483
    %v3068 = vpack.c.b16 %v2492, %v2488
    %v3069 = vpack.c.b16 %v2493, %v2489
    %v3070 = vpack.c.b16 %v2494, %v2490
    %v3071 = vpack.c.b16 %v2495, %v2491
    %3648 = vmatprep.subr.bf16.mxu0 %v2497
    %3649 = vmatpush1.bf16.msra.mxu0 %v2496
    %3650 = vmatprep.subr.bf16.mxu0 %v2501
    %3651 = vmatpush1.bf16.msra.mxu0 %v2500
    %3652 = vmatprep.subr.bf16.mxu0 %v2505
    %3653 = vmatpush1.bf16.msra.mxu0 %v2504
    %3654 = vmatprep.subr.bf16.mxu0 %v2509
    %3655 = vmatpush1.bf16.msra.mxu0 %v2508
    %3656 = vmatprep.subr.bf16.mxu0 %v2513
    %3657 = vmatpush1.bf16.msra.mxu0 %v2512
    %3658 = vmatprep.subr.bf16.mxu0 %v2517
    %3659 = vmatpush1.bf16.msra.mxu0 %v2516
    %3660 = vmatprep.subr.bf16.mxu0 %v2521
    %3661 = vmatpush1.bf16.msra.mxu0 %v2520
    %3662 = vmatprep.subr.bf16.mxu0 %v2525
    %3663 = vmatpush1.bf16.msra.mxu0 %v2524
    %3664 = vmatprep.subr.bf16.mxu0 %v2529
    %3665 = vmatpush1.bf16.msra.mxu0 %v2528
    %3666 = vmatprep.subr.bf16.mxu0 %v2533
    %3667 = vmatpush1.bf16.msra.mxu0 %v2532
    %3668 = vmatprep.subr.bf16.mxu0 %v2537
    %3669 = vmatpush1.bf16.msra.mxu0 %v2536
    %3670 = vmatprep.subr.bf16.mxu0 %v2541
    %3671 = vmatpush1.bf16.msra.mxu0 %v2540
    %3672 = vmatprep.subr.bf16.mxu0 %v2545
    %3673 = vmatpush1.bf16.msra.mxu0 %v2544
    %3674 = vmatprep.subr.bf16.mxu0 %v2549
    %3675 = vmatpush1.bf16.msra.mxu0 %v2548
    %3676 = vmatprep.subr.bf16.mxu0 %v2553
    %3677 = vmatpush1.bf16.msra.mxu0 %v2552
    %3678 = vmatprep.subr.bf16.mxu0 %v2557
    %3679 = vmatpush1.bf16.msra.mxu0 %v2556
    %3680 = vmatprep.mubr.bf16.mxu0 %v153
    %3681 = vmatmul.mubr.bf16.gmra.mrb[0].mxu0 %v152
    %v3682 = vpop.f32.mrb[0].mxu0
    %v3683 = vadd.f32 %v751, %v3682
    %v3684 = vpop.f32.mrb[0].mxu0
    %v3685 = vadd.f32 %v755, %v3684
    %v3686 = vpop.f32.mrb[0].mxu0
    %v3687 = vadd.f32 %v751, %v3686
    %v3688 = vpop.f32.mrb[0].mxu0
    %v3689 = vadd.f32 %v755, %v3688
    %3690 = vdwg.mxu0
    %3691 = vmatprep.subr.bf16.mxu0 %v2561
    %3692 = vmatpush1.bf16.msra.mxu0 %v2560
    %3693 = vmatprep.subr.bf16.mxu0 %v2565
    %3694 = vmatpush1.bf16.msra.mxu0 %v2564
    %3695 = vmatprep.subr.bf16.mxu0 %v2569
    %3696 = vmatpush1.bf16.msra.mxu0 %v2568
    %3697 = vmatprep.subr.bf16.mxu0 %v2573
    %3698 = vmatpush1.bf16.msra.mxu0 %v2572
    %3699 = vmatprep.subr.bf16.mxu0 %v2577
    %3700 = vmatpush1.bf16.msra.mxu0 %v2576
    %3701 = vmatprep.subr.bf16.mxu0 %v2581
    %3702 = vmatpush1.bf16.msra.mxu0 %v2580
    %3703 = vmatprep.subr.bf16.mxu0 %v2585
    %3704 = vmatpush1.bf16.msra.mxu0 %v2584
    %3705 = vmatprep.subr.bf16.mxu0 %v2589
    %3706 = vmatpush1.bf16.msra.mxu0 %v2588
    %3707 = vmatprep.subr.bf16.mxu0 %v2593
    %3708 = vmatpush1.bf16.msra.mxu0 %v2592
    %3709 = vmatprep.subr.bf16.mxu0 %v2597
    %3710 = vmatpush1.bf16.msra.mxu0 %v2596
    %3711 = vmatprep.subr.bf16.mxu0 %v2601
    %3712 = vmatpush1.bf16.msra.mxu0 %v2600
    %3713 = vmatprep.subr.bf16.mxu0 %v2605
    %3714 = vmatpush1.bf16.msra.mxu0 %v2604
    %3715 = vmatprep.subr.bf16.mxu0 %v2609
    %3716 = vmatpush1.bf16.msra.mxu0 %v2608
    %3717 = vmatprep.subr.bf16.mxu0 %v2613
    %3718 = vmatpush1.bf16.msra.mxu0 %v2612
    %3719 = vmatprep.subr.bf16.mxu0 %v2617
    %3720 = vmatpush1.bf16.msra.mxu0 %v2616
    %3721 = vmatprep.subr.bf16.mxu0 %v2621
    %3722 = vmatpush1.bf16.msra.mxu0 %v2620
    %3723 = vmatprep.mubr.bf16.mxu0 %v155
    %3724 = vmatmul.mubr.bf16.gmra.mrb[0].mxu0 %v154
    %v3725 = vpop.f32.mrb[0].mxu0
    %v3726 = vadd.f32 %v3683, %v3725
    %v3727 = vpop.f32.mrb[0].mxu0
    %v3728 = vadd.f32 %v3685, %v3727
    %v3729 = vpop.f32.mrb[0].mxu0
    %v3730 = vadd.f32 %v3687, %v3729
    %v3731 = vpop.f32.mrb[0].mxu0
    %v3732 = vadd.f32 %v3689, %v3731
    %3733 = vdwg.mxu0
    %3734 = vmatprep.subr.bf16.mxu0 %v2625
    %3735 = vmatpush1.bf16.msra.mxu0 %v2624
    %3736 = vmatprep.subr.bf16.mxu0 %v2629
    %3737 = vmatpush1.bf16.msra.mxu0 %v2628
    %3738 = vmatprep.subr.bf16.mxu0 %v2633
    %3739 = vmatpush1.bf16.msra.mxu0 %v2632
    %3740 = vmatprep.subr.bf16.mxu0 %v2637
    %3741 = vmatpush1.bf16.msra.mxu0 %v2636
    %3742 = vmatprep.subr.bf16.mxu0 %v2641
    %3743 = vmatpush1.bf16.msra.mxu0 %v2640
    %3744 = vmatprep.subr.bf16.mxu0 %v2645
    %3745 = vmatpush1.bf16.msra.mxu0 %v2644
    %3746 = vmatprep.subr.bf16.mxu0 %v2649
    %3747 = vmatpush1.bf16.msra.mxu0 %v2648
    %3748 = vmatprep.subr.bf16.mxu0 %v2653
    %3749 = vmatpush1.bf16.msra.mxu0 %v2652
    %3750 = vmatprep.subr.bf16.mxu0 %v2657
    %3751 = vmatpush1.bf16.msra.mxu0 %v2656
    %3752 = vmatprep.subr.bf16.mxu0 %v2661
    %3753 = vmatpush1.bf16.msra.mxu0 %v2660
    %3754 = vmatprep.subr.bf16.mxu0 %v2665
    %3755 = vmatpush1.bf16.msra.mxu0 %v2664
    %3756 = vmatprep.subr.bf16.mxu0 %v2669
    %3757 = vmatpush1.bf16.msra.mxu0 %v2668
    %3758 = vmatprep.subr.bf16.mxu0 %v2673
    %3759 = vmatpush1.bf16.msra.mxu0 %v2672
    %3760 = vmatprep.subr.bf16.mxu0 %v2677
    %3761 = vmatpush1.bf16.msra.mxu0 %v2676
    %3762 = vmatprep.subr.bf16.mxu0 %v2681
    %3763 = vmatpush1.bf16.msra.mxu0 %v2680
    %3764 = vmatprep.subr.bf16.mxu0 %v2685
    %3765 = vmatpush1.bf16.msra.mxu0 %v2684
    %3766 = vmatprep.mubr.bf16.mxu0 %v157
    %3767 = vmatmul.mubr.bf16.gmra.mrb[0].mxu0 %v156
    %v3768 = vpop.f32.mrb[0].mxu0
    %v3769 = vadd.f32 %v3726, %v3768
    %v3770 = vpop.f32.mrb[0].mxu0
    %v3771 = vadd.f32 %v3728, %v3770
    %v3772 = vpop.f32.mrb[0].mxu0
    %v3773 = vadd.f32 %v3730, %v3772
    %v3774 = vpop.f32.mrb[0].mxu0
    %v3775 = vadd.f32 %v3732, %v3774
    %3776 = vdwg.mxu0
    %3777 = vmatprep.subr.bf16.mxu0 %v2689
    %3778 = vmatpush1.bf16.msra.mxu0 %v2688
    %3779 = vmatprep.subr.bf16.mxu0 %v2693
    %3780 = vmatpush1.bf16.msra.mxu0 %v2692
    %3781 = vmatprep.subr.bf16.mxu0 %v2697
    %3782 = vmatpush1.bf16.msra.mxu0 %v2696
    %3783 = vmatprep.subr.bf16.mxu0 %v2701
    %3784 = vmatpush1.bf16.msra.mxu0 %v2700
    %3785 = vmatprep.subr.bf16.mxu0 %v2705
    %3786 = vmatpush1.bf16.msra.mxu0 %v2704
    %3787 = vmatprep.subr.bf16.mxu0 %v2709
    %3788 = vmatpush1.bf16.msra.mxu0 %v2708
    %3789 = vmatprep.subr.bf16.mxu0 %v2713
    %3790 = vmatpush1.bf16.msra.mxu0 %v2712
    %3791 = vmatprep.subr.bf16.mxu0 %v2717
    %3792 = vmatpush1.bf16.msra.mxu0 %v2716
    %3793 = vmatprep.subr.bf16.mxu0 %v2721
    %3794 = vmatpush1.bf16.msra.mxu0 %v2720
    %3795 = vmatprep.subr.bf16.mxu0 %v2725
    %3796 = vmatpush1.bf16.msra.mxu0 %v2724
    %3797 = vmatprep.subr.bf16.mxu0 %v2729
    %3798 = vmatpush1.bf16.msra.mxu0 %v2728
    %3799 = vmatprep.subr.bf16.mxu0 %v2733
    %3800 = vmatpush1.bf16.msra.mxu0 %v2732
    %3801 = vmatprep.subr.bf16.mxu0 %v2737
    %3802 = vmatpush1.bf16.msra.mxu0 %v2736
    %3803 = vmatprep.subr.bf16.mxu0 %v2741
    %3804 = vmatpush1.bf16.msra.mxu0 %v2740
    %3805 = vmatprep.subr.bf16.mxu0 %v2745
    %3806 = vmatpush1.bf16.msra.mxu0 %v2744
    %3807 = vmatprep.subr.bf16.mxu0 %v2749
    %3808 = vmatpush1.bf16.msra.mxu0 %v2748
    %3809 = vmatprep.mubr.bf16.mxu0 %v159
    %3810 = vmatmul.mubr.bf16.gmra.mrb[0].mxu0 %v158
    %v3811 = vpop.f32.mrb[0].mxu0
    %v3812 = vadd.f32 %v3769, %v3811
    %v3813 = vpop.f32.mrb[0].mxu0
    %v3814 = vadd.f32 %v3771, %v3813
    %v3815 = vpop.f32.mrb[0].mxu0
    %v3816 = vadd.f32 %v3773, %v3815
    %v3817 = vpop.f32.mrb[0].mxu0
    %v3818 = vadd.f32 %v3775, %v3817
    %3819 = vdwg.mxu0
    %3820 = vmatprep.subr.bf16.mxu0 %v2753
    %3821 = vmatpush1.bf16.msra.mxu0 %v2752
    %3822 = vmatprep.subr.bf16.mxu0 %v2757
    %3823 = vmatpush1.bf16.msra.mxu0 %v2756
    %3824 = vmatprep.subr.bf16.mxu0 %v2761
    %3825 = vmatpush1.bf16.msra.mxu0 %v2760
    %3826 = vmatprep.subr.bf16.mxu0 %v2765
    %3827 = vmatpush1.bf16.msra.mxu0 %v2764
    %3828 = vmatprep.subr.bf16.mxu0 %v2769
    %3829 = vmatpush1.bf16.msra.mxu0 %v2768
    %3830 = vmatprep.subr.bf16.mxu0 %v2773
    %3831 = vmatpush1.bf16.msra.mxu0 %v2772
    %3832 = vmatprep.subr.bf16.mxu0 %v2777
    %3833 = vmatpush1.bf16.msra.mxu0 %v2776
    %3834 = vmatprep.subr.bf16.mxu0 %v2781
    %3835 = vmatpush1.bf16.msra.mxu0 %v2780
    %3836 = vmatprep.subr.bf16.mxu0 %v2785
    %3837 = vmatpush1.bf16.msra.mxu0 %v2784
    %3838 = vmatprep.subr.bf16.mxu0 %v2789
    %3839 = vmatpush1.bf16.msra.mxu0 %v2788
    %3840 = vmatprep.subr.bf16.mxu0 %v2793
    %3841 = vmatpush1.bf16.msra.mxu0 %v2792
    %3842 = vmatprep.subr.bf16.mxu0 %v2797
    %3843 = vmatpush1.bf16.msra.mxu0 %v2796
    %3844 = vmatprep.subr.bf16.mxu0 %v2801
    %3845 = vmatpush1.bf16.msra.mxu0 %v2800
    %3846 = vmatprep.subr.bf16.mxu0 %v2805
    %3847 = vmatpush1.bf16.msra.mxu0 %v2804
    %3848 = vmatprep.subr.bf16.mxu0 %v2809
    %3849 = vmatpush1.bf16.msra.mxu0 %v2808
    %3850 = vmatprep.subr.bf16.mxu0 %v2813
    %3851 = vmatpush1.bf16.msra.mxu0 %v2812
    %3852 = vmatprep.mubr.bf16.mxu0 %v161
    %3853 = vmatmul.mubr.bf16.gmra.mrb[0].mxu0 %v160
    %v3854 = vpop.f32.mrb[0].mxu0
    %v3855 = vadd.f32 %v3812, %v3854
    %v3856 = vpop.f32.mrb[0].mxu0
    %v3857 = vadd.f32 %v3814, %v3856
    %v3858 = vpop.f32.mrb[0].mxu0
    %v3859 = vadd.f32 %v3816, %v3858
    %v3860 = vpop.f32.mrb[0].mxu0
    %v3861 = vadd.f32 %v3818, %v3860
    %3862 = vdwg.mxu0
    %3863 = vmatprep.subr.bf16.mxu0 %v2817
    %3864 = vmatpush1.bf16.msra.mxu0 %v2816
    %3865 = vmatprep.subr.bf16.mxu0 %v2821
    %3866 = vmatpush1.bf16.msra.mxu0 %v2820
    %3867 = vmatprep.subr.bf16.mxu0 %v2825
    %3868 = vmatpush1.bf16.msra.mxu0 %v2824
    %3869 = vmatprep.subr.bf16.mxu0 %v2829
    %3870 = vmatpush1.bf16.msra.mxu0 %v2828
    %3871 = vmatprep.subr.bf16.mxu0 %v2833
    %3872 = vmatpush1.bf16.msra.mxu0 %v2832
    %3873 = vmatprep.subr.bf16.mxu0 %v2837
    %3874 = vmatpush1.bf16.msra.mxu0 %v2836
    %3875 = vmatprep.subr.bf16.mxu0 %v2841
    %3876 = vmatpush1.bf16.msra.mxu0 %v2840
    %3877 = vmatprep.subr.bf16.mxu0 %v2845
    %3878 = vmatpush1.bf16.msra.mxu0 %v2844
    %3879 = vmatprep.subr.bf16.mxu0 %v2849
    %3880 = vmatpush1.bf16.msra.mxu0 %v2848
    %3881 = vmatprep.subr.bf16.mxu0 %v2853
    %3882 = vmatpush1.bf16.msra.mxu0 %v2852
    %3883 = vmatprep.subr.bf16.mxu0 %v2857
    %3884 = vmatpush1.bf16.msra.mxu0 %v2856
    %3885 = vmatprep.subr.bf16.mxu0 %v2861
    %3886 = vmatpush1.bf16.msra.mxu0 %v2860
    %3887 = vmatprep.subr.bf16.mxu0 %v2865
    %3888 = vmatpush1.bf16.msra.mxu0 %v2864
    %3889 = vmatprep.subr.bf16.mxu0 %v2869
    %3890 = vmatpush1.bf16.msra.mxu0 %v2868
    %3891 = vmatprep.subr.bf16.mxu0 %v2873
    %3892 = vmatpush1.bf16.msra.mxu0 %v2872
    %3893 = vmatprep.subr.bf16.mxu0 %v2877
    %3894 = vmatpush1.bf16.msra.mxu0 %v2876
    %3895 = vmatprep.mubr.bf16.mxu0 %v163
    %3896 = vmatmul.mubr.bf16.gmra.mrb[0].mxu0 %v162
    %v3897 = vpop.f32.mrb[0].mxu0
    %v3898 = vadd.f32 %v3855, %v3897
    %v3899 = vpop.f32.mrb[0].mxu0
    %v3900 = vadd.f32 %v3857, %v3899
    %v3901 = vpop.f32.mrb[0].mxu0
    %v3902 = vadd.f32 %v3859, %v3901
    %v3903 = vpop.f32.mrb[0].mxu0
    %v3904 = vadd.f32 %v3861, %v3903
    %3905 = vdwg.mxu0
    %3906 = vmatprep.subr.bf16.mxu0 %v2881
    %3907 = vmatpush1.bf16.msra.mxu0 %v2880
    %3908 = vmatprep.subr.bf16.mxu0 %v2885
    %3909 = vmatpush1.bf16.msra.mxu0 %v2884
    %3910 = vmatprep.subr.bf16.mxu0 %v2889
    %3911 = vmatpush1.bf16.msra.mxu0 %v2888
    %3912 = vmatprep.subr.bf16.mxu0 %v2893
    %3913 = vmatpush1.bf16.msra.mxu0 %v2892
    %3914 = vmatprep.subr.bf16.mxu0 %v2897
    %3915 = vmatpush1.bf16.msra.mxu0 %v2896
    %3916 = vmatprep.subr.bf16.mxu0 %v2901
    %3917 = vmatpush1.bf16.msra.mxu0 %v2900
    %3918 = vmatprep.subr.bf16.mxu0 %v2905
    %3919 = vmatpush1.bf16.msra.mxu0 %v2904
    %3920 = vmatprep.subr.bf16.mxu0 %v2909
    %3921 = vmatpush1.bf16.msra.mxu0 %v2908
    %3922 = vmatprep.subr.bf16.mxu0 %v2913
    %3923 = vmatpush1.bf16.msra.mxu0 %v2912
    %3924 = vmatprep.subr.bf16.mxu0 %v2917
    %3925 = vmatpush1.bf16.msra.mxu0 %v2916
    %3926 = vmatprep.subr.bf16.mxu0 %v2921
    %3927 = vmatpush1.bf16.msra.mxu0 %v2920
    %3928 = vmatprep.subr.bf16.mxu0 %v2925
    %3929 = vmatpush1.bf16.msra.mxu0 %v2924
    %3930 = vmatprep.subr.bf16.mxu0 %v2929
    %3931 = vmatpush1.bf16.msra.mxu0 %v2928
    %3932 = vmatprep.subr.bf16.mxu0 %v2933
    %3933 = vmatpush1.bf16.msra.mxu0 %v2932
    %3934 = vmatprep.subr.bf16.mxu0 %v2937
    %3935 = vmatpush1.bf16.msra.mxu0 %v2936
    %3936 = vmatprep.subr.bf16.mxu0 %v2941
    %3937 = vmatpush1.bf16.msra.mxu0 %v2940
    %3938 = vmatprep.mubr.bf16.mxu0 %v165
    %3939 = vmatmul.mubr.bf16.gmra.mrb[0].mxu0 %v164
    %v3940 = vpop.f32.mrb[0].mxu0
    %v3941 = vadd.f32 %v3898, %v3940
    %v3942 = vpop.f32.mrb[0].mxu0
    %v3943 = vadd.f32 %v3900, %v3942
    %v3944 = vpop.f32.mrb[0].mxu0
    %v3945 = vadd.f32 %v3902, %v3944
    %v3946 = vpop.f32.mrb[0].mxu0
    %v3947 = vadd.f32 %v3904, %v3946
    %3948 = vdwg.mxu0
    %3949 = vmatprep.subr.bf16.mxu0 %v2945
    %3950 = vmatpush1.bf16.msra.mxu0 %v2944
    %3951 = vmatprep.subr.bf16.mxu0 %v2949
    %3952 = vmatpush1.bf16.msra.mxu0 %v2948
    %3953 = vmatprep.subr.bf16.mxu0 %v2953
    %3954 = vmatpush1.bf16.msra.mxu0 %v2952
    %3955 = vmatprep.subr.bf16.mxu0 %v2957
    %3956 = vmatpush1.bf16.msra.mxu0 %v2956
    %3957 = vmatprep.subr.bf16.mxu0 %v2961
    %3958 = vmatpush1.bf16.msra.mxu0 %v2960
    %3959 = vmatprep.subr.bf16.mxu0 %v2965
    %3960 = vmatpush1.bf16.msra.mxu0 %v2964
    %3961 = vmatprep.subr.bf16.mxu0 %v2969
    %3962 = vmatpush1.bf16.msra.mxu0 %v2968
    %3963 = vmatprep.subr.bf16.mxu0 %v2973
    %3964 = vmatpush1.bf16.msra.mxu0 %v2972
    %3965 = vmatprep.subr.bf16.mxu0 %v2977
    %3966 = vmatpush1.bf16.msra.mxu0 %v2976
    %3967 = vmatprep.subr.bf16.mxu0 %v2981
    %3968 = vmatpush1.bf16.msra.mxu0 %v2980
    %3969 = vmatprep.subr.bf16.mxu0 %v2985
    %3970 = vmatpush1.bf16.msra.mxu0 %v2984
    %3971 = vmatprep.subr.bf16.mxu0 %v2989
    %3972 = vmatpush1.bf16.msra.mxu0 %v2988
    %3973 = vmatprep.subr.bf16.mxu0 %v2993
    %3974 = vmatpush1.bf16.msra.mxu0 %v2992
    %3975 = vmatprep.subr.bf16.mxu0 %v2997
    %3976 = vmatpush1.bf16.msra.mxu0 %v2996
    %3977 = vmatprep.subr.bf16.mxu0 %v3001
    %3978 = vmatpush1.bf16.msra.mxu0 %v3000
    %3979 = vmatprep.subr.bf16.mxu0 %v3005
    %3980 = vmatpush1.bf16.msra.mxu0 %v3004
    %3981 = vmatprep.mubr.bf16.mxu0 %v167
    %3982 = vmatmul.mubr.bf16.gmra.mrb[0].mxu0 %v166
    %v3983 = vpop.f32.mrb[0].mxu0
    %v3984 = vadd.f32 %v3941, %v3983
    %v3985 = vpop.f32.mrb[0].mxu0
    %v3986 = vadd.f32 %v3943, %v3985
    %v3987 = vpop.f32.mrb[0].mxu0
    %v3988 = vadd.f32 %v3945, %v3987
    %v3989 = vpop.f32.mrb[0].mxu0
    %v3990 = vadd.f32 %v3947, %v3989
    %3991 = vdwg.mxu0
    %3992 = vmatprep.subr.bf16.mxu0 %v3009
    %3993 = vmatpush1.bf16.msra.mxu0 %v3008
    %3994 = vmatprep.subr.bf16.mxu0 %v3013
    %3995 = vmatpush1.bf16.msra.mxu0 %v3012
    %3996 = vmatprep.subr.bf16.mxu0 %v3017
    %3997 = vmatpush1.bf16.msra.mxu0 %v3016
    %3998 = vmatprep.subr.bf16.mxu0 %v3021
    %3999 = vmatpush1.bf16.msra.mxu0 %v3020
    %4000 = vmatprep.subr.bf16.mxu0 %v3025
    %4001 = vmatpush1.bf16.msra.mxu0 %v3024
    %4002 = vmatprep.subr.bf16.mxu0 %v3029
    %4003 = vmatpush1.bf16.msra.mxu0 %v3028
    %4004 = vmatprep.subr.bf16.mxu0 %v3033
    %4005 = vmatpush1.bf16.msra.mxu0 %v3032
    %4006 = vmatprep.subr.bf16.mxu0 %v3037
    %4007 = vmatpush1.bf16.msra.mxu0 %v3036
    %4008 = vmatprep.subr.bf16.mxu0 %v3041
    %4009 = vmatpush1.bf16.msra.mxu0 %v3040
    %4010 = vmatprep.subr.bf16.mxu0 %v3045
    %4011 = vmatpush1.bf16.msra.mxu0 %v3044
    %4012 = vmatprep.subr.bf16.mxu0 %v3049
    %4013 = vmatpush1.bf16.msra.mxu0 %v3048
    %4014 = vmatprep.subr.bf16.mxu0 %v3053
    %4015 = vmatpush1.bf16.msra.mxu0 %v3052
    %4016 = vmatprep.subr.bf16.mxu0 %v3057
    %4017 = vmatpush1.bf16.msra.mxu0 %v3056
    %4018 = vmatprep.subr.bf16.mxu0 %v3061
    %4019 = vmatpush1.bf16.msra.mxu0 %v3060
    %4020 = vmatprep.subr.bf16.mxu0 %v3065
    %4021 = vmatpush1.bf16.msra.mxu0 %v3064
    %4022 = vmatprep.subr.bf16.mxu0 %v3069
    %4023 = vmatpush1.bf16.msra.mxu0 %v3068
    %4024 = vmatprep.mubr.bf16.mxu0 %v169
    %4025 = vmatmul.mubr.bf16.gmra.mrb[0].mxu0 %v168
    %v4026 = vpop.f32.mrb[0].mxu0
    %v4027 = vadd.f32 %v3984, %v4026
    %v4028 = vpop.f32.mrb[0].mxu0
    %v4029 = vadd.f32 %v3986, %v4028
    %v4030 = vpop.f32.mrb[0].mxu0
    %v4031 = vadd.f32 %v3988, %v4030
    %v4032 = vpop.f32.mrb[0].mxu0
    %v4033 = vadd.f32 %v3990, %v4032
    %4034 = vdwg.mxu0
    %4035 = vmatprep.subr.bf16.mxu0 %v2499
    %4036 = vmatpush1.bf16.msra.mxu0 %v2498
    %4037 = vmatprep.subr.bf16.mxu0 %v2503
    %4038 = vmatpush1.bf16.msra.mxu0 %v2502
    %4039 = vmatprep.subr.bf16.mxu0 %v2507
    %4040 = vmatpush1.bf16.msra.mxu0 %v2506
    %4041 = vmatprep.subr.bf16.mxu0 %v2511
    %4042 = vmatpush1.bf16.msra.mxu0 %v2510
    %4043 = vmatprep.subr.bf16.mxu0 %v2515
    %4044 = vmatpush1.bf16.msra.mxu0 %v2514
    %4045 = vmatprep.subr.bf16.mxu0 %v2519
    %4046 = vmatpush1.bf16.msra.mxu0 %v2518
    %4047 = vmatprep.subr.bf16.mxu0 %v2523
    %4048 = vmatpush1.bf16.msra.mxu0 %v2522
    %4049 = vmatprep.subr.bf16.mxu0 %v2527
    %4050 = vmatpush1.bf16.msra.mxu0 %v2526
    %4051 = vmatprep.subr.bf16.mxu0 %v2531
    %4052 = vmatpush1.bf16.msra.mxu0 %v2530
    %4053 = vmatprep.subr.bf16.mxu0 %v2535
    %4054 = vmatpush1.bf16.msra.mxu0 %v2534
    %4055 = vmatprep.subr.bf16.mxu0 %v2539
    %4056 = vmatpush1.bf16.msra.mxu0 %v2538
    %4057 = vmatprep.subr.bf16.mxu0 %v2543
    %4058 = vmatpush1.bf16.msra.mxu0 %v2542
    %4059 = vmatprep.subr.bf16.mxu0 %v2547
    %4060 = vmatpush1.bf16.msra.mxu0 %v2546
    %4061 = vmatprep.subr.bf16.mxu0 %v2551
    %4062 = vmatpush1.bf16.msra.mxu0 %v2550
    %4063 = vmatprep.subr.bf16.mxu0 %v2555
    %4064 = vmatpush1.bf16.msra.mxu0 %v2554
    %4065 = vmatprep.subr.bf16.mxu0 %v2559
    %4066 = vmatpush1.bf16.msra.mxu0 %v2558
    %4067 = vmatprep.mubr.bf16.mxu0 %v153
    %4068 = vmatmul.mubr.bf16.gmra.mrb[0].mxu0 %v152
    %v4069 = vpop.f32.mrb[0].mxu0
    %v4070 = vadd.f32 %v759, %v4069
    %v4071 = vpop.f32.mrb[0].mxu0
    %v4072 = vadd.f32 %v763, %v4071
    %v4073 = vpop.f32.mrb[0].mxu0
    %v4074 = vadd.f32 %v759, %v4073
    %v4075 = vpop.f32.mrb[0].mxu0
    %v4076 = vadd.f32 %v763, %v4075
    %4077 = vdwg.mxu0
    %4078 = vmatprep.subr.bf16.mxu0 %v2563
    %4079 = vmatpush1.bf16.msra.mxu0 %v2562
    %4080 = vmatprep.subr.bf16.mxu0 %v2567
    %4081 = vmatpush1.bf16.msra.mxu0 %v2566
    %4082 = vmatprep.subr.bf16.mxu0 %v2571
    %4083 = vmatpush1.bf16.msra.mxu0 %v2570
    %4084 = vmatprep.subr.bf16.mxu0 %v2575
    %4085 = vmatpush1.bf16.msra.mxu0 %v2574
    %4086 = vmatprep.subr.bf16.mxu0 %v2579
    %4087 = vmatpush1.bf16.msra.mxu0 %v2578
    %4088 = vmatprep.subr.bf16.mxu0 %v2583
    %4089 = vmatpush1.bf16.msra.mxu0 %v2582
    %4090 = vmatprep.subr.bf16.mxu0 %v2587
    %4091 = vmatpush1.bf16.msra.mxu0 %v2586
    %4092 = vmatprep.subr.bf16.mxu0 %v2591
    %4093 = vmatpush1.bf16.msra.mxu0 %v2590
    %4094 = vmatprep.subr.bf16.mxu0 %v2595
    %4095 = vmatpush1.bf16.msra.mxu0 %v2594
    %4096 = vmatprep.subr.bf16.mxu0 %v2599
    %4097 = vmatpush1.bf16.msra.mxu0 %v2598
    %4098 = vmatprep.subr.bf16.mxu0 %v2603
    %4099 = vmatpush1.bf16.msra.mxu0 %v2602
    %4100 = vmatprep.subr.bf16.mxu0 %v2607
    %4101 = vmatpush1.bf16.msra.mxu0 %v2606
    %4102 = vmatprep.subr.bf16.mxu0 %v2611
    %4103 = vmatpush1.bf16.msra.mxu0 %v2610
    %4104 = vmatprep.subr.bf16.mxu0 %v2615
    %4105 = vmatpush1.bf16.msra.mxu0 %v2614
    %4106 = vmatprep.subr.bf16.mxu0 %v2619
    %4107 = vmatpush1.bf16.msra.mxu0 %v2618
    %4108 = vmatprep.subr.bf16.mxu0 %v2623
    %4109 = vmatpush1.bf16.msra.mxu0 %v2622
    %4110 = vmatprep.mubr.bf16.mxu0 %v155
    %4111 = vmatmul.mubr.bf16.gmra.mrb[0].mxu0 %v154
    %v4112 = vpop.f32.mrb[0].mxu0
    %v4113 = vadd.f32 %v4070, %v4112
    %v4114 = vpop.f32.mrb[0].mxu0
    %v4115 = vadd.f32 %v4072, %v4114
    %v4116 = vpop.f32.mrb[0].mxu0
    %v4117 = vadd.f32 %v4074, %v4116
    %v4118 = vpop.f32.mrb[0].mxu0
    %v4119 = vadd.f32 %v4076, %v4118
    %4120 = vdwg.mxu0
    %4121 = vmatprep.subr.bf16.mxu0 %v2627
    %4122 = vmatpush1.bf16.msra.mxu0 %v2626
    %4123 = vmatprep.subr.bf16.mxu0 %v2631
    %4124 = vmatpush1.bf16.msra.mxu0 %v2630
    %4125 = vmatprep.subr.bf16.mxu0 %v2635
    %4126 = vmatpush1.bf16.msra.mxu0 %v2634
    %4127 = vmatprep.subr.bf16.mxu0 %v2639
    %4128 = vmatpush1.bf16.msra.mxu0 %v2638
    %4129 = vmatprep.subr.bf16.mxu0 %v2643
    %4130 = vmatpush1.bf16.msra.mxu0 %v2642
    %4131 = vmatprep.subr.bf16.mxu0 %v2647
    %4132 = vmatpush1.bf16.msra.mxu0 %v2646
    %4133 = vmatprep.subr.bf16.mxu0 %v2651
    %4134 = vmatpush1.bf16.msra.mxu0 %v2650
    %4135 = vmatprep.subr.bf16.mxu0 %v2655
    %4136 = vmatpush1.bf16.msra.mxu0 %v2654
    %4137 = vmatprep.subr.bf16.mxu0 %v2659
    %4138 = vmatpush1.bf16.msra.mxu0 %v2658
    %4139 = vmatprep.subr.bf16.mxu0 %v2663
    %4140 = vmatpush1.bf16.msra.mxu0 %v2662
    %4141 = vmatprep.subr.bf16.mxu0 %v2667
    %4142 = vmatpush1.bf16.msra.mxu0 %v2666
    %4143 = vmatprep.subr.bf16.mxu0 %v2671
    %4144 = vmatpush1.bf16.msra.mxu0 %v2670
    %4145 = vmatprep.subr.bf16.mxu0 %v2675
    %4146 = vmatpush1.bf16.msra.mxu0 %v2674
    %4147 = vmatprep.subr.bf16.mxu0 %v2679
    %4148 = vmatpush1.bf16.msra.mxu0 %v2678
    %4149 = vmatprep.subr.bf16.mxu0 %v2683
    %4150 = vmatpush1.bf16.msra.mxu0 %v2682
    %4151 = vmatprep.subr.bf16.mxu0 %v2687
    %4152 = vmatpush1.bf16.msra.mxu0 %v2686
    %4153 = vmatprep.mubr.bf16.mxu0 %v157
    %4154 = vmatmul.mubr.bf16.gmra.mrb[0].mxu0 %v156
    %v4155 = vpop.f32.mrb[0].mxu0
    %v4156 = vadd.f32 %v4113, %v4155
    %v4157 = vpop.f32.mrb[0].mxu0
    %v4158 = vadd.f32 %v4115, %v4157
    %v4159 = vpop.f32.mrb[0].mxu0
    %v4160 = vadd.f32 %v4117, %v4159
    %v4161 = vpop.f32.mrb[0].mxu0
    %v4162 = vadd.f32 %v4119, %v4161
    %4163 = vdwg.mxu0
    %4164 = vmatprep.subr.bf16.mxu0 %v2691
    %4165 = vmatpush1.bf16.msra.mxu0 %v2690
    %4166 = vmatprep.subr.bf16.mxu0 %v2695
    %4167 = vmatpush1.bf16.msra.mxu0 %v2694
    %4168 = vmatprep.subr.bf16.mxu0 %v2699
    %4169 = vmatpush1.bf16.msra.mxu0 %v2698
    %4170 = vmatprep.subr.bf16.mxu0 %v2703
    %4171 = vmatpush1.bf16.msra.mxu0 %v2702
    %4172 = vmatprep.subr.bf16.mxu0 %v2707
    %4173 = vmatpush1.bf16.msra.mxu0 %v2706
    %4174 = vmatprep.subr.bf16.mxu0 %v2711
    %4175 = vmatpush1.bf16.msra.mxu0 %v2710
    %4176 = vmatprep.subr.bf16.mxu0 %v2715
    %4177 = vmatpush1.bf16.msra.mxu0 %v2714
    %4178 = vmatprep.subr.bf16.mxu0 %v2719
    %4179 = vmatpush1.bf16.msra.mxu0 %v2718
    %4180 = vmatprep.subr.bf16.mxu0 %v2723
    %4181 = vmatpush1.bf16.msra.mxu0 %v2722
    %4182 = vmatprep.subr.bf16.mxu0 %v2727
    %4183 = vmatpush1.bf16.msra.mxu0 %v2726
    %4184 = vmatprep.subr.bf16.mxu0 %v2731
    %4185 = vmatpush1.bf16.msra.mxu0 %v2730
    %4186 = vmatprep.subr.bf16.mxu0 %v2735
    %4187 = vmatpush1.bf16.msra.mxu0 %v2734
    %4188 = vmatprep.subr.bf16.mxu0 %v2739
    %4189 = vmatpush1.bf16.msra.mxu0 %v2738
    %4190 = vmatprep.subr.bf16.mxu0 %v2743
    %4191 = vmatpush1.bf16.msra.mxu0 %v2742
    %4192 = vmatprep.subr.bf16.mxu0 %v2747
    %4193 = vmatpush1.bf16.msra.mxu0 %v2746
    %4194 = vmatprep.subr.bf16.mxu0 %v2751
    %4195 = vmatpush1.bf16.msra.mxu0 %v2750
    %4196 = vmatprep.mubr.bf16.mxu0 %v159
    %4197 = vmatmul.mubr.bf16.gmra.mrb[0].mxu0 %v158
    %v4198 = vpop.f32.mrb[0].mxu0
    %v4199 = vadd.f32 %v4156, %v4198
    %v4200 = vpop.f32.mrb[0].mxu0
    %v4201 = vadd.f32 %v4158, %v4200
    %v4202 = vpop.f32.mrb[0].mxu0
    %v4203 = vadd.f32 %v4160, %v4202
    %v4204 = vpop.f32.mrb[0].mxu0
    %v4205 = vadd.f32 %v4162, %v4204
    %4206 = vdwg.mxu0
    %4207 = vmatprep.subr.bf16.mxu0 %v2755
    %4208 = vmatpush1.bf16.msra.mxu0 %v2754
    %4209 = vmatprep.subr.bf16.mxu0 %v2759
    %4210 = vmatpush1.bf16.msra.mxu0 %v2758
    %4211 = vmatprep.subr.bf16.mxu0 %v2763
    %4212 = vmatpush1.bf16.msra.mxu0 %v2762
    %4213 = vmatprep.subr.bf16.mxu0 %v2767
    %4214 = vmatpush1.bf16.msra.mxu0 %v2766
    %4215 = vmatprep.subr.bf16.mxu0 %v2771
    %4216 = vmatpush1.bf16.msra.mxu0 %v2770
    %4217 = vmatprep.subr.bf16.mxu0 %v2775
    %4218 = vmatpush1.bf16.msra.mxu0 %v2774
    %4219 = vmatprep.subr.bf16.mxu0 %v2779
    %4220 = vmatpush1.bf16.msra.mxu0 %v2778
    %4221 = vmatprep.subr.bf16.mxu0 %v2783
    %4222 = vmatpush1.bf16.msra.mxu0 %v2782
    %4223 = vmatprep.subr.bf16.mxu0 %v2787
    %4224 = vmatpush1.bf16.msra.mxu0 %v2786
    %4225 = vmatprep.subr.bf16.mxu0 %v2791
    %4226 = vmatpush1.bf16.msra.mxu0 %v2790
    %4227 = vmatprep.subr.bf16.mxu0 %v2795
    %4228 = vmatpush1.bf16.msra.mxu0 %v2794
    %4229 = vmatprep.subr.bf16.mxu0 %v2799
    %4230 = vmatpush1.bf16.msra.mxu0 %v2798
    %4231 = vmatprep.subr.bf16.mxu0 %v2803
    %4232 = vmatpush1.bf16.msra.mxu0 %v2802
    %4233 = vmatprep.subr.bf16.mxu0 %v2807
    %4234 = vmatpush1.bf16.msra.mxu0 %v2806
    %4235 = vmatprep.subr.bf16.mxu0 %v2811
    %4236 = vmatpush1.bf16.msra.mxu0 %v2810
    %4237 = vmatprep.subr.bf16.mxu0 %v2815
    %4238 = vmatpush1.bf16.msra.mxu0 %v2814
    %4239 = vmatprep.mubr.bf16.mxu0 %v161
    %4240 = vmatmul.mubr.bf16.gmra.mrb[0].mxu0 %v160
    %v4241 = vpop.f32.mrb[0].mxu0
    %v4242 = vadd.f32 %v4199, %v4241
    %v4243 = vpop.f32.mrb[0].mxu0
    %v4244 = vadd.f32 %v4201, %v4243
    %v4245 = vpop.f32.mrb[0].mxu0
    %v4246 = vadd.f32 %v4203, %v4245
    %v4247 = vpop.f32.mrb[0].mxu0
    %v4248 = vadd.f32 %v4205, %v4247
    %4249 = vdwg.mxu0
    %4250 = vmatprep.subr.bf16.mxu0 %v2819
    %4251 = vmatpush1.bf16.msra.mxu0 %v2818
    %4252 = vmatprep.subr.bf16.mxu0 %v2823
    %4253 = vmatpush1.bf16.msra.mxu0 %v2822
    %4254 = vmatprep.subr.bf16.mxu0 %v2827
    %4255 = vmatpush1.bf16.msra.mxu0 %v2826
    %4256 = vmatprep.subr.bf16.mxu0 %v2831
    %4257 = vmatpush1.bf16.msra.mxu0 %v2830
    %4258 = vmatprep.subr.bf16.mxu0 %v2835
    %4259 = vmatpush1.bf16.msra.mxu0 %v2834
    %4260 = vmatprep.subr.bf16.mxu0 %v2839
    %4261 = vmatpush1.bf16.msra.mxu0 %v2838
    %4262 = vmatprep.subr.bf16.mxu0 %v2843
    %4263 = vmatpush1.bf16.msra.mxu0 %v2842
    %4264 = vmatprep.subr.bf16.mxu0 %v2847
    %4265 = vmatpush1.bf16.msra.mxu0 %v2846
    %4266 = vmatprep.subr.bf16.mxu0 %v2851
    %4267 = vmatpush1.bf16.msra.mxu0 %v2850
    %4268 = vmatprep.subr.bf16.mxu0 %v2855
    %4269 = vmatpush1.bf16.msra.mxu0 %v2854
    %4270 = vmatprep.subr.bf16.mxu0 %v2859
    %4271 = vmatpush1.bf16.msra.mxu0 %v2858
    %4272 = vmatprep.subr.bf16.mxu0 %v2863
    %4273 = vmatpush1.bf16.msra.mxu0 %v2862
    %4274 = vmatprep.subr.bf16.mxu0 %v2867
    %4275 = vmatpush1.bf16.msra.mxu0 %v2866
    %4276 = vmatprep.subr.bf16.mxu0 %v2871
    %4277 = vmatpush1.bf16.msra.mxu0 %v2870
    %4278 = vmatprep.subr.bf16.mxu0 %v2875
    %4279 = vmatpush1.bf16.msra.mxu0 %v2874
    %4280 = vmatprep.subr.bf16.mxu0 %v2879
    %4281 = vmatpush1.bf16.msra.mxu0 %v2878
    %4282 = vmatprep.mubr.bf16.mxu0 %v163
    %4283 = vmatmul.mubr.bf16.gmra.mrb[0].mxu0 %v162
    %v4284 = vpop.f32.mrb[0].mxu0
    %v4285 = vadd.f32 %v4242, %v4284
    %v4286 = vpop.f32.mrb[0].mxu0
    %v4287 = vadd.f32 %v4244, %v4286
    %v4288 = vpop.f32.mrb[0].mxu0
    %v4289 = vadd.f32 %v4246, %v4288
    %v4290 = vpop.f32.mrb[0].mxu0
    %v4291 = vadd.f32 %v4248, %v4290
    %4292 = vdwg.mxu0
    %4293 = vmatprep.subr.bf16.mxu0 %v2883
    %4294 = vmatpush1.bf16.msra.mxu0 %v2882
    %4295 = vmatprep.subr.bf16.mxu0 %v2887
    %4296 = vmatpush1.bf16.msra.mxu0 %v2886
    %4297 = vmatprep.subr.bf16.mxu0 %v2891
    %4298 = vmatpush1.bf16.msra.mxu0 %v2890
    %4299 = vmatprep.subr.bf16.mxu0 %v2895
    %4300 = vmatpush1.bf16.msra.mxu0 %v2894
    %4301 = vmatprep.subr.bf16.mxu0 %v2899
    %4302 = vmatpush1.bf16.msra.mxu0 %v2898
    %4303 = vmatprep.subr.bf16.mxu0 %v2903
    %4304 = vmatpush1.bf16.msra.mxu0 %v2902
    %4305 = vmatprep.subr.bf16.mxu0 %v2907
    %4306 = vmatpush1.bf16.msra.mxu0 %v2906
    %4307 = vmatprep.subr.bf16.mxu0 %v2911
    %4308 = vmatpush1.bf16.msra.mxu0 %v2910
    %4309 = vmatprep.subr.bf16.mxu0 %v2915
    %4310 = vmatpush1.bf16.msra.mxu0 %v2914
    %4311 = vmatprep.subr.bf16.mxu0 %v2919
    %4312 = vmatpush1.bf16.msra.mxu0 %v2918
    %4313 = vmatprep.subr.bf16.mxu0 %v2923
    %4314 = vmatpush1.bf16.msra.mxu0 %v2922
    %4315 = vmatprep.subr.bf16.mxu0 %v2927
    %4316 = vmatpush1.bf16.msra.mxu0 %v2926
    %4317 = vmatprep.subr.bf16.mxu0 %v2931
    %4318 = vmatpush1.bf16.msra.mxu0 %v2930
    %4319 = vmatprep.subr.bf16.mxu0 %v2935
    %4320 = vmatpush1.bf16.msra.mxu0 %v2934
    %4321 = vmatprep.subr.bf16.mxu0 %v2939
    %4322 = vmatpush1.bf16.msra.mxu0 %v2938
    %4323 = vmatprep.subr.bf16.mxu0 %v2943
    %4324 = vmatpush1.bf16.msra.mxu0 %v2942
    %4325 = vmatprep.mubr.bf16.mxu0 %v165
    %4326 = vmatmul.mubr.bf16.gmra.mrb[0].mxu0 %v164
    %v4327 = vpop.f32.mrb[0].mxu0
    %v4328 = vadd.f32 %v4285, %v4327
    %v4329 = vpop.f32.mrb[0].mxu0
    %v4330 = vadd.f32 %v4287, %v4329
    %v4331 = vpop.f32.mrb[0].mxu0
    %v4332 = vadd.f32 %v4289, %v4331
    %v4333 = vpop.f32.mrb[0].mxu0
    %v4334 = vadd.f32 %v4291, %v4333
    %4335 = vdwg.mxu0
    %4336 = vmatprep.subr.bf16.mxu0 %v2947
    %4337 = vmatpush1.bf16.msra.mxu0 %v2946
    %4338 = vmatprep.subr.bf16.mxu0 %v2951
    %4339 = vmatpush1.bf16.msra.mxu0 %v2950
    %4340 = vmatprep.subr.bf16.mxu0 %v2955
    %4341 = vmatpush1.bf16.msra.mxu0 %v2954
    %4342 = vmatprep.subr.bf16.mxu0 %v2959
    %4343 = vmatpush1.bf16.msra.mxu0 %v2958
    %4344 = vmatprep.subr.bf16.mxu0 %v2963
    %4345 = vmatpush1.bf16.msra.mxu0 %v2962
    %4346 = vmatprep.subr.bf16.mxu0 %v2967
    %4347 = vmatpush1.bf16.msra.mxu0 %v2966
    %4348 = vmatprep.subr.bf16.mxu0 %v2971
    %4349 = vmatpush1.bf16.msra.mxu0 %v2970
    %4350 = vmatprep.subr.bf16.mxu0 %v2975
    %4351 = vmatpush1.bf16.msra.mxu0 %v2974
    %4352 = vmatprep.subr.bf16.mxu0 %v2979
    %4353 = vmatpush1.bf16.msra.mxu0 %v2978
    %4354 = vmatprep.subr.bf16.mxu0 %v2983
    %4355 = vmatpush1.bf16.msra.mxu0 %v2982
    %4356 = vmatprep.subr.bf16.mxu0 %v2987
    %4357 = vmatpush1.bf16.msra.mxu0 %v2986
    %4358 = vmatprep.subr.bf16.mxu0 %v2991
    %4359 = vmatpush1.bf16.msra.mxu0 %v2990
    %4360 = vmatprep.subr.bf16.mxu0 %v2995
    %4361 = vmatpush1.bf16.msra.mxu0 %v2994
    %4362 = vmatprep.subr.bf16.mxu0 %v2999
    %4363 = vmatpush1.bf16.msra.mxu0 %v2998
    %4364 = vmatprep.subr.bf16.mxu0 %v3003
    %4365 = vmatpush1.bf16.msra.mxu0 %v3002
    %4366 = vmatprep.subr.bf16.mxu0 %v3007
    %4367 = vmatpush1.bf16.msra.mxu0 %v3006
    %4368 = vmatprep.mubr.bf16.mxu0 %v167
    %4369 = vmatmul.mubr.bf16.gmra.mrb[0].mxu0 %v166
    %v4370 = vpop.f32.mrb[0].mxu0
    %v4371 = vadd.f32 %v4328, %v4370
    %v4372 = vpop.f32.mrb[0].mxu0
    %v4373 = vadd.f32 %v4330, %v4372
    %v4374 = vpop.f32.mrb[0].mxu0
    %v4375 = vadd.f32 %v4332, %v4374
    %v4376 = vpop.f32.mrb[0].mxu0
    %v4377 = vadd.f32 %v4334, %v4376
    %4378 = vdwg.mxu0
    %4379 = vmatprep.subr.bf16.mxu0 %v3011
    %4380 = vmatpush1.bf16.msra.mxu0 %v3010
    %4381 = vmatprep.subr.bf16.mxu0 %v3015
    %4382 = vmatpush1.bf16.msra.mxu0 %v3014
    %4383 = vmatprep.subr.bf16.mxu0 %v3019
    %4384 = vmatpush1.bf16.msra.mxu0 %v3018
    %4385 = vmatprep.subr.bf16.mxu0 %v3023
    %4386 = vmatpush1.bf16.msra.mxu0 %v3022
    %4387 = vmatprep.subr.bf16.mxu0 %v3027
    %4388 = vmatpush1.bf16.msra.mxu0 %v3026
    %4389 = vmatprep.subr.bf16.mxu0 %v3031
    %4390 = vmatpush1.bf16.msra.mxu0 %v3030
    %4391 = vmatprep.subr.bf16.mxu0 %v3035
    %4392 = vmatpush1.bf16.msra.mxu0 %v3034
    %4393 = vmatprep.subr.bf16.mxu0 %v3039
    %4394 = vmatpush1.bf16.msra.mxu0 %v3038
    %4395 = vmatprep.subr.bf16.mxu0 %v3043
    %4396 = vmatpush1.bf16.msra.mxu0 %v3042
    %4397 = vmatprep.subr.bf16.mxu0 %v3047
    %4398 = vmatpush1.bf16.msra.mxu0 %v3046
    %4399 = vmatprep.subr.bf16.mxu0 %v3051
    %4400 = vmatpush1.bf16.msra.mxu0 %v3050
    %4401 = vmatprep.subr.bf16.mxu0 %v3055
    %4402 = vmatpush1.bf16.msra.mxu0 %v3054
    %4403 = vmatprep.subr.bf16.mxu0 %v3059
    %4404 = vmatpush1.bf16.msra.mxu0 %v3058
    %4405 = vmatprep.subr.bf16.mxu0 %v3063
    %4406 = vmatpush1.bf16.msra.mxu0 %v3062
    %4407 = vmatprep.subr.bf16.mxu0 %v3067
    %4408 = vmatpush1.bf16.msra.mxu0 %v3066
    %4409 = vmatprep.subr.bf16.mxu0 %v3071
    %4410 = vmatpush1.bf16.msra.mxu0 %v3070
    %4411 = vmatprep.mubr.bf16.mxu0 %v169
    %4412 = vmatmul.mubr.bf16.gmra.mrb[0].mxu0 %v168
    %v4413 = vpop.f32.mrb[0].mxu0
    %v4414 = vadd.f32 %v4371, %v4413
    %v4415 = vpop.f32.mrb[0].mxu0
    %v4416 = vadd.f32 %v4373, %v4415
    %v4417 = vpop.f32.mrb[0].mxu0
    %v4418 = vadd.f32 %v4375, %v4417
    %v4419 = vpop.f32.mrb[0].mxu0
    %v4420 = vadd.f32 %v4377, %v4419
    %4421 = vdwg.mxu0
    %v4422 = vmax.f32 %v4027, 0.0
    %v4423 = vmax.f32 %v4029, 0.0
    %v4424 = vmax.f32 %v4414, 0.0
    %v4425 = vmax.f32 %v4416, 0.0
    %v4426 = vmax.f32 %v4031, 0.0
    %v4427 = vmax.f32 %v4033, 0.0
    %v4428 = vmax.f32 %v4418, 0.0
    %v4429 = vmax.f32 %v4420, 0.0
    %v4430 = vpack.c.bf16 %v4426, %v4422
    %v4431 = vpack.c.bf16 %v4427, %v4423
    %v4432 = vpack.c.bf16 %v4428, %v4424
    %v4433 = vpack.c.bf16 %v4429, %v4425
    %v4434 = vld [vmem:[#allocation7] sm:$0xff]
    %v4435 = vld [vmem:[#allocation7 + $0x8] sm:$0xff]
    %v4436 = vld [vmem:[#allocation7 + $0x10] sm:$0xff]
    %v4437 = vld [vmem:[#allocation7 + $0x18] sm:$0xff]
    %v4438 = vld [vmem:[#allocation7 + $0x20] sm:$0xff]
    %v4439 = vld [vmem:[#allocation7 + $0x28] sm:$0xff]
    %v4440 = vld [vmem:[#allocation7 + $0x30] sm:$0xff]
    %v4441 = vld [vmem:[#allocation7 + $0x38] sm:$0xff]
    %v4442 = vld [vmem:[#allocation7 + $0x40] sm:$0xff]
    %v4443 = vld [vmem:[#allocation7 + $0x48] sm:$0xff]
    %v4444 = vld [vmem:[#allocation7 + $0x50] sm:$0xff]
    %v4445 = vld [vmem:[#allocation7 + $0x58] sm:$0xff]
    %v4446 = vld [vmem:[#allocation7 + $0x60] sm:$0xff]
    %v4447 = vld [vmem:[#allocation7 + $0x68] sm:$0xff]
    %v4448 = vld [vmem:[#allocation7 + $0x70] sm:$0xff]
    %v4449 = vld [vmem:[#allocation7 + $0x78] sm:$0xff]
    %v4450 = vld [vmem:[#allocation7 + $0x80] sm:$0xff]
    %v4451 = vld [vmem:[#allocation7 + $0x88] sm:$0xff]
    %v4452 = vld [vmem:[#allocation7 + $0x90] sm:$0xff]
    %v4453 = vld [vmem:[#allocation7 + $0x98] sm:$0xff]
    %v4454 = vld [vmem:[#allocation7 + $0xa0] sm:$0xff]
    %v4455 = vld [vmem:[#allocation7 + $0xa8] sm:$0xff]
    %v4456 = vld [vmem:[#allocation7 + $0xb0] sm:$0xff]
    %v4457 = vld [vmem:[#allocation7 + $0xb8] sm:$0xff]
    %v4458 = vld [vmem:[#allocation7 + $0xc0] sm:$0xff]
    %v4459 = vld [vmem:[#allocation7 + $0xc8] sm:$0xff]
    %v4460 = vld [vmem:[#allocation7 + $0xd0] sm:$0xff]
    %v4461 = vld [vmem:[#allocation7 + $0xd8] sm:$0xff]
    %v4462 = vld [vmem:[#allocation7 + $0xe0] sm:$0xff]
    %v4463 = vld [vmem:[#allocation7 + $0xe8] sm:$0xff]
    %v4464 = vld [vmem:[#allocation7 + $0xf0] sm:$0xff]
    %v4465 = vld [vmem:[#allocation7 + $0xf8] sm:$0xff]
    %v4466 = vld [vmem:[#allocation7 + $0x100] sm:$0xff]
    %v4467 = vld [vmem:[#allocation7 + $0x108] sm:$0xff]
    %v4468 = vld [vmem:[#allocation7 + $0x110] sm:$0xff]
    %v4469 = vld [vmem:[#allocation7 + $0x118] sm:$0xff]
    %v4470 = vld [vmem:[#allocation7 + $0x120] sm:$0xff]
    %v4471 = vld [vmem:[#allocation7 + $0x128] sm:$0xff]
    %v4472 = vld [vmem:[#allocation7 + $0x130] sm:$0xff]
    %v4473 = vld [vmem:[#allocation7 + $0x138] sm:$0xff]
    %v4474 = vld [vmem:[#allocation7 + $0x140] sm:$0xff]
    %v4475 = vld [vmem:[#allocation7 + $0x148] sm:$0xff]
    %v4476 = vld [vmem:[#allocation7 + $0x150] sm:$0xff]
    %v4477 = vld [vmem:[#allocation7 + $0x158] sm:$0xff]
    %v4478 = vld [vmem:[#allocation7 + $0x160] sm:$0xff]
    %v4479 = vld [vmem:[#allocation7 + $0x168] sm:$0xff]
    %v4480 = vld [vmem:[#allocation7 + $0x170] sm:$0xff]
    %v4481 = vld [vmem:[#allocation7 + $0x178] sm:$0xff]
    %v4482 = vld [vmem:[#allocation7 + $0x180] sm:$0xff]
    %v4483 = vld [vmem:[#allocation7 + $0x188] sm:$0xff]
    %v4484 = vld [vmem:[#allocation7 + $0x190] sm:$0xff]
    %v4485 = vld [vmem:[#allocation7 + $0x198] sm:$0xff]
    %v4486 = vld [vmem:[#allocation7 + $0x1a0] sm:$0xff]
    %v4487 = vld [vmem:[#allocation7 + $0x1a8] sm:$0xff]
    %v4488 = vld [vmem:[#allocation7 + $0x1b0] sm:$0xff]
    %v4489 = vld [vmem:[#allocation7 + $0x1b8] sm:$0xff]
    %v4490 = vld [vmem:[#allocation7 + $0x1c0] sm:$0xff]
    %v4491 = vld [vmem:[#allocation7 + $0x1c8] sm:$0xff]
    %v4492 = vld [vmem:[#allocation7 + $0x1d0] sm:$0xff]
    %v4493 = vld [vmem:[#allocation7 + $0x1d8] sm:$0xff]
    %v4494 = vld [vmem:[#allocation7 + $0x1e0] sm:$0xff]
    %v4495 = vld [vmem:[#allocation7 + $0x1e8] sm:$0xff]
    %v4496 = vld [vmem:[#allocation7 + $0x1f0] sm:$0xff]
    %v4497 = vld [vmem:[#allocation7 + $0x1f8] sm:$0xff]
    %v4498 = vld [vmem:[#allocation9] sm:$0x3]
    %v4500 = vlaneseq
    %v4501 = vshrl.u32 %v4500, 7
    %v4502 = vsub.s32 0, %v4501
    %v4503 = vrot.slane %v4498, %v4502
    %v4504 = vlaneseq
    %v4505 = vshrl.u32 %v4504, 7
    %v4506 = vsub.s32 1, %v4505
    %v4507 = vrot.slane %v4498, %v4506
    %v4574 = vunpack.c.l.b16 %v4434
    %v4575 = vunpack.c.h.b16 %v4434
    %v4576 = vunpack.c.l.b16 %v4435
    %v4577 = vunpack.c.h.b16 %v4435
    %v4578 = vunpack.c.l.b16 %v4436
    %v4579 = vunpack.c.h.b16 %v4436
    %v4580 = vunpack.c.l.b16 %v4437
    %v4581 = vunpack.c.h.b16 %v4437
    %v4582 = vunpack.c.l.b16 %v4438
    %v4583 = vunpack.c.h.b16 %v4438
    %v4584 = vunpack.c.l.b16 %v4439
    %v4585 = vunpack.c.h.b16 %v4439
    %v4586 = vunpack.c.l.b16 %v4440
    %v4587 = vunpack.c.h.b16 %v4440
    %v4588 = vunpack.c.l.b16 %v4441
    %v4589 = vunpack.c.h.b16 %v4441
    %v4590 = vunpack.c.l.b16 %v4442
    %v4591 = vunpack.c.h.b16 %v4442
    %v4592 = vunpack.c.l.b16 %v4443
    %v4593 = vunpack.c.h.b16 %v4443
    %v4594 = vunpack.c.l.b16 %v4444
    %v4595 = vunpack.c.h.b16 %v4444
    %v4596 = vunpack.c.l.b16 %v4445
    %v4597 = vunpack.c.h.b16 %v4445
    %v4598 = vunpack.c.l.b16 %v4446
    %v4599 = vunpack.c.h.b16 %v4446
    %v4600 = vunpack.c.l.b16 %v4447
    %v4601 = vunpack.c.h.b16 %v4447
    %v4602 = vunpack.c.l.b16 %v4448
    %v4603 = vunpack.c.h.b16 %v4448
    %v4604 = vunpack.c.l.b16 %v4449
    %v4605 = vunpack.c.h.b16 %v4449
    %v4606 = vunpack.c.l.b16 %v4450
    %v4607 = vunpack.c.h.b16 %v4450
    %v4608 = vunpack.c.l.b16 %v4451
    %v4609 = vunpack.c.h.b16 %v4451
    %v4610 = vunpack.c.l.b16 %v4452
    %v4611 = vunpack.c.h.b16 %v4452
    %v4612 = vunpack.c.l.b16 %v4453
    %v4613 = vunpack.c.h.b16 %v4453
    %v4614 = vunpack.c.l.b16 %v4454
    %v4615 = vunpack.c.h.b16 %v4454
    %v4616 = vunpack.c.l.b16 %v4455
    %v4617 = vunpack.c.h.b16 %v4455
    %v4618 = vunpack.c.l.b16 %v4456
    %v4619 = vunpack.c.h.b16 %v4456
    %v4620 = vunpack.c.l.b16 %v4457
    %v4621 = vunpack.c.h.b16 %v4457
    %v4622 = vunpack.c.l.b16 %v4458
    %v4623 = vunpack.c.h.b16 %v4458
    %v4624 = vunpack.c.l.b16 %v4459
    %v4625 = vunpack.c.h.b16 %v4459
    %v4626 = vunpack.c.l.b16 %v4460
    %v4627 = vunpack.c.h.b16 %v4460
    %v4628 = vunpack.c.l.b16 %v4461
    %v4629 = vunpack.c.h.b16 %v4461
    %v4630 = vunpack.c.l.b16 %v4462
    %v4631 = vunpack.c.h.b16 %v4462
    %v4632 = vunpack.c.l.b16 %v4463
    %v4633 = vunpack.c.h.b16 %v4463
    %v4634 = vunpack.c.l.b16 %v4464
    %v4635 = vunpack.c.h.b16 %v4464
    %v4636 = vunpack.c.l.b16 %v4465
    %v4637 = vunpack.c.h.b16 %v4465
    %v4638 = vunpack.c.l.b16 %v4466
    %v4639 = vunpack.c.h.b16 %v4466
    %v4640 = vunpack.c.l.b16 %v4467
    %v4641 = vunpack.c.h.b16 %v4467
    %v4642 = vunpack.c.l.b16 %v4468
    %v4643 = vunpack.c.h.b16 %v4468
    %v4644 = vunpack.c.l.b16 %v4469
    %v4645 = vunpack.c.h.b16 %v4469
    %v4646 = vunpack.c.l.b16 %v4470
    %v4647 = vunpack.c.h.b16 %v4470
    %v4648 = vunpack.c.l.b16 %v4471
    %v4649 = vunpack.c.h.b16 %v4471
    %v4650 = vunpack.c.l.b16 %v4472
    %v4651 = vunpack.c.h.b16 %v4472
    %v4652 = vunpack.c.l.b16 %v4473
    %v4653 = vunpack.c.h.b16 %v4473
    %v4654 = vunpack.c.l.b16 %v4474
    %v4655 = vunpack.c.h.b16 %v4474
    %v4656 = vunpack.c.l.b16 %v4475
    %v4657 = vunpack.c.h.b16 %v4475
    %v4658 = vunpack.c.l.b16 %v4476
    %v4659 = vunpack.c.h.b16 %v4476
    %v4660 = vunpack.c.l.b16 %v4477
    %v4661 = vunpack.c.h.b16 %v4477
    %v4662 = vunpack.c.l.b16 %v4478
    %v4663 = vunpack.c.h.b16 %v4478
    %v4664 = vunpack.c.l.b16 %v4479
    %v4665 = vunpack.c.h.b16 %v4479
    %v4666 = vunpack.c.l.b16 %v4480
    %v4667 = vunpack.c.h.b16 %v4480
    %v4668 = vunpack.c.l.b16 %v4481
    %v4669 = vunpack.c.h.b16 %v4481
    %v4670 = vunpack.c.l.b16 %v4482
    %v4671 = vunpack.c.h.b16 %v4482
    %v4672 = vunpack.c.l.b16 %v4483
    %v4673 = vunpack.c.h.b16 %v4483
    %v4674 = vunpack.c.l.b16 %v4484
    %v4675 = vunpack.c.h.b16 %v4484
    %v4676 = vunpack.c.l.b16 %v4485
    %v4677 = vunpack.c.h.b16 %v4485
    %v4678 = vunpack.c.l.b16 %v4486
    %v4679 = vunpack.c.h.b16 %v4486
    %v4680 = vunpack.c.l.b16 %v4487
    %v4681 = vunpack.c.h.b16 %v4487
    %v4682 = vunpack.c.l.b16 %v4488
    %v4683 = vunpack.c.h.b16 %v4488
    %v4684 = vunpack.c.l.b16 %v4489
    %v4685 = vunpack.c.h.b16 %v4489
    %v4686 = vunpack.c.l.b16 %v4490
    %v4687 = vunpack.c.h.b16 %v4490
    %v4688 = vunpack.c.l.b16 %v4491
    %v4689 = vunpack.c.h.b16 %v4491
    %v4690 = vunpack.c.l.b16 %v4492
    %v4691 = vunpack.c.h.b16 %v4492
    %v4692 = vunpack.c.l.b16 %v4493
    %v4693 = vunpack.c.h.b16 %v4493
    %v4694 = vunpack.c.l.b16 %v4494
    %v4695 = vunpack.c.h.b16 %v4494
    %v4696 = vunpack.c.l.b16 %v4495
    %v4697 = vunpack.c.h.b16 %v4495
    %v4698 = vunpack.c.l.b16 %v4496
    %v4699 = vunpack.c.h.b16 %v4496
    %v4700 = vunpack.c.l.b16 %v4497
    %v4701 = vunpack.c.h.b16 %v4497
    %v4702 = vpack.c.b16 %v4576, %v4574
    %v4703 = vpack.c.b16 %v4577, %v4575
    %v4704 = vpack.c.b16 %v4580, %v4578
    %v4705 = vpack.c.b16 %v4581, %v4579
    %v4706 = vpack.c.b16 %v4584, %v4582
    %v4707 = vpack.c.b16 %v4585, %v4583
    %v4708 = vpack.c.b16 %v4588, %v4586
    %v4709 = vpack.c.b16 %v4589, %v4587
    %v4710 = vpack.c.b16 %v4592, %v4590
    %v4711 = vpack.c.b16 %v4593, %v4591
    %v4712 = vpack.c.b16 %v4596, %v4594
    %v4713 = vpack.c.b16 %v4597, %v4595
    %v4714 = vpack.c.b16 %v4600, %v4598
    %v4715 = vpack.c.b16 %v4601, %v4599
    %v4716 = vpack.c.b16 %v4604, %v4602
    %v4717 = vpack.c.b16 %v4605, %v4603
    %v4718 = vpack.c.b16 %v4608, %v4606
    %v4719 = vpack.c.b16 %v4609, %v4607
    %v4720 = vpack.c.b16 %v4612, %v4610
    %v4721 = vpack.c.b16 %v4613, %v4611
    %v4722 = vpack.c.b16 %v4616, %v4614
    %v4723 = vpack.c.b16 %v4617, %v4615
    %v4724 = vpack.c.b16 %v4620, %v4618
    %v4725 = vpack.c.b16 %v4621, %v4619
    %v4726 = vpack.c.b16 %v4624, %v4622
    %v4727 = vpack.c.b16 %v4625, %v4623
    %v4728 = vpack.c.b16 %v4628, %v4626
    %v4729 = vpack.c.b16 %v4629, %v4627
    %v4730 = vpack.c.b16 %v4632, %v4630
    %v4731 = vpack.c.b16 %v4633, %v4631
    %v4732 = vpack.c.b16 %v4636, %v4634
    %v4733 = vpack.c.b16 %v4637, %v4635
    %v4734 = vpack.c.b16 %v4640, %v4638
    %v4735 = vpack.c.b16 %v4641, %v4639
    %v4736 = vpack.c.b16 %v4644, %v4642
    %v4737 = vpack.c.b16 %v4645, %v4643
    %v4738 = vpack.c.b16 %v4648, %v4646
    %v4739 = vpack.c.b16 %v4649, %v4647
    %v4740 = vpack.c.b16 %v4652, %v4650
    %v4741 = vpack.c.b16 %v4653, %v4651
    %v4742 = vpack.c.b16 %v4656, %v4654
    %v4743 = vpack.c.b16 %v4657, %v4655
    %v4744 = vpack.c.b16 %v4660, %v4658
    %v4745 = vpack.c.b16 %v4661, %v4659
    %v4746 = vpack.c.b16 %v4664, %v4662
    %v4747 = vpack.c.b16 %v4665, %v4663
    %v4748 = vpack.c.b16 %v4668, %v4666
    %v4749 = vpack.c.b16 %v4669, %v4667
    %v4750 = vpack.c.b16 %v4672, %v4670
    %v4751 = vpack.c.b16 %v4673, %v4671
    %v4752 = vpack.c.b16 %v4676, %v4674
    %v4753 = vpack.c.b16 %v4677, %v4675
    %v4754 = vpack.c.b16 %v4680, %v4678
    %v4755 = vpack.c.b16 %v4681, %v4679
    %v4756 = vpack.c.b16 %v4684, %v4682
    %v4757 = vpack.c.b16 %v4685, %v4683
    %v4758 = vpack.c.b16 %v4688, %v4686
    %v4759 = vpack.c.b16 %v4689, %v4687
    %v4760 = vpack.c.b16 %v4692, %v4690
    %v4761 = vpack.c.b16 %v4693, %v4691
    %v4762 = vpack.c.b16 %v4696, %v4694
    %v4763 = vpack.c.b16 %v4697, %v4695
    %v4764 = vpack.c.b16 %v4700, %v4698
    %v4765 = vpack.c.b16 %v4701, %v4699
    %4830 = vmatprep.subr.bf16.mxu0 %v4703
    %4831 = vmatpush1.bf16.msra.mxu0 %v4702
    %4832 = vmatprep.subr.bf16.mxu0 %v4705
    %4833 = vmatpush1.bf16.msra.mxu0 %v4704
    %4834 = vmatprep.subr.bf16.mxu0 %v4707
    %4835 = vmatpush1.bf16.msra.mxu0 %v4706
    %4836 = vmatprep.subr.bf16.mxu0 %v4709
    %4837 = vmatpush1.bf16.msra.mxu0 %v4708
    %4838 = vmatprep.subr.bf16.mxu0 %v4711
    %4839 = vmatpush1.bf16.msra.mxu0 %v4710
    %4840 = vmatprep.subr.bf16.mxu0 %v4713
    %4841 = vmatpush1.bf16.msra.mxu0 %v4712
    %4842 = vmatprep.subr.bf16.mxu0 %v4715
    %4843 = vmatpush1.bf16.msra.mxu0 %v4714
    %4844 = vmatprep.subr.bf16.mxu0 %v4717
    %4845 = vmatpush1.bf16.msra.mxu0 %v4716
    %4846 = vmatprep.subr.bf16.mxu0 %v4719
    %4847 = vmatpush1.bf16.msra.mxu0 %v4718
    %4848 = vmatprep.subr.bf16.mxu0 %v4721
    %4849 = vmatpush1.bf16.msra.mxu0 %v4720
    %4850 = vmatprep.subr.bf16.mxu0 %v4723
    %4851 = vmatpush1.bf16.msra.mxu0 %v4722
    %4852 = vmatprep.subr.bf16.mxu0 %v4725
    %4853 = vmatpush1.bf16.msra.mxu0 %v4724
    %4854 = vmatprep.subr.bf16.mxu0 %v4727
    %4855 = vmatpush1.bf16.msra.mxu0 %v4726
    %4856 = vmatprep.subr.bf16.mxu0 %v4729
    %4857 = vmatpush1.bf16.msra.mxu0 %v4728
    %4858 = vmatprep.subr.bf16.mxu0 %v4731
    %4859 = vmatpush1.bf16.msra.mxu0 %v4730
    %4860 = vmatprep.subr.bf16.mxu0 %v4733
    %4861 = vmatpush1.bf16.msra.mxu0 %v4732
    %4862 = vmatprep.mubr.bf16.mxu0 %v4431
    %4863 = vmatmul.mubr.bf16.gmra.mrb[0].mxu0 %v4430
    %v4864 = vpop.f32.mrb[0].mxu0
    %v4865 = vadd.f32 %v4503, %v4864
    %v4866 = vpop.f32.mrb[0].mxu0
    %v4867 = vadd.f32 %v4507, %v4866
    %v4868 = vpop.f32.mrb[0].mxu0
    %v4869 = vadd.f32 %v4503, %v4868
    %v4870 = vpop.f32.mrb[0].mxu0
    %v4871 = vadd.f32 %v4507, %v4870
    %4872 = vdwg.mxu0
    %4873 = vmatprep.subr.bf16.mxu0 %v4735
    %4874 = vmatpush1.bf16.msra.mxu0 %v4734
    %4875 = vmatprep.subr.bf16.mxu0 %v4737
    %4876 = vmatpush1.bf16.msra.mxu0 %v4736
    %4877 = vmatprep.subr.bf16.mxu0 %v4739
    %4878 = vmatpush1.bf16.msra.mxu0 %v4738
    %4879 = vmatprep.subr.bf16.mxu0 %v4741
    %4880 = vmatpush1.bf16.msra.mxu0 %v4740
    %4881 = vmatprep.subr.bf16.mxu0 %v4743
    %4882 = vmatpush1.bf16.msra.mxu0 %v4742
    %4883 = vmatprep.subr.bf16.mxu0 %v4745
    %4884 = vmatpush1.bf16.msra.mxu0 %v4744
    %4885 = vmatprep.subr.bf16.mxu0 %v4747
    %4886 = vmatpush1.bf16.msra.mxu0 %v4746
    %4887 = vmatprep.subr.bf16.mxu0 %v4749
    %4888 = vmatpush1.bf16.msra.mxu0 %v4748
    %4889 = vmatprep.subr.bf16.mxu0 %v4751
    %4890 = vmatpush1.bf16.msra.mxu0 %v4750
    %4891 = vmatprep.subr.bf16.mxu0 %v4753
    %4892 = vmatpush1.bf16.msra.mxu0 %v4752
    %4893 = vmatprep.subr.bf16.mxu0 %v4755
    %4894 = vmatpush1.bf16.msra.mxu0 %v4754
    %4895 = vmatprep.subr.bf16.mxu0 %v4757
    %4896 = vmatpush1.bf16.msra.mxu0 %v4756
    %4897 = vmatprep.subr.bf16.mxu0 %v4759
    %4898 = vmatpush1.bf16.msra.mxu0 %v4758
    %4899 = vmatprep.subr.bf16.mxu0 %v4761
    %4900 = vmatpush1.bf16.msra.mxu0 %v4760
    %4901 = vmatprep.subr.bf16.mxu0 %v4763
    %4902 = vmatpush1.bf16.msra.mxu0 %v4762
    %4903 = vmatprep.subr.bf16.mxu0 %v4765
    %4904 = vmatpush1.bf16.msra.mxu0 %v4764
    %4905 = vmatprep.mubr.bf16.mxu0 %v4433
    %4906 = vmatmul.mubr.bf16.gmra.mrb[0].mxu0 %v4432
    %v4907 = vpop.f32.mrb[0].mxu0
    %v4908 = vadd.f32 %v4865, %v4907
    %v4909 = vpop.f32.mrb[0].mxu0
    %v4910 = vadd.f32 %v4867, %v4909
    %v4911 = vpop.f32.mrb[0].mxu0
    %v4912 = vadd.f32 %v4869, %v4911
    %v4913 = vpop.f32.mrb[0].mxu0
    %v4914 = vadd.f32 %v4871, %v4913
    %4915 = vdwg.mxu0
    %v4916 = vmax.f32 %v4908, 0.0
    %v4917 = vmax.f32 %v4910, 0.0
    %v4918 = vmax.f32 %v4912, 0.0
    %v4919 = vmax.f32 %v4914, 0.0
    %v4920 = vpack.c.bf16 %v4918, %v4916
    %v4921 = vpack.c.bf16 %v4919, %v4917
    %v4922 = vld [vmem:[#allocation10] sm:$0xf]
    %v4923 = vld [vmem:[#allocation10 + $0x4] sm:$0xf]
    %v4924 = vld [vmem:[#allocation10 + $0x8] sm:$0xf]
    %v4925 = vld [vmem:[#allocation10 + $0xc] sm:$0xf]
    %v4926 = vld [vmem:[#allocation10 + $0x10] sm:$0xf]
    %v4927 = vld [vmem:[#allocation10 + $0x14] sm:$0xf]
    %v4928 = vld [vmem:[#allocation10 + $0x18] sm:$0xf]
    %v4929 = vld [vmem:[#allocation10 + $0x1c] sm:$0xf]
    %v4930 = vld [vmem:[#allocation10 + $0x20] sm:$0xf]
    %v4931 = vld [vmem:[#allocation10 + $0x24] sm:$0xf]
    %v4932 = vld [vmem:[#allocation10 + $0x28] sm:$0xf]
    %v4933 = vld [vmem:[#allocation10 + $0x2c] sm:$0xf]
    %v4934 = vld [vmem:[#allocation10 + $0x30] sm:$0xf]
    %v4935 = vld [vmem:[#allocation10 + $0x34] sm:$0xf]
    %v4936 = vld [vmem:[#allocation10 + $0x38] sm:$0xf]
    %v4937 = vld [vmem:[#allocation10 + $0x3c] sm:$0xf]
    %v4938 = vld [vmem:[#allocation10 + $0x40] sm:$0xf]
    %v4939 = vld [vmem:[#allocation10 + $0x44] sm:$0xf]
    %v4940 = vld [vmem:[#allocation10 + $0x48] sm:$0xf]
    %v4941 = vld [vmem:[#allocation10 + $0x4c] sm:$0xf]
    %v4942 = vld [vmem:[#allocation10 + $0x50] sm:$0xf]
    %v4943 = vld [vmem:[#allocation10 + $0x54] sm:$0xf]
    %v4944 = vld [vmem:[#allocation10 + $0x58] sm:$0xf]
    %v4945 = vld [vmem:[#allocation10 + $0x5c] sm:$0xf]
    %v4946 = vld [vmem:[#allocation10 + $0x60] sm:$0xf]
    %v4947 = vld [vmem:[#allocation10 + $0x64] sm:$0xf]
    %v4948 = vld [vmem:[#allocation10 + $0x68] sm:$0xf]
    %v4949 = vld [vmem:[#allocation10 + $0x6c] sm:$0xf]
    %v4950 = vld [vmem:[#allocation10 + $0x70] sm:$0xf]
    %v4951 = vld [vmem:[#allocation10 + $0x74] sm:$0xf]
    %v4952 = vld [vmem:[#allocation10 + $0x78] sm:$0xf]
    %v4953 = vld [vmem:[#allocation10 + $0x7c] sm:$0xf]
    %v4954 = vld [vmem:[#allocation12] sm:$0x1]
    %v4956 = vlaneseq
    %v4957 = vshrl.u32 %v4956, 7
    %v4958 = vsub.s32 0, %v4957
    %v4959 = vrot.slane %v4954, %v4958
    %v4993 = vunpack.c.l.b16 %v4922
    %v4994 = vunpack.c.l.b16 %v4923
    %v4995 = vunpack.c.l.b16 %v4924
    %v4996 = vunpack.c.l.b16 %v4925
    %v4997 = vunpack.c.l.b16 %v4926
    %v4998 = vunpack.c.l.b16 %v4927
    %v4999 = vunpack.c.l.b16 %v4928
    %v5000 = vunpack.c.l.b16 %v4929
    %v5001 = vunpack.c.l.b16 %v4930
    %v5002 = vunpack.c.l.b16 %v4931
    %v5003 = vunpack.c.l.b16 %v4932
    %v5004 = vunpack.c.l.b16 %v4933
    %v5005 = vunpack.c.l.b16 %v4934
    %v5006 = vunpack.c.l.b16 %v4935
    %v5007 = vunpack.c.l.b16 %v4936
    %v5008 = vunpack.c.l.b16 %v4937
    %v5009 = vunpack.c.l.b16 %v4938
    %v5010 = vunpack.c.l.b16 %v4939
    %v5011 = vunpack.c.l.b16 %v4940
    %v5012 = vunpack.c.l.b16 %v4941
    %v5013 = vunpack.c.l.b16 %v4942
    %v5014 = vunpack.c.l.b16 %v4943
    %v5015 = vunpack.c.l.b16 %v4944
    %v5016 = vunpack.c.l.b16 %v4945
    %v5017 = vunpack.c.l.b16 %v4946
    %v5018 = vunpack.c.l.b16 %v4947
    %v5019 = vunpack.c.l.b16 %v4948
    %v5020 = vunpack.c.l.b16 %v4949
    %v5021 = vunpack.c.l.b16 %v4950
    %v5022 = vunpack.c.l.b16 %v4951
    %v5023 = vunpack.c.l.b16 %v4952
    %v5024 = vunpack.c.l.b16 %v4953
    %v5025 = vpack.c.b16 %v4994, %v4993
    %v5026 = vpack.c.b16 %v4996, %v4995
    %v5027 = vpack.c.b16 %v4998, %v4997
    %v5028 = vpack.c.b16 %v5000, %v4999
    %v5029 = vpack.c.b16 %v5002, %v5001
    %v5030 = vpack.c.b16 %v5004, %v5003
    %v5031 = vpack.c.b16 %v5006, %v5005
    %v5032 = vpack.c.b16 %v5008, %v5007
    %v5033 = vpack.c.b16 %v5010, %v5009
    %v5034 = vpack.c.b16 %v5012, %v5011
    %v5035 = vpack.c.b16 %v5014, %v5013
    %v5036 = vpack.c.b16 %v5016, %v5015
    %v5037 = vpack.c.b16 %v5018, %v5017
    %v5038 = vpack.c.b16 %v5020, %v5019
    %v5039 = vpack.c.b16 %v5022, %v5021
    %v5040 = vpack.c.b16 %v5024, %v5023
    %5057 = vmatprep.subr.bf16.mxu0 0
    %5058 = vmatpush1.bf16.msra.mxu0 %v5025
    %5059 = vmatprep.subr.bf16.mxu0 0
    %5060 = vmatpush1.bf16.msra.mxu0 %v5026
    %5061 = vmatprep.subr.bf16.mxu0 0
    %5062 = vmatpush1.bf16.msra.mxu0 %v5027
    %5063 = vmatprep.subr.bf16.mxu0 0
    %5064 = vmatpush1.bf16.msra.mxu0 %v5028
    %5065 = vmatprep.subr.bf16.mxu0 0
    %5066 = vmatpush1.bf16.msra.mxu0 %v5029
    %5067 = vmatprep.subr.bf16.mxu0 0
    %5068 = vmatpush1.bf16.msra.mxu0 %v5030
    %5069 = vmatprep.subr.bf16.mxu0 0
    %5070 = vmatpush1.bf16.msra.mxu0 %v5031
    %5071 = vmatprep.subr.bf16.mxu0 0
    %5072 = vmatpush1.bf16.msra.mxu0 %v5032
    %5073 = vmatprep.subr.bf16.mxu0 0
    %5074 = vmatpush1.bf16.msra.mxu0 %v5033
    %5075 = vmatprep.subr.bf16.mxu0 0
    %5076 = vmatpush1.bf16.msra.mxu0 %v5034
    %5077 = vmatprep.subr.bf16.mxu0 0
    %5078 = vmatpush1.bf16.msra.mxu0 %v5035
    %5079 = vmatprep.subr.bf16.mxu0 0
    %5080 = vmatpush1.bf16.msra.mxu0 %v5036
    %5081 = vmatprep.subr.bf16.mxu0 0
    %5082 = vmatpush1.bf16.msra.mxu0 %v5037
    %5083 = vmatprep.subr.bf16.mxu0 0
    %5084 = vmatpush1.bf16.msra.mxu0 %v5038
    %5085 = vmatprep.subr.bf16.mxu0 0
    %5086 = vmatpush1.bf16.msra.mxu0 %v5039
    %5087 = vmatprep.subr.bf16.mxu0 0
    %5088 = vmatpush1.bf16.msra.mxu0 %v5040
    %5089 = vmatprep.mubr.bf16.mxu0 %v4921
    %5090 = vmatmul.mubr.bf16.gmra.mrb[0].mxu0 %v4920
    %v5091 = vpop.f32.mrb[0].mxu0
    %v5092 = vadd.f32 %v4959, %v5091
    %v5093 = vpop.f32.mrb[0].mxu0
    %v5094 = vpop.f32.mrb[0].mxu0
    %v5095 = vadd.f32 %v4959, %v5094
    %v5096 = vpop.f32.mrb[0].mxu0
    %5097 = vdwg.mxu0
    %v5098 = vpack.c.bf16 %v5095, %v5092
    %v5100 = vunpack.c.l.b16 %v5098
    %v5101 = vunpack.c.h.b16 %v5098
    %v5102 = vpack.c.b16 %v5100, %v5100
    %v5103 = vpack.c.b16 %v5101, %v5101
    %5106 = vst [vmem:[#allocation13] sm:$0xf] %v5102
    %5107 = vst [vmem:[#allocation13 + $0x4] sm:$0xf] %v5103
    // Predicated region
    $region58: #{emotion_model_forward.1} parent=1 // pred_check
      _
    $region59: #{emotion_model_forward.1} parent=1 // pred_check_branch
      %5109 = sbr.rel (0) target = $region61
    $region60: #{emotion_model_forward.1} parent=1 // pred_region
      // Predicated region
      $region62: #{emotion_model_forward.1} parent=60 // pred_check
        _
      $region63: #{emotion_model_forward.1} parent=60 // pred_check_branch
        %5111 = sbr.rel (0) target = $region65
      $region64: #{emotion_model_forward.1} parent=60 // pred_region
        // Predicated region
        $region66: #{emotion_model_forward.1} parent=64 // pred_check
          _
        $region67: #{emotion_model_forward.1} parent=64 // pred_check_branch
          %5113 = sbr.rel target = $region69
        $region68: #{emotion_model_forward.1} parent=64 // pred_region
          // Predicated region
          $region81: #{emotion_model_forward.1} parent=68 // pred_check
            _
          $region82: #{emotion_model_forward.1} parent=68 // pred_check_branch
            %5128 = sbr.rel (0) target = $region84
          $region83: #{emotion_model_forward.1} parent=68 // pred_region
            loop: start=0, step=1, limit=1
            $region85: #{emotion_model_forward.1} parent=83 // loop_pre_header
              _
            $region86: #{emotion_model_forward.1} parent=83 // loop_header
              %s5131 = sphi 0, %s5135
              %p5132 = scmp.ge.s32.totalorder %s5131, 1
              %s5136 = sphi [#allocation13], [#allocation13]
              %s5137 = sphi %s7, %s7
            $region87: #{emotion_model_forward.1} parent=83 // loop_header_branch
              %5134 = sbr.rel (%p5132) target = $region91
            $region88: #{emotion_model_forward.1} parent=83 // loop_body
              %v5138 = vld [vmem:[%s5136] sm:$0xf]
              %5139 = vst [vmem:[%s5137] sm:$0xf] %v5138
            $region89: #{emotion_model_forward.1} parent=83 // loop_footer
              %s5135 = sadd.s32 1, %s5131
            $region90: #{emotion_model_forward.1} parent=83 // loop_footer_branch
              %5130 = sbr.rel target = $region86
            $region91: #{emotion_model_forward.1} parent=83 // loop_exit
              _
          $region84: #{emotion_model_forward.1} parent=68 // pred_fallthru
            _
        $region69: #{emotion_model_forward.1} parent=64 // pred_fallthru
          _
        // Predicated region
        $region70: #{emotion_model_forward.1} parent=64 // pred_check
          _
        $region71: #{emotion_model_forward.1} parent=64 // pred_check_branch
          %5115 = sbr.rel (0) target = $region73
        $region72: #{emotion_model_forward.1} parent=64 // pred_region
          loop: start=0, step=1, limit=1
          $region74: #{emotion_model_forward.1} parent=72 // loop_pre_header
            _
          $region75: #{emotion_model_forward.1} parent=72 // loop_header
            %s5118 = sphi 0, %s5122
            %p5119 = scmp.ge.s32.totalorder %s5118, 1
            %s5123 = sphi [#allocation13], [#allocation13]
            %s5124 = sphi %s7, %s7
          $region76: #{emotion_model_forward.1} parent=72 // loop_header_branch
            %5121 = sbr.rel (%p5119) target = $region80
          $region77: #{emotion_model_forward.1} parent=72 // loop_body
            %v5125 = vld [vmem:[%s5123] sm:$0xf]
            %5126 = vst [vmem:[%s5124] sm:$0xf] %v5125
          $region78: #{emotion_model_forward.1} parent=72 // loop_footer
            %s5122 = sadd.s32 1, %s5118
          $region79: #{emotion_model_forward.1} parent=72 // loop_footer_branch
            %5117 = sbr.rel target = $region75
          $region80: #{emotion_model_forward.1} parent=72 // loop_exit
            _
        $region73: #{emotion_model_forward.1} parent=64 // pred_fallthru
          _
      $region65: #{emotion_model_forward.1} parent=60 // pred_fallthru
        _
      %5140 = vnop
    $region61: #{emotion_model_forward.1} parent=1 // pred_fallthru
      _
    // Predicated region
    $region92: #{emotion_model_forward.1} parent=1 // pred_check
      _
    $region93: #{emotion_model_forward.1} parent=1 // pred_check_branch
      %5142 = sbr.rel (0) target = $region95
    $region94: #{emotion_model_forward.1} parent=1 // pred_region
      _
    $region95: #{emotion_model_forward.1} parent=1 // pred_fallthru
      _
    %5143 = vsyncpa [#allocation3], 1
    %5144 = vsyncpa [#allocation5], 1
    %5145 = vsyncpa [#allocation8], 1
    %5146 = vsyncpa [#allocation11], 1

</llo_original>
